<compile_context>
chip_gen: v5e
topology: v5e:2x2
jax: 0.10.0
libtpu: 0.0.40
codegen_flags: <defaults>
</compile_context>

<pallas_src>
import functools

import jax
import jax.numpy as jnp
from jax.experimental import pallas as pl
from jax.experimental.pallas import tpu as pltpu

D_EMB = 300      # embedding dim (fixed by the module: Conv1d(300, ...))
C_HID = 100      # conv channels (fixed by the module)
N_CLASS = 3      # fc output     (fixed by the module)
_KS = (3, 4, 5)  # conv kernel sizes; tap base into the 3/3-padded slab = 5 - K
_MAX_SHIFT = 4   # max tap shift = max(_KS) - 1


# --------------------------------------------------------------------------
# Kernel
# --------------------------------------------------------------------------
def _slab_conv(slab, w_ref, b_ref, n_taps, base, n_rows):
    """Conv1d over a flattened multi-sequence slab, as a sum of shifted
    (n_rows, 300) @ (300, C_out) MXU matmuls with f32 accumulation."""
    acc = jnp.dot(slab[base:base + n_rows, :], w_ref[0],
                  preferred_element_type=jnp.float32)
    for k in range(1, n_taps):
        acc = acc + jnp.dot(slab[base + k:base + k + n_rows, :], w_ref[k],
                            preferred_element_type=jnp.float32)
    return acc + b_ref[...]                      # bias: (1, C_out) f32


def gcae_kernel(xslab_ref, aslab_ref,
                wf3, bf3, wf4, bf4, wf5, bf5,
                wa, ba, wfa, bfa,
                out_ref, *, tb, l_feat, l_asp):
    lp = l_feat + 6                              # padded feature len / sequence
    lap = l_asp + 2                              # padded aspect  len / sequence

    xslab = xslab_ref[0]                         # (tb*lp, 300)  bf16
    aslab = aslab_ref[0]                         # (tb*lap, 300) bf16

    m_feat = tb * lp - _MAX_SHIFT
    m_asp = tb * lap - 2

    # Fused gated convs: lanes [0:100] = conv1 (tanh path), [100:200] = conv2
    # (gate path).  One accumulating matmul per tap over the whole slab.
    conv_out = {
        3: _slab_conv(xslab, wf3, bf3, 3, 2, m_feat),      # (m_feat, 200)
        4: _slab_conv(xslab, wf4, bf4, 4, 1, m_feat),
        5: _slab_conv(xslab, wf5, bf5, 5, 0, m_feat),
    }
    ca = _slab_conv(aslab, wa, ba, 3, 0, m_asp)            # (m_asp, 100)

    # Aspect branch: relu -> per-sequence max-pool over time -> fc_aspect.
    av_rows = [
        jnp.max(jnp.maximum(ca[s * lap:s * lap + l_asp, :], 0.0),
                axis=0, keepdims=True)
        for s in range(tb)
    ]
    aspect_v = jnp.concatenate(av_rows, axis=0)            # (tb, 100) f32
    gate = jnp.dot(aspect_v.astype(jnp.bfloat16), wfa[...],
                   preferred_element_type=jnp.float32) + bfa[...]   # (tb, 100)

    # Gated branches + per-sequence max-pool; emit lane-dense (tb, 300) block.
    out_rows = []
    for s in range(tb):
        g_s = gate[s:s + 1, :]                             # (1, 100)
        pooled = []
        for K in _KS:
            lout = l_feat + (K - 3)                        # L, L+1, L+2
            cs = conv_out[K][s * lp:s * lp + lout, :]      # (lout, 200)
            c1 = cs[:, :C_HID]
            c2 = cs[:, C_HID:]
            gated = jnp.tanh(c1) * jnp.maximum(c2 + g_s, 0.0)
            pooled.append(jnp.max(gated, axis=0, keepdims=True))   # (1, 100)
        out_rows.append(jnp.concatenate(pooled, axis=1))           # (1, 300)
    out_ref[0] = jnp.concatenate(out_rows, axis=0)                 # (tb, 300)


# --------------------------------------------------------------------------
# Weight preparation (do once, not per forward call)
# --------------------------------------------------------------------------
def prepare_weights(params):
    def wt(w):   # PyTorch (C_out, C_in, K) -> (K, C_in, C_out)
        return jnp.transpose(w, (2, 1, 0))

    prep = {}
    for K in _KS:
        # Fuse conv1_K / conv2_K along the output-channel (lane) axis.
        prep[f"wf{K}"] = jnp.concatenate(
            [wt(params[f"conv1_{K}_w"]), wt(params[f"conv2_{K}_w"])],
            axis=-1).astype(jnp.bfloat16)                          # (K, 300, 200)
        prep[f"bf{K}"] = jnp.concatenate(
            [params[f"conv1_{K}_b"], params[f"conv2_{K}_b"]]
        ).reshape(1, -1).astype(jnp.float32)                       # (1, 200)
    prep["wa"] = wt(params["conv3_3_w"]).astype(jnp.bfloat16)      # (3, 300, 100)
    prep["ba"] = params["conv3_3_b"].reshape(1, -1).astype(jnp.float32)
    prep["wfa"] = params["fc_aspect_w"].T.astype(jnp.bfloat16)     # (100, 100)
    prep["bfa"] = params["fc_aspect_b"].reshape(1, -1).astype(jnp.float32)
    prep["fc_w"] = params["fc_w"].T.astype(jnp.float32)            # (300, 3), XLA-side
    prep["fc_b"] = params["fc_b"].astype(jnp.float32)
    return prep


# --------------------------------------------------------------------------
# Wrapper
# --------------------------------------------------------------------------
def gcae_forward(feature_ids, aspect_ids, params, prepared=None, tb=None):
    if prepared is None:
        prepared = prepare_weights(params)

    emb = params["embed"]
    feat = emb[feature_ids].astype(jnp.bfloat16)        # (B, L, 300)
    asp = emb[aspect_ids].astype(jnp.bfloat16)          # (B, La, 300)
    B, L, _ = feat.shape
    La = asp.shape[1]

    # Sequences per grid step: keep >= 2 grid steps when B >= 2 (v7x megacore),
    # cap the block at 8 sequences.
    if tb is None:
        tb = max(1, min(8, B // 2)) if B >= 2 else 1
    num_blocks = pl.cdiv(B, tb)
    b_pad = num_blocks * tb

    lp = L + 6
    lap = La + 2

    # Zero-pad time for the widest conv (K=5: 3/side; K=3/4 reuse it via a
    # shifted tap base), pad batch to a multiple of tb, then flatten
    # (batch, time) so each grid step sees one lane-dense 2-D slab.
    xpad = jnp.pad(feat, ((0, b_pad - B), (3, 3), (0, 0)))
    apad = jnp.pad(asp, ((0, b_pad - B), (1, 1), (0, 0)))
    xslab = xpad.reshape(num_blocks, tb * lp, D_EMB)
    aslab = apad.reshape(num_blocks, tb * lap, D_EMB)

    w_inputs = [prepared["wf3"], prepared["bf3"],
                prepared["wf4"], prepared["bf4"],
                prepared["wf5"], prepared["bf5"],
                prepared["wa"], prepared["ba"],
                prepared["wfa"], prepared["bfa"]]

    def full_spec(arr):
        return pl.BlockSpec(arr.shape, lambda i, _nd=arr.ndim: (0,) * _nd)

    kernel = functools.partial(gcae_kernel, tb=tb, l_feat=L, l_asp=La)

    pooled = pl.pallas_call(
        kernel,
        out_shape=jax.ShapeDtypeStruct((num_blocks, tb, 3 * C_HID), jnp.float32),
        grid=(num_blocks,),
        in_specs=[
            pl.BlockSpec((1, tb * lp, D_EMB), lambda i: (i, 0, 0)),
            pl.BlockSpec((1, tb * lap, D_EMB), lambda i: (i, 0, 0)),
        ] + [full_spec(w) for w in w_inputs],
        out_specs=pl.BlockSpec((1, tb, 3 * C_HID), lambda i: (i, 0, 0)),
        compiler_params=pltpu.CompilerParams(
            dimension_semantics=("parallel",)),
    )(xslab, aslab, *w_inputs)

    pooled = pooled.reshape(b_pad, 3 * C_HID)[:B]       # (B, 300), lane-dense
    # TODO(synk): Dropout(0.2) is identity at inference; training-mode masking
    # is not implemented.
    return pooled @ prepared["fc_w"] + prepared["fc_b"]  # (B, 3) fc in XLA


# --------------------------------------------------------------------------
# Pure-JAX reference (mirrors the PyTorch forward) for verification
# --------------------------------------------------------------------------
def gcae_reference(feature_ids, aspect_ids, params):
    emb = params["embed"]
    feat = emb[feature_ids]
    asp = emb[aspect_ids]

    def conv1d(x_nlc, w, b, pad):   # x: (B, L, C);  w: (O, I, K) PyTorch layout
        out = jax.lax.conv_general_dilated(
            jnp.transpose(x_nlc, (0, 2, 1)), w, (1,), [(pad, pad)],
            dimension_numbers=("NCH", "OIH", "NCH"),
            precision=jax.lax.Precision.HIGHEST)
        return out + b[None, :, None]                                # (B, O, Lout)

    aa = jax.nn.relu(conv1d(asp, params["conv3_3_w"], params["conv3_3_b"], 1))
    aspect_v = jnp.max(aa, axis=2)                                   # (B, 100)
    gate = aspect_v @ params["fc_aspect_w"].T + params["fc_aspect_b"]

    feats = []
    for K in _KS:
        c1 = jnp.tanh(conv1d(feat, params[f"conv1_{K}_w"], params[f"conv1_{K}_b"], K - 2))
        c2 = jax.nn.relu(conv1d(feat, params[f"conv2_{K}_w"], params[f"conv2_{K}_b"], K - 2)
                         + gate[:, :, None])
        feats.append(jnp.max(c1 * c2, axis=2))                       # (B, 100)
    x = jnp.concatenate(feats, axis=1)                               # (B, 300)
    return x @ params["fc_w"].T + params["fc_b"]


# --------------------------------------------------------------------------
def make_params(key, vocab):
    ks = iter(jax.random.split(key, 32))
    p = {"embed": 0.1 * jax.random.normal(next(ks), (vocab, D_EMB), jnp.float32)}
    for branch in ("conv1", "conv2"):
        for K in _KS:
            p[f"{branch}_{K}_w"] = 0.1 * jax.random.normal(next(ks), (C_HID, D_EMB, K), jnp.float32)
            p[f"{branch}_{K}_b"] = 0.05 * jax.random.normal(next(ks), (C_HID,), jnp.float32)
    p["conv3_3_w"] = 0.1 * jax.random.normal(next(ks), (C_HID, D_EMB, 3), jnp.float32)
    p["conv3_3_b"] = 0.05 * jax.random.normal(next(ks), (C_HID,), jnp.float32)
    p["fc_aspect_w"] = 0.1 * jax.random.normal(next(ks), (C_HID, C_HID), jnp.float32)
    p["fc_aspect_b"] = 0.05 * jax.random.normal(next(ks), (C_HID,), jnp.float32)
    p["fc_w"] = 0.1 * jax.random.normal(next(ks), (N_CLASS, D_EMB), jnp.float32)
    p["fc_b"] = 0.05 * jax.random.normal(next(ks), (N_CLASS,), jnp.float32)
    return p


if __name__ == "__main__":
    key = jax.random.PRNGKey(0)
    kp, kf, ka = jax.random.split(key, 3)

    # Small shapes; B=5 deliberately exercises batch padding (tb=2, 3 grid
    # steps) and an unaligned per-sequence length.
    B, L, La, V = 5, 9, 4, 50
    params = make_params(kp, V)
    prepared = prepare_weights(params)          # one-time weight layout/cast
    feature_ids = jax.random.randint(kf, (B, L), 0, V, dtype=jnp.int32)
    aspect_ids = jax.random.randint(ka, (B, La), 0, V, dtype=jnp.int32)

    logits = jax.block_until_ready(
        gcae_forward(feature_ids, aspect_ids, params, prepared=prepared))
    ref = gcae_reference(feature_ids, aspect_ids, params)

    assert logits.shape == (B, N_CLASS), logits.shape
    # Kernel runs the matmuls in bf16 (f32 accumulation); reference is full f32.
    assert jnp.allclose(logits, ref, atol=2e-2, rtol=2e-2), (logits, ref)
    print("KERNEL_OK")
</pallas_src>

<mosaic_0001>
module attributes {stable_mosaic.version = 11 : i64} {
  func.func @gcae_kernel(%arg0: i32, %arg1: memref<1x30x300xbf16, #tpu.memory_space<vmem>>, %arg2: memref<1x12x300xbf16, #tpu.memory_space<vmem>>, %arg3: memref<3x300x200xbf16, #tpu.memory_space<vmem>>, %arg4: memref<1x200xf32, #tpu.memory_space<vmem>>, %arg5: memref<4x300x200xbf16, #tpu.memory_space<vmem>>, %arg6: memref<1x200xf32, #tpu.memory_space<vmem>>, %arg7: memref<5x300x200xbf16, #tpu.memory_space<vmem>>, %arg8: memref<1x200xf32, #tpu.memory_space<vmem>>, %arg9: memref<3x300x100xbf16, #tpu.memory_space<vmem>>, %arg10: memref<1x100xf32, #tpu.memory_space<vmem>>, %arg11: memref<100x100xbf16, #tpu.memory_space<vmem>>, %arg12: memref<1x100xf32, #tpu.memory_space<vmem>>, %arg13: memref<1x2x300xf32, #tpu.memory_space<vmem>>) attributes {dimension_semantics = [#tpu.dimension_semantics<parallel>], iteration_bounds = array<i64: 3>, scalar_prefetch = 0 : i64, scratch_operands = 0 : i64, tpu.core_type = #tpu.core_type<tc>, window_params = [{transform_indices = @transform_0, window_bounds = array<i64: 1, 30, 300>}, {transform_indices = @transform_1, window_bounds = array<i64: 1, 12, 300>}, {pipeline_mode = #tpu.pipeline_mode<synchronous>, transform_indices = @transform_2, window_bounds = array<i64: 3, 300, 200>}, {pipeline_mode = #tpu.pipeline_mode<synchronous>, transform_indices = @transform_3, window_bounds = array<i64: 1, 200>}, {pipeline_mode = #tpu.pipeline_mode<synchronous>, transform_indices = @transform_4, window_bounds = array<i64: 4, 300, 200>}, {pipeline_mode = #tpu.pipeline_mode<synchronous>, transform_indices = @transform_5, window_bounds = array<i64: 1, 200>}, {pipeline_mode = #tpu.pipeline_mode<synchronous>, transform_indices = @transform_6, window_bounds = array<i64: 5, 300, 200>}, {pipeline_mode = #tpu.pipeline_mode<synchronous>, transform_indices = @transform_7, window_bounds = array<i64: 1, 200>}, {pipeline_mode = #tpu.pipeline_mode<synchronous>, transform_indices = @transform_8, window_bounds = array<i64: 3, 300, 100>}, {pipeline_mode = #tpu.pipeline_mode<synchronous>, transform_indices = @transform_9, window_bounds = array<i64: 1, 100>}, {pipeline_mode = #tpu.pipeline_mode<synchronous>, transform_indices = @transform_10, window_bounds = array<i64: 100, 100>}, {pipeline_mode = #tpu.pipeline_mode<synchronous>, transform_indices = @transform_11, window_bounds = array<i64: 1, 100>}, {transform_indices = @transform_12, window_bounds = array<i64: 1, 2, 300>}]} {
    %c0 = arith.constant 0 : index
    %c0_0 = arith.constant 0 : index
    %c0_1 = arith.constant 0 : index
    %0 = vector.load %arg1[%c0, %c0_0, %c0_1] : memref<1x30x300xbf16, #tpu.memory_space<vmem>>, vector<1x30x300xbf16>
    %1 = vector.shape_cast %0 : vector<1x30x300xbf16> to vector<30x300xbf16>
    %c0_2 = arith.constant 0 : index
    %c0_3 = arith.constant 0 : index
    %c0_4 = arith.constant 0 : index
    %2 = vector.load %arg2[%c0_2, %c0_3, %c0_4] : memref<1x12x300xbf16, #tpu.memory_space<vmem>>, vector<1x12x300xbf16>
    %3 = vector.shape_cast %2 : vector<1x12x300xbf16> to vector<12x300xbf16>
    %4 = vector.extract_strided_slice %1 {offsets = [2, 0], sizes = [26, 300], strides = [1, 1]} : vector<30x300xbf16> to vector<26x300xbf16>
    %c0_5 = arith.constant 0 : index
    %c0_6 = arith.constant 0 : index
    %c0_7 = arith.constant 0 : index
    %5 = vector.load %arg3[%c0_5, %c0_6, %c0_7] : memref<3x300x200xbf16, #tpu.memory_space<vmem>>, vector<1x300x200xbf16>
    %6 = vector.shape_cast %5 : vector<1x300x200xbf16> to vector<300x200xbf16>
    %cst = arith.constant dense<0.000000e+00> : vector<26x200xf32>
    %7 = tpu.matmul %4, %6, %cst {dimension_numbers = #tpu.dot_dimension_numbers<[1], [0], [0], [1], [0, 0, 1, 1], [], []>} : vector<26x300xbf16>, vector<300x200xbf16>, vector<26x200xf32> -> vector<26x200xf32>
    %8 = vector.extract_strided_slice %1 {offsets = [3, 0], sizes = [26, 300], strides = [1, 1]} : vector<30x300xbf16> to vector<26x300xbf16>
    %c1 = arith.constant 1 : index
    %c0_8 = arith.constant 0 : index
    %c0_9 = arith.constant 0 : index
    %9 = vector.load %arg3[%c1, %c0_8, %c0_9] : memref<3x300x200xbf16, #tpu.memory_space<vmem>>, vector<1x300x200xbf16>
    %10 = vector.shape_cast %9 : vector<1x300x200xbf16> to vector<300x200xbf16>
    %cst_10 = arith.constant dense<0.000000e+00> : vector<26x200xf32>
    %11 = tpu.matmul %8, %10, %cst_10 {dimension_numbers = #tpu.dot_dimension_numbers<[1], [0], [0], [1], [0, 0, 1, 1], [], []>} : vector<26x300xbf16>, vector<300x200xbf16>, vector<26x200xf32> -> vector<26x200xf32>
    %12 = arith.addf %7, %11 : vector<26x200xf32>
    %13 = vector.extract_strided_slice %1 {offsets = [4, 0], sizes = [26, 300], strides = [1, 1]} : vector<30x300xbf16> to vector<26x300xbf16>
    %c2 = arith.constant 2 : index
    %c0_11 = arith.constant 0 : index
    %c0_12 = arith.constant 0 : index
    %14 = vector.load %arg3[%c2, %c0_11, %c0_12] : memref<3x300x200xbf16, #tpu.memory_space<vmem>>, vector<1x300x200xbf16>
    %15 = vector.shape_cast %14 : vector<1x300x200xbf16> to vector<300x200xbf16>
    %cst_13 = arith.constant dense<0.000000e+00> : vector<26x200xf32>
    %16 = tpu.matmul %13, %15, %cst_13 {dimension_numbers = #tpu.dot_dimension_numbers<[1], [0], [0], [1], [0, 0, 1, 1], [], []>} : vector<26x300xbf16>, vector<300x200xbf16>, vector<26x200xf32> -> vector<26x200xf32>
    %17 = arith.addf %12, %16 : vector<26x200xf32>
    %c0_14 = arith.constant 0 : index
    %c0_15 = arith.constant 0 : index
    %18 = vector.load %arg4[%c0_14, %c0_15] : memref<1x200xf32, #tpu.memory_space<vmem>>, vector<1x200xf32>
    %19 = vector.broadcast %18 : vector<1x200xf32> to vector<26x200xf32>
    %20 = arith.addf %17, %19 : vector<26x200xf32>
    %21 = vector.extract_strided_slice %1 {offsets = [1, 0], sizes = [26, 300], strides = [1, 1]} : vector<30x300xbf16> to vector<26x300xbf16>
    %c0_16 = arith.constant 0 : index
    %c0_17 = arith.constant 0 : index
    %c0_18 = arith.constant 0 : index
    %22 = vector.load %arg5[%c0_16, %c0_17, %c0_18] : memref<4x300x200xbf16, #tpu.memory_space<vmem>>, vector<1x300x200xbf16>
    %23 = vector.shape_cast %22 : vector<1x300x200xbf16> to vector<300x200xbf16>
    %cst_19 = arith.constant dense<0.000000e+00> : vector<26x200xf32>
    %24 = tpu.matmul %21, %23, %cst_19 {dimension_numbers = #tpu.dot_dimension_numbers<[1], [0], [0], [1], [0, 0, 1, 1], [], []>} : vector<26x300xbf16>, vector<300x200xbf16>, vector<26x200xf32> -> vector<26x200xf32>
    %25 = vector.extract_strided_slice %1 {offsets = [2, 0], sizes = [26, 300], strides = [1, 1]} : vector<30x300xbf16> to vector<26x300xbf16>
    %c1_20 = arith.constant 1 : index
    %c0_21 = arith.constant 0 : index
    %c0_22 = arith.constant 0 : index
    %26 = vector.load %arg5[%c1_20, %c0_21, %c0_22] : memref<4x300x200xbf16, #tpu.memory_space<vmem>>, vector<1x300x200xbf16>
    %27 = vector.shape_cast %26 : vector<1x300x200xbf16> to vector<300x200xbf16>
    %cst_23 = arith.constant dense<0.000000e+00> : vector<26x200xf32>
    %28 = tpu.matmul %25, %27, %cst_23 {dimension_numbers = #tpu.dot_dimension_numbers<[1], [0], [0], [1], [0, 0, 1, 1], [], []>} : vector<26x300xbf16>, vector<300x200xbf16>, vector<26x200xf32> -> vector<26x200xf32>
    %29 = arith.addf %24, %28 : vector<26x200xf32>
    %30 = vector.extract_strided_slice %1 {offsets = [3, 0], sizes = [26, 300], strides = [1, 1]} : vector<30x300xbf16> to vector<26x300xbf16>
    %c2_24 = arith.constant 2 : index
    %c0_25 = arith.constant 0 : index
    %c0_26 = arith.constant 0 : index
    %31 = vector.load %arg5[%c2_24, %c0_25, %c0_26] : memref<4x300x200xbf16, #tpu.memory_space<vmem>>, vector<1x300x200xbf16>
    %32 = vector.shape_cast %31 : vector<1x300x200xbf16> to vector<300x200xbf16>
    %cst_27 = arith.constant dense<0.000000e+00> : vector<26x200xf32>
    %33 = tpu.matmul %30, %32, %cst_27 {dimension_numbers = #tpu.dot_dimension_numbers<[1], [0], [0], [1], [0, 0, 1, 1], [], []>} : vector<26x300xbf16>, vector<300x200xbf16>, vector<26x200xf32> -> vector<26x200xf32>
    %34 = arith.addf %29, %33 : vector<26x200xf32>
    %35 = vector.extract_strided_slice %1 {offsets = [4, 0], sizes = [26, 300], strides = [1, 1]} : vector<30x300xbf16> to vector<26x300xbf16>
    %c3 = arith.constant 3 : index
    %c0_28 = arith.constant 0 : index
    %c0_29 = arith.constant 0 : index
    %36 = vector.load %arg5[%c3, %c0_28, %c0_29] : memref<4x300x200xbf16, #tpu.memory_space<vmem>>, vector<1x300x200xbf16>
    %37 = vector.shape_cast %36 : vector<1x300x200xbf16> to vector<300x200xbf16>
    %cst_30 = arith.constant dense<0.000000e+00> : vector<26x200xf32>
    %38 = tpu.matmul %35, %37, %cst_30 {dimension_numbers = #tpu.dot_dimension_numbers<[1], [0], [0], [1], [0, 0, 1, 1], [], []>} : vector<26x300xbf16>, vector<300x200xbf16>, vector<26x200xf32> -> vector<26x200xf32>
    %39 = arith.addf %34, %38 : vector<26x200xf32>
    %c0_31 = arith.constant 0 : index
    %c0_32 = arith.constant 0 : index
    %40 = vector.load %arg6[%c0_31, %c0_32] : memref<1x200xf32, #tpu.memory_space<vmem>>, vector<1x200xf32>
    %41 = vector.broadcast %40 : vector<1x200xf32> to vector<26x200xf32>
    %42 = arith.addf %39, %41 : vector<26x200xf32>
    %43 = vector.extract_strided_slice %1 {offsets = [0, 0], sizes = [26, 300], strides = [1, 1]} : vector<30x300xbf16> to vector<26x300xbf16>
    %c0_33 = arith.constant 0 : index
    %c0_34 = arith.constant 0 : index
    %c0_35 = arith.constant 0 : index
    %44 = vector.load %arg7[%c0_33, %c0_34, %c0_35] : memref<5x300x200xbf16, #tpu.memory_space<vmem>>, vector<1x300x200xbf16>
    %45 = vector.shape_cast %44 : vector<1x300x200xbf16> to vector<300x200xbf16>
    %cst_36 = arith.constant dense<0.000000e+00> : vector<26x200xf32>
    %46 = tpu.matmul %43, %45, %cst_36 {dimension_numbers = #tpu.dot_dimension_numbers<[1], [0], [0], [1], [0, 0, 1, 1], [], []>} : vector<26x300xbf16>, vector<300x200xbf16>, vector<26x200xf32> -> vector<26x200xf32>
    %47 = vector.extract_strided_slice %1 {offsets = [1, 0], sizes = [26, 300], strides = [1, 1]} : vector<30x300xbf16> to vector<26x300xbf16>
    %c1_37 = arith.constant 1 : index
    %c0_38 = arith.constant 0 : index
    %c0_39 = arith.constant 0 : index
    %48 = vector.load %arg7[%c1_37, %c0_38, %c0_39] : memref<5x300x200xbf16, #tpu.memory_space<vmem>>, vector<1x300x200xbf16>
    %49 = vector.shape_cast %48 : vector<1x300x200xbf16> to vector<300x200xbf16>
    %cst_40 = arith.constant dense<0.000000e+00> : vector<26x200xf32>
    %50 = tpu.matmul %47, %49, %cst_40 {dimension_numbers = #tpu.dot_dimension_numbers<[1], [0], [0], [1], [0, 0, 1, 1], [], []>} : vector<26x300xbf16>, vector<300x200xbf16>, vector<26x200xf32> -> vector<26x200xf32>
    %51 = arith.addf %46, %50 : vector<26x200xf32>
    %52 = vector.extract_strided_slice %1 {offsets = [2, 0], sizes = [26, 300], strides = [1, 1]} : vector<30x300xbf16> to vector<26x300xbf16>
    %c2_41 = arith.constant 2 : index
    %c0_42 = arith.constant 0 : index
    %c0_43 = arith.constant 0 : index
    %53 = vector.load %arg7[%c2_41, %c0_42, %c0_43] : memref<5x300x200xbf16, #tpu.memory_space<vmem>>, vector<1x300x200xbf16>
    %54 = vector.shape_cast %53 : vector<1x300x200xbf16> to vector<300x200xbf16>
    %cst_44 = arith.constant dense<0.000000e+00> : vector<26x200xf32>
    %55 = tpu.matmul %52, %54, %cst_44 {dimension_numbers = #tpu.dot_dimension_numbers<[1], [0], [0], [1], [0, 0, 1, 1], [], []>} : vector<26x300xbf16>, vector<300x200xbf16>, vector<26x200xf32> -> vector<26x200xf32>
    %56 = arith.addf %51, %55 : vector<26x200xf32>
    %57 = vector.extract_strided_slice %1 {offsets = [3, 0], sizes = [26, 300], strides = [1, 1]} : vector<30x300xbf16> to vector<26x300xbf16>
    %c3_45 = arith.constant 3 : index
    %c0_46 = arith.constant 0 : index
    %c0_47 = arith.constant 0 : index
    %58 = vector.load %arg7[%c3_45, %c0_46, %c0_47] : memref<5x300x200xbf16, #tpu.memory_space<vmem>>, vector<1x300x200xbf16>
    %59 = vector.shape_cast %58 : vector<1x300x200xbf16> to vector<300x200xbf16>
    %cst_48 = arith.constant dense<0.000000e+00> : vector<26x200xf32>
    %60 = tpu.matmul %57, %59, %cst_48 {dimension_numbers = #tpu.dot_dimension_numbers<[1], [0], [0], [1], [0, 0, 1, 1], [], []>} : vector<26x300xbf16>, vector<300x200xbf16>, vector<26x200xf32> -> vector<26x200xf32>
    %61 = arith.addf %56, %60 : vector<26x200xf32>
    %62 = vector.extract_strided_slice %1 {offsets = [4, 0], sizes = [26, 300], strides = [1, 1]} : vector<30x300xbf16> to vector<26x300xbf16>
    %c4 = arith.constant 4 : index
    %c0_49 = arith.constant 0 : index
    %c0_50 = arith.constant 0 : index
    %63 = vector.load %arg7[%c4, %c0_49, %c0_50] : memref<5x300x200xbf16, #tpu.memory_space<vmem>>, vector<1x300x200xbf16>
    %64 = vector.shape_cast %63 : vector<1x300x200xbf16> to vector<300x200xbf16>
    %cst_51 = arith.constant dense<0.000000e+00> : vector<26x200xf32>
    %65 = tpu.matmul %62, %64, %cst_51 {dimension_numbers = #tpu.dot_dimension_numbers<[1], [0], [0], [1], [0, 0, 1, 1], [], []>} : vector<26x300xbf16>, vector<300x200xbf16>, vector<26x200xf32> -> vector<26x200xf32>
    %66 = arith.addf %61, %65 : vector<26x200xf32>
    %c0_52 = arith.constant 0 : index
    %c0_53 = arith.constant 0 : index
    %67 = vector.load %arg8[%c0_52, %c0_53] : memref<1x200xf32, #tpu.memory_space<vmem>>, vector<1x200xf32>
    %68 = vector.broadcast %67 : vector<1x200xf32> to vector<26x200xf32>
    %69 = arith.addf %66, %68 : vector<26x200xf32>
    %70 = vector.extract_strided_slice %3 {offsets = [0, 0], sizes = [10, 300], strides = [1, 1]} : vector<12x300xbf16> to vector<10x300xbf16>
    %c0_54 = arith.constant 0 : index
    %c0_55 = arith.constant 0 : index
    %c0_56 = arith.constant 0 : index
    %71 = vector.load %arg9[%c0_54, %c0_55, %c0_56] : memref<3x300x100xbf16, #tpu.memory_space<vmem>>, vector<1x300x100xbf16>
    %72 = vector.shape_cast %71 : vector<1x300x100xbf16> to vector<300x100xbf16>
    %cst_57 = arith.constant dense<0.000000e+00> : vector<10x100xf32>
    %73 = tpu.matmul %70, %72, %cst_57 {dimension_numbers = #tpu.dot_dimension_numbers<[1], [0], [0], [1], [0, 0, 1, 1], [], []>} : vector<10x300xbf16>, vector<300x100xbf16>, vector<10x100xf32> -> vector<10x100xf32>
    %74 = vector.extract_strided_slice %3 {offsets = [1, 0], sizes = [10, 300], strides = [1, 1]} : vector<12x300xbf16> to vector<10x300xbf16>
    %c1_58 = arith.constant 1 : index
    %c0_59 = arith.constant 0 : index
    %c0_60 = arith.constant 0 : index
    %75 = vector.load %arg9[%c1_58, %c0_59, %c0_60] : memref<3x300x100xbf16, #tpu.memory_space<vmem>>, vector<1x300x100xbf16>
    %76 = vector.shape_cast %75 : vector<1x300x100xbf16> to vector<300x100xbf16>
    %cst_61 = arith.constant dense<0.000000e+00> : vector<10x100xf32>
    %77 = tpu.matmul %74, %76, %cst_61 {dimension_numbers = #tpu.dot_dimension_numbers<[1], [0], [0], [1], [0, 0, 1, 1], [], []>} : vector<10x300xbf16>, vector<300x100xbf16>, vector<10x100xf32> -> vector<10x100xf32>
    %78 = arith.addf %73, %77 : vector<10x100xf32>
    %79 = vector.extract_strided_slice %3 {offsets = [2, 0], sizes = [10, 300], strides = [1, 1]} : vector<12x300xbf16> to vector<10x300xbf16>
    %c2_62 = arith.constant 2 : index
    %c0_63 = arith.constant 0 : index
    %c0_64 = arith.constant 0 : index
    %80 = vector.load %arg9[%c2_62, %c0_63, %c0_64] : memref<3x300x100xbf16, #tpu.memory_space<vmem>>, vector<1x300x100xbf16>
    %81 = vector.shape_cast %80 : vector<1x300x100xbf16> to vector<300x100xbf16>
    %cst_65 = arith.constant dense<0.000000e+00> : vector<10x100xf32>
    %82 = tpu.matmul %79, %81, %cst_65 {dimension_numbers = #tpu.dot_dimension_numbers<[1], [0], [0], [1], [0, 0, 1, 1], [], []>} : vector<10x300xbf16>, vector<300x100xbf16>, vector<10x100xf32> -> vector<10x100xf32>
    %83 = arith.addf %78, %82 : vector<10x100xf32>
    %c0_66 = arith.constant 0 : index
    %c0_67 = arith.constant 0 : index
    %84 = vector.load %arg10[%c0_66, %c0_67] : memref<1x100xf32, #tpu.memory_space<vmem>>, vector<1x100xf32>
    %85 = vector.broadcast %84 : vector<1x100xf32> to vector<10x100xf32>
    %86 = arith.addf %83, %85 : vector<10x100xf32>
    %87 = vector.extract_strided_slice %86 {offsets = [0, 0], sizes = [4, 100], strides = [1, 1]} : vector<10x100xf32> to vector<4x100xf32>
    %cst_68 = arith.constant 0.000000e+00 : f32
    %88 = vector.broadcast %cst_68 : f32 to vector<4x100xf32>
    %89 = arith.maximumf %87, %88 : vector<4x100xf32>
    %cst_69 = arith.constant dense<0xFF800000> : vector<100xf32>
    %90 = vector.multi_reduction <maximumf>, %89, %cst_69 [0] : vector<4x100xf32> to vector<100xf32>
    %91 = vector.shape_cast %90 : vector<100xf32> to vector<1x100xf32>
    %92 = vector.extract_strided_slice %86 {offsets = [6, 0], sizes = [4, 100], strides = [1, 1]} : vector<10x100xf32> to vector<4x100xf32>
    %cst_70 = arith.constant 0.000000e+00 : f32
    %93 = vector.broadcast %cst_70 : f32 to vector<4x100xf32>
    %94 = arith.maximumf %92, %93 : vector<4x100xf32>
    %cst_71 = arith.constant dense<0xFF800000> : vector<100xf32>
    %95 = vector.multi_reduction <maximumf>, %94, %cst_71 [0] : vector<4x100xf32> to vector<100xf32>
    %96 = vector.shape_cast %95 : vector<100xf32> to vector<1x100xf32>
    %97 = tpu.concatenate %91, %96 in 0 : vector<1x100xf32>, vector<1x100xf32> -> vector<2x100xf32>
    %98 = arith.truncf %97 : vector<2x100xf32> to vector<2x100xbf16>
    %c0_72 = arith.constant 0 : index
    %c0_73 = arith.constant 0 : index
    %99 = vector.load %arg11[%c0_72, %c0_73] : memref<100x100xbf16, #tpu.memory_space<vmem>>, vector<100x100xbf16>
    %cst_74 = arith.constant dense<0.000000e+00> : vector<2x100xf32>
    %100 = tpu.matmul %98, %99, %cst_74 {dimension_numbers = #tpu.dot_dimension_numbers<[1], [0], [0], [1], [0, 0, 1, 1], [], []>} : vector<2x100xbf16>, vector<100x100xbf16>, vector<2x100xf32> -> vector<2x100xf32>
    %c0_75 = arith.constant 0 : index
    %c0_76 = arith.constant 0 : index
    %101 = vector.load %arg12[%c0_75, %c0_76] : memref<1x100xf32, #tpu.memory_space<vmem>>, vector<1x100xf32>
    %102 = vector.broadcast %101 : vector<1x100xf32> to vector<2x100xf32>
    %103 = arith.addf %100, %102 : vector<2x100xf32>
    %104 = vector.extract_strided_slice %103 {offsets = [0, 0], sizes = [1, 100], strides = [1, 1]} : vector<2x100xf32> to vector<1x100xf32>
    %105 = vector.extract_strided_slice %20 {offsets = [0, 0], sizes = [9, 200], strides = [1, 1]} : vector<26x200xf32> to vector<9x200xf32>
    %106 = vector.extract_strided_slice %105 {offsets = [0, 0], sizes = [9, 100], strides = [1, 1]} : vector<9x200xf32> to vector<9x100xf32>
    %107 = vector.extract_strided_slice %105 {offsets = [0, 100], sizes = [9, 100], strides = [1, 1]} : vector<9x200xf32> to vector<9x100xf32>
    %108 = math.tanh %106 : vector<9x100xf32>
    %109 = vector.broadcast %104 : vector<1x100xf32> to vector<9x100xf32>
    %110 = arith.addf %107, %109 : vector<9x100xf32>
    %cst_77 = arith.constant 0.000000e+00 : f32
    %111 = vector.broadcast %cst_77 : f32 to vector<9x100xf32>
    %112 = arith.maximumf %110, %111 : vector<9x100xf32>
    %113 = arith.mulf %108, %112 : vector<9x100xf32>
    %cst_78 = arith.constant dense<0xFF800000> : vector<100xf32>
    %114 = vector.multi_reduction <maximumf>, %113, %cst_78 [0] : vector<9x100xf32> to vector<100xf32>
    %115 = vector.shape_cast %114 : vector<100xf32> to vector<1x100xf32>
    %116 = vector.extract_strided_slice %42 {offsets = [0, 0], sizes = [10, 200], strides = [1, 1]} : vector<26x200xf32> to vector<10x200xf32>
    %117 = vector.extract_strided_slice %116 {offsets = [0, 0], sizes = [10, 100], strides = [1, 1]} : vector<10x200xf32> to vector<10x100xf32>
    %118 = vector.extract_strided_slice %116 {offsets = [0, 100], sizes = [10, 100], strides = [1, 1]} : vector<10x200xf32> to vector<10x100xf32>
    %119 = math.tanh %117 : vector<10x100xf32>
    %120 = vector.broadcast %104 : vector<1x100xf32> to vector<10x100xf32>
    %121 = arith.addf %118, %120 : vector<10x100xf32>
    %cst_79 = arith.constant 0.000000e+00 : f32
    %122 = vector.broadcast %cst_79 : f32 to vector<10x100xf32>
    %123 = arith.maximumf %121, %122 : vector<10x100xf32>
    %124 = arith.mulf %119, %123 : vector<10x100xf32>
    %cst_80 = arith.constant dense<0xFF800000> : vector<100xf32>
    %125 = vector.multi_reduction <maximumf>, %124, %cst_80 [0] : vector<10x100xf32> to vector<100xf32>
    %126 = vector.shape_cast %125 : vector<100xf32> to vector<1x100xf32>
    %127 = vector.extract_strided_slice %69 {offsets = [0, 0], sizes = [11, 200], strides = [1, 1]} : vector<26x200xf32> to vector<11x200xf32>
    %128 = vector.extract_strided_slice %127 {offsets = [0, 0], sizes = [11, 100], strides = [1, 1]} : vector<11x200xf32> to vector<11x100xf32>
    %129 = vector.extract_strided_slice %127 {offsets = [0, 100], sizes = [11, 100], strides = [1, 1]} : vector<11x200xf32> to vector<11x100xf32>
    %130 = math.tanh %128 : vector<11x100xf32>
    %131 = vector.broadcast %104 : vector<1x100xf32> to vector<11x100xf32>
    %132 = arith.addf %129, %131 : vector<11x100xf32>
    %cst_81 = arith.constant 0.000000e+00 : f32
    %133 = vector.broadcast %cst_81 : f32 to vector<11x100xf32>
    %134 = arith.maximumf %132, %133 : vector<11x100xf32>
    %135 = arith.mulf %130, %134 : vector<11x100xf32>
    %cst_82 = arith.constant dense<0xFF800000> : vector<100xf32>
    %136 = vector.multi_reduction <maximumf>, %135, %cst_82 [0] : vector<11x100xf32> to vector<100xf32>
    %137 = vector.shape_cast %136 : vector<100xf32> to vector<1x100xf32>
    %138 = tpu.concatenate %115, %126, %137 in 1 : vector<1x100xf32>, vector<1x100xf32>, vector<1x100xf32> -> vector<1x300xf32>
    %139 = vector.extract_strided_slice %103 {offsets = [1, 0], sizes = [1, 100], strides = [1, 1]} : vector<2x100xf32> to vector<1x100xf32>
    %140 = vector.extract_strided_slice %20 {offsets = [15, 0], sizes = [9, 200], strides = [1, 1]} : vector<26x200xf32> to vector<9x200xf32>
    %141 = vector.extract_strided_slice %140 {offsets = [0, 0], sizes = [9, 100], strides = [1, 1]} : vector<9x200xf32> to vector<9x100xf32>
    %142 = vector.extract_strided_slice %140 {offsets = [0, 100], sizes = [9, 100], strides = [1, 1]} : vector<9x200xf32> to vector<9x100xf32>
    %143 = math.tanh %141 : vector<9x100xf32>
    %144 = vector.broadcast %139 : vector<1x100xf32> to vector<9x100xf32>
    %145 = arith.addf %142, %144 : vector<9x100xf32>
    %cst_83 = arith.constant 0.000000e+00 : f32
    %146 = vector.broadcast %cst_83 : f32 to vector<9x100xf32>
    %147 = arith.maximumf %145, %146 : vector<9x100xf32>
    %148 = arith.mulf %143, %147 : vector<9x100xf32>
    %cst_84 = arith.constant dense<0xFF800000> : vector<100xf32>
    %149 = vector.multi_reduction <maximumf>, %148, %cst_84 [0] : vector<9x100xf32> to vector<100xf32>
    %150 = vector.shape_cast %149 : vector<100xf32> to vector<1x100xf32>
    %151 = vector.extract_strided_slice %42 {offsets = [15, 0], sizes = [10, 200], strides = [1, 1]} : vector<26x200xf32> to vector<10x200xf32>
    %152 = vector.extract_strided_slice %151 {offsets = [0, 0], sizes = [10, 100], strides = [1, 1]} : vector<10x200xf32> to vector<10x100xf32>
    %153 = vector.extract_strided_slice %151 {offsets = [0, 100], sizes = [10, 100], strides = [1, 1]} : vector<10x200xf32> to vector<10x100xf32>
    %154 = math.tanh %152 : vector<10x100xf32>
    %155 = vector.broadcast %139 : vector<1x100xf32> to vector<10x100xf32>
    %156 = arith.addf %153, %155 : vector<10x100xf32>
    %cst_85 = arith.constant 0.000000e+00 : f32
    %157 = vector.broadcast %cst_85 : f32 to vector<10x100xf32>
    %158 = arith.maximumf %156, %157 : vector<10x100xf32>
    %159 = arith.mulf %154, %158 : vector<10x100xf32>
    %cst_86 = arith.constant dense<0xFF800000> : vector<100xf32>
    %160 = vector.multi_reduction <maximumf>, %159, %cst_86 [0] : vector<10x100xf32> to vector<100xf32>
    %161 = vector.shape_cast %160 : vector<100xf32> to vector<1x100xf32>
    %162 = vector.extract_strided_slice %69 {offsets = [15, 0], sizes = [11, 200], strides = [1, 1]} : vector<26x200xf32> to vector<11x200xf32>
    %163 = vector.extract_strided_slice %162 {offsets = [0, 0], sizes = [11, 100], strides = [1, 1]} : vector<11x200xf32> to vector<11x100xf32>
    %164 = vector.extract_strided_slice %162 {offsets = [0, 100], sizes = [11, 100], strides = [1, 1]} : vector<11x200xf32> to vector<11x100xf32>
    %165 = math.tanh %163 : vector<11x100xf32>
    %166 = vector.broadcast %139 : vector<1x100xf32> to vector<11x100xf32>
    %167 = arith.addf %164, %166 : vector<11x100xf32>
    %cst_87 = arith.constant 0.000000e+00 : f32
    %168 = vector.broadcast %cst_87 : f32 to vector<11x100xf32>
    %169 = arith.maximumf %167, %168 : vector<11x100xf32>
    %170 = arith.mulf %165, %169 : vector<11x100xf32>
    %cst_88 = arith.constant dense<0xFF800000> : vector<100xf32>
    %171 = vector.multi_reduction <maximumf>, %170, %cst_88 [0] : vector<11x100xf32> to vector<100xf32>
    %172 = vector.shape_cast %171 : vector<100xf32> to vector<1x100xf32>
    %173 = tpu.concatenate %150, %161, %172 in 1 : vector<1x100xf32>, vector<1x100xf32>, vector<1x100xf32> -> vector<1x300xf32>
    %174 = tpu.concatenate %138, %173 in 0 : vector<1x300xf32>, vector<1x300xf32> -> vector<2x300xf32>
    %c0_89 = arith.constant 0 : index
    %c0_90 = arith.constant 0 : index
    %c0_91 = arith.constant 0 : index
    %175 = vector.load %arg13[%c0_89, %c0_90, %c0_91] : memref<1x2x300xf32, #tpu.memory_space<vmem>>, vector<1x2x300xf32>
    %176 = vector.shape_cast %175 : vector<1x2x300xf32> to vector<2x300xf32>
    %177 = vector.shape_cast %174 : vector<2x300xf32> to vector<1x2x300xf32>
    tpu.vector_store %arg13[%c0_89, %c0_90, %c0_91], %177 {strides = array<i32>} : memref<1x2x300xf32, #tpu.memory_space<vmem>>, vector<1x2x300xf32>,
    return
  }
  func.func @transform_0(%arg0: i32) -> (i32, i32, i32) {
    %c0_i32 = arith.constant 0 : i32
    %c0_i32_0 = arith.constant 0 : i32
    %c0_i32_1 = arith.constant 0 : i32
    return %arg0, %c0_i32, %c0_i32_0 : i32, i32, i32
  }
  func.func @transform_1(%arg0: i32) -> (i32, i32, i32) {
    %c0_i32 = arith.constant 0 : i32
    %c0_i32_0 = arith.constant 0 : i32
    %c0_i32_1 = arith.constant 0 : i32
    return %arg0, %c0_i32, %c0_i32_0 : i32, i32, i32
  }
  func.func @transform_2(%arg0: i32) -> (i32, i32, i32) {
    %c0_i32 = arith.constant 0 : i32
    %c0_i32_0 = arith.constant 0 : i32
    %c0_i32_1 = arith.constant 0 : i32
    %c0_i32_2 = arith.constant 0 : i32
    return %c0_i32, %c0_i32_0, %c0_i32_1 : i32, i32, i32
  }
  func.func @transform_3(%arg0: i32) -> (i32, i32) {
    %c0_i32 = arith.constant 0 : i32
    %c0_i32_0 = arith.constant 0 : i32
    %c0_i32_1 = arith.constant 0 : i32
    return %c0_i32, %c0_i32_0 : i32, i32
  }
  func.func @transform_4(%arg0: i32) -> (i32, i32, i32) {
    %c0_i32 = arith.constant 0 : i32
    %c0_i32_0 = arith.constant 0 : i32
    %c0_i32_1 = arith.constant 0 : i32
    %c0_i32_2 = arith.constant 0 : i32
    return %c0_i32, %c0_i32_0, %c0_i32_1 : i32, i32, i32
  }
  func.func @transform_5(%arg0: i32) -> (i32, i32) {
    %c0_i32 = arith.constant 0 : i32
    %c0_i32_0 = arith.constant 0 : i32
    %c0_i32_1 = arith.constant 0 : i32
    return %c0_i32, %c0_i32_0 : i32, i32
  }
  func.func @transform_6(%arg0: i32) -> (i32, i32, i32) {
    %c0_i32 = arith.constant 0 : i32
    %c0_i32_0 = arith.constant 0 : i32
    %c0_i32_1 = arith.constant 0 : i32
    %c0_i32_2 = arith.constant 0 : i32
    return %c0_i32, %c0_i32_0, %c0_i32_1 : i32, i32, i32
  }
  func.func @transform_7(%arg0: i32) -> (i32, i32) {
    %c0_i32 = arith.constant 0 : i32
    %c0_i32_0 = arith.constant 0 : i32
    %c0_i32_1 = arith.constant 0 : i32
    return %c0_i32, %c0_i32_0 : i32, i32
  }
  func.func @transform_8(%arg0: i32) -> (i32, i32, i32) {
    %c0_i32 = arith.constant 0 : i32
    %c0_i32_0 = arith.constant 0 : i32
    %c0_i32_1 = arith.constant 0 : i32
    %c0_i32_2 = arith.constant 0 : i32
    return %c0_i32, %c0_i32_0, %c0_i32_1 : i32, i32, i32
  }
  func.func @transform_9(%arg0: i32) -> (i32, i32) {
    %c0_i32 = arith.constant 0 : i32
    %c0_i32_0 = arith.constant 0 : i32
    %c0_i32_1 = arith.constant 0 : i32
    return %c0_i32, %c0_i32_0 : i32, i32
  }
  func.func @transform_10(%arg0: i32) -> (i32, i32) {
    %c0_i32 = arith.constant 0 : i32
    %c0_i32_0 = arith.constant 0 : i32
    %c0_i32_1 = arith.constant 0 : i32
    return %c0_i32, %c0_i32_0 : i32, i32
  }
  func.func @transform_11(%arg0: i32) -> (i32, i32) {
    %c0_i32 = arith.constant 0 : i32
    %c0_i32_0 = arith.constant 0 : i32
    %c0_i32_1 = arith.constant 0 : i32
    return %c0_i32, %c0_i32_0 : i32, i32
  }
  func.func @transform_12(%arg0: i32) -> (i32, i32, i32) {
    %c0_i32 = arith.constant 0 : i32
    %c0_i32_0 = arith.constant 0 : i32
    %c0_i32_1 = arith.constant 0 : i32
    return %arg0, %c0_i32, %c0_i32_0 : i32, i32, i32
  }
}

</mosaic_0001>

<llo_original>
// kernel: tpu_custom_call.1
$region0: #{tpu_custom_call.1}
  #allocation0 [shape = 'u32[]', space=smem, size = 0x4, offset = 0x4, fixed_abs, tag = 'smem constant byte address 0x4 - core index']
  #allocation1 [shape = 'u32[72,128]{1,0:T(1,128)}', space=vmem, size = 0x9000, scoped, tag = 'internal scratch']
  %s0 = inlined_call_operand.vmem [shape: bf16[3,30,300], index: 0, kind: input, shape index: {}]
  %s1 = inlined_call_operand.vmem [shape: bf16[3,12,300], index: 1, kind: input, shape index: {}]
  %s2 = inlined_call_operand.vmem [shape: bf16[3,300,200], index: 2, kind: input, shape index: {}]
  %s3 = inlined_call_operand.vmem [shape: f32[1,200], index: 3, kind: input, shape index: {}]
  %s4 = inlined_call_operand.vmem [shape: bf16[4,300,200], index: 4, kind: input, shape index: {}]
  %s5 = inlined_call_operand.vmem [shape: f32[1,200], index: 5, kind: input, shape index: {}]
  %s6 = inlined_call_operand.vmem [shape: bf16[5,300,200], index: 6, kind: input, shape index: {}]
  %s7 = inlined_call_operand.vmem [shape: f32[1,200], index: 7, kind: input, shape index: {}]
  %s8 = inlined_call_operand.vmem [shape: bf16[3,300,100], index: 8, kind: input, shape index: {}]
  %s9 = inlined_call_operand.vmem [shape: f32[1,100], index: 9, kind: input, shape index: {}]
  %s10 = inlined_call_operand.vmem [shape: bf16[100,100], index: 10, kind: input, shape index: {}]
  %s11 = inlined_call_operand.vmem [shape: f32[1,100], index: 11, kind: input, shape index: {}]
  %s12 = inlined_call_operand.hbm [shape: f32[3,2,300], index: 12, kind: output, shape index: {}]
  %s13 = sld [smem:[#allocation0]]
  $region81: #{tpu_custom_call.1} parent=0
    _
  %s15 = ssub.s32 1, %s13
  %s16 = scalar_select 0, %s15, %s13
  $region1: #{tpu_custom_call.1} parent=0
    #allocation2 [shape = 'u8[6144]{0}', space=vmem, size = 0x1800, scoped, tag = 'output window, operand 0']
    #allocation3 [shape = 's32[2]{0}', space=sflag, size = 0x8, scoped, tag = 'scoped memory for tpu_custom_call.1']
    %17 = vsyncpa [#allocation3], 0
    %s18 = scalar_lea.sflag [#allocation3], 1
    %19 = vsyncpa %s18, 0
    loop: start=0, step=1, limit=5
    $region2: #{tpu_custom_call.1} parent=1 // loop_pre_header
      _
    $region3: #{tpu_custom_call.1} parent=1 // loop_header
      %s21 = sphi 0, %s25
      %p22 = scmp.ge.s32.totalorder %s21, 5
      %s31 = sphi 0, %s33
      %s34 = sphi 0, %s31
      %s35 = sphi 0, %s34
      %s51 = sphi 0, %s35
      %s57 = sphi 0, %s59
      %s60 = sphi 0, %s57
      %s61 = sphi 0, %s60
      %s77 = sphi 0, %s61
      %s81 = sphi 0, %s81
      %s83 = sphi 0, %s81
      %s84 = sphi 0, %s83
      %s98 = sphi 0, %s84
      %s102 = sphi 0, %s102
      %s104 = sphi 0, %s102
      %s105 = sphi 0, %s104
      %s119 = sphi 0, %s105
      %s123 = sphi 0, %s123
      %s125 = sphi 0, %s123
      %s126 = sphi 0, %s125
      %s140 = sphi 0, %s126
      %s144 = sphi 0, %s144
      %s146 = sphi 0, %s144
      %s147 = sphi 0, %s146
      %s161 = sphi 0, %s147
      %s165 = sphi 0, %s165
      %s167 = sphi 0, %s165
      %s168 = sphi 0, %s167
      %s182 = sphi 0, %s168
      %s186 = sphi 0, %s186
      %s188 = sphi 0, %s186
      %s189 = sphi 0, %s188
      %s203 = sphi 0, %s189
      %s207 = sphi 0, %s207
      %s209 = sphi 0, %s207
      %s210 = sphi 0, %s209
      %s224 = sphi 0, %s210
      %s228 = sphi 0, %s228
      %s230 = sphi 0, %s228
      %s231 = sphi 0, %s230
      %s245 = sphi 0, %s231
      %s249 = sphi 0, %s249
      %s251 = sphi 0, %s249
      %s252 = sphi 0, %s251
      %s266 = sphi 0, %s252
      %s270 = sphi 0, %s270
      %s272 = sphi 0, %s270
      %s273 = sphi 0, %s272
      %s287 = sphi 0, %s273
      %s293 = sphi 0, %s295
      %s296 = sphi 0, %s293
      %s297 = sphi 0, %s296
      %s313 = sphi 0, %s297
    $region4: #{tpu_custom_call.1} parent=1 // loop_header_branch
      %24 = sbr.rel (%p22) target = $region8
    $region5: #{tpu_custom_call.1} parent=1 // loop_body
      %s26 = ssub.s32 %s21, 1
      %s27 = ssub.s32 %s21, 2
      %s28 = sadd.s32 %s21, 1
      %s29 = ssub.s32 %s21, %s28
      %p30 = scmp.eq.s32.totalorder %s29, 0
      %s32 = sadd.s32 %s31, 1
      %s33 = scalar_select %p30, %s31, %s32
      %p36 = pneg %p30
      %p37 = scmp.eq.s32.totalorder %s21, 2
      %p38 = por %p36, %p37
      %p39 = scmp.ne.s32.totalorder %s31, %s34
      %p40 = scmp.eq.s32.totalorder %s21, 0
      %p41 = por %p39, %p40
      %p42 = scmp.ne.s32.totalorder %s31, %s34
      %p43 = scmp.eq.s32.totalorder %s26, 2
      %p44 = por %p42, %p43
      %p45 = scmp.ne.s32.totalorder %s34, %s35
      %p46 = scmp.eq.s32.totalorder %s26, 0
      %p47 = por %p45, %p46
      %p48 = scmp.ne.s32.totalorder %s34, %s35
      %p49 = scmp.eq.s32.totalorder %s27, 2
      %p50 = por %p48, %p49
      %p52 = scmp.ne.s32.totalorder %s35, %s51
      %p53 = scmp.eq.s32.totalorder %s27, 0
      %p54 = por %p52, %p53
      %s55 = ssub.s32 %s21, %s28
      %p56 = scmp.eq.s32.totalorder %s55, 0
      %s58 = sadd.s32 %s57, 1
      %s59 = scalar_select %p56, %s57, %s58
      %p62 = pneg %p56
      %p63 = scmp.eq.s32.totalorder %s21, 2
      %p64 = por %p62, %p63
      %p65 = scmp.ne.s32.totalorder %s57, %s60
      %p66 = scmp.eq.s32.totalorder %s21, 0
      %p67 = por %p65, %p66
      %p68 = scmp.ne.s32.totalorder %s57, %s60
      %p69 = scmp.eq.s32.totalorder %s26, 2
      %p70 = por %p68, %p69
      %p71 = scmp.ne.s32.totalorder %s60, %s61
      %p72 = scmp.eq.s32.totalorder %s26, 0
      %p73 = por %p71, %p72
      %p74 = scmp.ne.s32.totalorder %s60, %s61
      %p75 = scmp.eq.s32.totalorder %s27, 2
      %p76 = por %p74, %p75
      %p78 = scmp.ne.s32.totalorder %s61, %s77
      %p79 = scmp.eq.s32.totalorder %s27, 0
      %p80 = por %p78, %p79
      %s82 = sadd.s32 %s81, 1
      %p85 = scmp.eq.s32.totalorder %s21, 2
      %p86 = scmp.ne.s32.totalorder %s81, %s83
      %p87 = scmp.eq.s32.totalorder %s21, 0
      %p88 = por %p86, %p87
      %p89 = scmp.ne.s32.totalorder %s81, %s83
      %p90 = scmp.eq.s32.totalorder %s26, 2
      %p91 = por %p89, %p90
      %p92 = scmp.ne.s32.totalorder %s83, %s84
      %p93 = scmp.eq.s32.totalorder %s26, 0
      %p94 = por %p92, %p93
      %p95 = scmp.ne.s32.totalorder %s83, %s84
      %p96 = scmp.eq.s32.totalorder %s27, 2
      %p97 = por %p95, %p96
      %p99 = scmp.ne.s32.totalorder %s84, %s98
      %p100 = scmp.eq.s32.totalorder %s27, 0
      %p101 = por %p99, %p100
      %s103 = sadd.s32 %s102, 1
      %p106 = scmp.eq.s32.totalorder %s21, 2
      %p107 = scmp.ne.s32.totalorder %s102, %s104
      %p108 = scmp.eq.s32.totalorder %s21, 0
      %p109 = por %p107, %p108
      %p110 = scmp.ne.s32.totalorder %s102, %s104
      %p111 = scmp.eq.s32.totalorder %s26, 2
      %p112 = por %p110, %p111
      %p113 = scmp.ne.s32.totalorder %s104, %s105
      %p114 = scmp.eq.s32.totalorder %s26, 0
      %p115 = por %p113, %p114
      %p116 = scmp.ne.s32.totalorder %s104, %s105
      %p117 = scmp.eq.s32.totalorder %s27, 2
      %p118 = por %p116, %p117
      %p120 = scmp.ne.s32.totalorder %s105, %s119
      %p121 = scmp.eq.s32.totalorder %s27, 0
      %p122 = por %p120, %p121
      %s124 = sadd.s32 %s123, 1
      %p127 = scmp.eq.s32.totalorder %s21, 2
      %p128 = scmp.ne.s32.totalorder %s123, %s125
      %p129 = scmp.eq.s32.totalorder %s21, 0
      %p130 = por %p128, %p129
      %p131 = scmp.ne.s32.totalorder %s123, %s125
      %p132 = scmp.eq.s32.totalorder %s26, 2
      %p133 = por %p131, %p132
      %p134 = scmp.ne.s32.totalorder %s125, %s126
      %p135 = scmp.eq.s32.totalorder %s26, 0
      %p136 = por %p134, %p135
      %p137 = scmp.ne.s32.totalorder %s125, %s126
      %p138 = scmp.eq.s32.totalorder %s27, 2
      %p139 = por %p137, %p138
      %p141 = scmp.ne.s32.totalorder %s126, %s140
      %p142 = scmp.eq.s32.totalorder %s27, 0
      %p143 = por %p141, %p142
      %s145 = sadd.s32 %s144, 1
      %p148 = scmp.eq.s32.totalorder %s21, 2
      %p149 = scmp.ne.s32.totalorder %s144, %s146
      %p150 = scmp.eq.s32.totalorder %s21, 0
      %p151 = por %p149, %p150
      %p152 = scmp.ne.s32.totalorder %s144, %s146
      %p153 = scmp.eq.s32.totalorder %s26, 2
      %p154 = por %p152, %p153
      %p155 = scmp.ne.s32.totalorder %s146, %s147
      %p156 = scmp.eq.s32.totalorder %s26, 0
      %p157 = por %p155, %p156
      %p158 = scmp.ne.s32.totalorder %s146, %s147
      %p159 = scmp.eq.s32.totalorder %s27, 2
      %p160 = por %p158, %p159
      %p162 = scmp.ne.s32.totalorder %s147, %s161
      %p163 = scmp.eq.s32.totalorder %s27, 0
      %p164 = por %p162, %p163
      %s166 = sadd.s32 %s165, 1
      %p169 = scmp.eq.s32.totalorder %s21, 2
      %p170 = scmp.ne.s32.totalorder %s165, %s167
      %p171 = scmp.eq.s32.totalorder %s21, 0
      %p172 = por %p170, %p171
      %p173 = scmp.ne.s32.totalorder %s165, %s167
      %p174 = scmp.eq.s32.totalorder %s26, 2
      %p175 = por %p173, %p174
      %p176 = scmp.ne.s32.totalorder %s167, %s168
      %p177 = scmp.eq.s32.totalorder %s26, 0
      %p178 = por %p176, %p177
      %p179 = scmp.ne.s32.totalorder %s167, %s168
      %p180 = scmp.eq.s32.totalorder %s27, 2
      %p181 = por %p179, %p180
      %p183 = scmp.ne.s32.totalorder %s168, %s182
      %p184 = scmp.eq.s32.totalorder %s27, 0
      %p185 = por %p183, %p184
      %s187 = sadd.s32 %s186, 1
      %p190 = scmp.eq.s32.totalorder %s21, 2
      %p191 = scmp.ne.s32.totalorder %s186, %s188
      %p192 = scmp.eq.s32.totalorder %s21, 0
      %p193 = por %p191, %p192
      %p194 = scmp.ne.s32.totalorder %s186, %s188
      %p195 = scmp.eq.s32.totalorder %s26, 2
      %p196 = por %p194, %p195
      %p197 = scmp.ne.s32.totalorder %s188, %s189
      %p198 = scmp.eq.s32.totalorder %s26, 0
      %p199 = por %p197, %p198
      %p200 = scmp.ne.s32.totalorder %s188, %s189
      %p201 = scmp.eq.s32.totalorder %s27, 2
      %p202 = por %p200, %p201
      %p204 = scmp.ne.s32.totalorder %s189, %s203
      %p205 = scmp.eq.s32.totalorder %s27, 0
      %p206 = por %p204, %p205
      %s208 = sadd.s32 %s207, 1
      %p211 = scmp.eq.s32.totalorder %s21, 2
      %p212 = scmp.ne.s32.totalorder %s207, %s209
      %p213 = scmp.eq.s32.totalorder %s21, 0
      %p214 = por %p212, %p213
      %p215 = scmp.ne.s32.totalorder %s207, %s209
      %p216 = scmp.eq.s32.totalorder %s26, 2
      %p217 = por %p215, %p216
      %p218 = scmp.ne.s32.totalorder %s209, %s210
      %p219 = scmp.eq.s32.totalorder %s26, 0
      %p220 = por %p218, %p219
      %p221 = scmp.ne.s32.totalorder %s209, %s210
      %p222 = scmp.eq.s32.totalorder %s27, 2
      %p223 = por %p221, %p222
      %p225 = scmp.ne.s32.totalorder %s210, %s224
      %p226 = scmp.eq.s32.totalorder %s27, 0
      %p227 = por %p225, %p226
      %s229 = sadd.s32 %s228, 1
      %p232 = scmp.eq.s32.totalorder %s21, 2
      %p233 = scmp.ne.s32.totalorder %s228, %s230
      %p234 = scmp.eq.s32.totalorder %s21, 0
      %p235 = por %p233, %p234
      %p236 = scmp.ne.s32.totalorder %s228, %s230
      %p237 = scmp.eq.s32.totalorder %s26, 2
      %p238 = por %p236, %p237
      %p239 = scmp.ne.s32.totalorder %s230, %s231
      %p240 = scmp.eq.s32.totalorder %s26, 0
      %p241 = por %p239, %p240
      %p242 = scmp.ne.s32.totalorder %s230, %s231
      %p243 = scmp.eq.s32.totalorder %s27, 2
      %p244 = por %p242, %p243
      %p246 = scmp.ne.s32.totalorder %s231, %s245
      %p247 = scmp.eq.s32.totalorder %s27, 0
      %p248 = por %p246, %p247
      %s250 = sadd.s32 %s249, 1
      %p253 = scmp.eq.s32.totalorder %s21, 2
      %p254 = scmp.ne.s32.totalorder %s249, %s251
      %p255 = scmp.eq.s32.totalorder %s21, 0
      %p256 = por %p254, %p255
      %p257 = scmp.ne.s32.totalorder %s249, %s251
      %p258 = scmp.eq.s32.totalorder %s26, 2
      %p259 = por %p257, %p258
      %p260 = scmp.ne.s32.totalorder %s251, %s252
      %p261 = scmp.eq.s32.totalorder %s26, 0
      %p262 = por %p260, %p261
      %p263 = scmp.ne.s32.totalorder %s251, %s252
      %p264 = scmp.eq.s32.totalorder %s27, 2
      %p265 = por %p263, %p264
      %p267 = scmp.ne.s32.totalorder %s252, %s266
      %p268 = scmp.eq.s32.totalorder %s27, 0
      %p269 = por %p267, %p268
      %s271 = sadd.s32 %s270, 1
      %p274 = scmp.eq.s32.totalorder %s21, 2
      %p275 = scmp.ne.s32.totalorder %s270, %s272
      %p276 = scmp.eq.s32.totalorder %s21, 0
      %p277 = por %p275, %p276
      %p278 = scmp.ne.s32.totalorder %s270, %s272
      %p279 = scmp.eq.s32.totalorder %s26, 2
      %p280 = por %p278, %p279
      %p281 = scmp.ne.s32.totalorder %s272, %s273
      %p282 = scmp.eq.s32.totalorder %s26, 0
      %p283 = por %p281, %p282
      %p284 = scmp.ne.s32.totalorder %s272, %s273
      %p285 = scmp.eq.s32.totalorder %s27, 2
      %p286 = por %p284, %p285
      %p288 = scmp.ne.s32.totalorder %s273, %s287
      %p289 = scmp.eq.s32.totalorder %s27, 0
      %p290 = por %p288, %p289
      %s291 = ssub.s32 %s21, %s28
      %p292 = scmp.eq.s32.totalorder %s291, 0
      %s294 = sadd.s32 %s293, 1
      %s295 = scalar_select %p292, %s293, %s294
      %p298 = pneg %p292
      %p299 = scmp.eq.s32.totalorder %s21, 2
      %p300 = por %p298, %p299
      %p301 = scmp.ne.s32.totalorder %s293, %s296
      %p302 = scmp.eq.s32.totalorder %s21, 0
      %p303 = por %p301, %p302
      %p304 = scmp.ne.s32.totalorder %s293, %s296
      %p305 = scmp.eq.s32.totalorder %s26, 2
      %p306 = por %p304, %p305
      %p307 = scmp.ne.s32.totalorder %s296, %s297
      %p308 = scmp.eq.s32.totalorder %s26, 0
      %p309 = por %p307, %p308
      %p310 = scmp.ne.s32.totalorder %s296, %s297
      %p311 = scmp.eq.s32.totalorder %s27, 2
      %p312 = por %p310, %p311
      %p314 = scmp.ne.s32.totalorder %s297, %s313
      %p315 = scmp.eq.s32.totalorder %s27, 0
      %p316 = por %p314, %p315
      %p317 = scmp.le.s32.totalorder 1, %s21
      %p318 = scmp.lt.s32.totalorder %s21, 4
      %p319 = pnand %p317, %p318
      %p320 = pneg %p319
      // Predicated region
      $region9: #{tpu_custom_call.1} parent=5 // pred_check
        _
      $region10: #{tpu_custom_call.1} parent=5 // pred_check_branch
        %322 = sbr.rel (%p319) target = $region12
      $region11: #{tpu_custom_call.1} parent=5 // pred_region
        %s323 = ssub.s32 %s21, 1
        // Predicated region
        $region13: #{tpu_custom_call.1} parent=11 // pred_check
          %p324 = pneg %p94
        $region14: #{tpu_custom_call.1} parent=11 // pred_check_branch
          %326 = sbr.rel (%p324) target = $region16
        $region15: #{tpu_custom_call.1} parent=11 // pred_region
          _
        $region16: #{tpu_custom_call.1} parent=11 // pred_fallthru
          _
        // Predicated region
        $region17: #{tpu_custom_call.1} parent=11 // pred_check
          %p327 = pneg %p115
        $region18: #{tpu_custom_call.1} parent=11 // pred_check_branch
          %329 = sbr.rel (%p327) target = $region20
        $region19: #{tpu_custom_call.1} parent=11 // pred_region
          _
        $region20: #{tpu_custom_call.1} parent=11 // pred_fallthru
          _
        // Predicated region
        $region21: #{tpu_custom_call.1} parent=11 // pred_check
          %p330 = pneg %p136
        $region22: #{tpu_custom_call.1} parent=11 // pred_check_branch
          %332 = sbr.rel (%p330) target = $region24
        $region23: #{tpu_custom_call.1} parent=11 // pred_region
          _
        $region24: #{tpu_custom_call.1} parent=11 // pred_fallthru
          _
        // Predicated region
        $region25: #{tpu_custom_call.1} parent=11 // pred_check
          %p333 = pneg %p157
        $region26: #{tpu_custom_call.1} parent=11 // pred_check_branch
          %335 = sbr.rel (%p333) target = $region28
        $region27: #{tpu_custom_call.1} parent=11 // pred_region
          _
        $region28: #{tpu_custom_call.1} parent=11 // pred_fallthru
          _
        // Predicated region
        $region29: #{tpu_custom_call.1} parent=11 // pred_check
          %p336 = pneg %p178
        $region30: #{tpu_custom_call.1} parent=11 // pred_check_branch
          %338 = sbr.rel (%p336) target = $region32
        $region31: #{tpu_custom_call.1} parent=11 // pred_region
          _
        $region32: #{tpu_custom_call.1} parent=11 // pred_fallthru
          _
        // Predicated region
        $region33: #{tpu_custom_call.1} parent=11 // pred_check
          %p339 = pneg %p199
        $region34: #{tpu_custom_call.1} parent=11 // pred_check_branch
          %341 = sbr.rel (%p339) target = $region36
        $region35: #{tpu_custom_call.1} parent=11 // pred_region
          _
        $region36: #{tpu_custom_call.1} parent=11 // pred_fallthru
          _
        // Predicated region
        $region37: #{tpu_custom_call.1} parent=11 // pred_check
          %p342 = pneg %p220
        $region38: #{tpu_custom_call.1} parent=11 // pred_check_branch
          %344 = sbr.rel (%p342) target = $region40
        $region39: #{tpu_custom_call.1} parent=11 // pred_region
          _
        $region40: #{tpu_custom_call.1} parent=11 // pred_fallthru
          _
        // Predicated region
        $region41: #{tpu_custom_call.1} parent=11 // pred_check
          %p345 = pneg %p241
        $region42: #{tpu_custom_call.1} parent=11 // pred_check_branch
          %347 = sbr.rel (%p345) target = $region44
        $region43: #{tpu_custom_call.1} parent=11 // pred_region
          _
        $region44: #{tpu_custom_call.1} parent=11 // pred_fallthru
          _
        // Predicated region
        $region45: #{tpu_custom_call.1} parent=11 // pred_check
          %p348 = pneg %p262
        $region46: #{tpu_custom_call.1} parent=11 // pred_check_branch
          %350 = sbr.rel (%p348) target = $region48
        $region47: #{tpu_custom_call.1} parent=11 // pred_region
          _
        $region48: #{tpu_custom_call.1} parent=11 // pred_fallthru
          _
        // Predicated region
        $region49: #{tpu_custom_call.1} parent=11 // pred_check
          %p351 = pneg %p283
        $region50: #{tpu_custom_call.1} parent=11 // pred_check_branch
          %353 = sbr.rel (%p351) target = $region52
        $region51: #{tpu_custom_call.1} parent=11 // pred_region
          _
        $region52: #{tpu_custom_call.1} parent=11 // pred_fallthru
          _
      $region12: #{tpu_custom_call.1} parent=5 // pred_fallthru
        _
      %p354 = scmp.lt.s32.totalorder %s21, 3
      // Predicated region
      $region53: #{tpu_custom_call.1} parent=5 // pred_check
        %p355 = pneg %p354
      $region54: #{tpu_custom_call.1} parent=5 // pred_check_branch
        %357 = sbr.rel (%p355) target = $region56
      $region55: #{tpu_custom_call.1} parent=5 // pred_region
        // Predicated region
        $region57: #{tpu_custom_call.1} parent=55 // pred_check
          %p358 = pneg %p41
        $region58: #{tpu_custom_call.1} parent=55 // pred_check_branch
          %360 = sbr.rel (%p358) target = $region60
        $region59: #{tpu_custom_call.1} parent=55 // pred_region
          %p361 = scmp.lt.s32.totalorder %s21, 2
          %s362 = scalar_select %p361, %s21, 2
          %s363 = smul.addr %s362, 12
          %s364 = smul.addr %s363, 4
          %s365 = scalar_lea.vmem %s0, %s364
        $region60: #{tpu_custom_call.1} parent=55 // pred_fallthru
          _
        // Predicated region
        $region61: #{tpu_custom_call.1} parent=55 // pred_check
          %p366 = pneg %p67
        $region62: #{tpu_custom_call.1} parent=55 // pred_check_branch
          %368 = sbr.rel (%p366) target = $region64
        $region63: #{tpu_custom_call.1} parent=55 // pred_region
          %p369 = scmp.lt.s32.totalorder %s21, 2
          %s370 = scalar_select %p369, %s21, 2
          %s371 = smul.addr %s370, 6
          %s372 = smul.addr %s371, 4
          %s373 = scalar_lea.vmem %s1, %s372
        $region64: #{tpu_custom_call.1} parent=55 // pred_fallthru
          _
      $region56: #{tpu_custom_call.1} parent=5 // pred_fallthru
        _
      %p374 = scmp.le.s32.totalorder 1, %s21
      %p375 = scmp.lt.s32.totalorder %s21, 4
      %p376 = pnand %p374, %p375
      %p377 = pneg %p376
      // Predicated region
      $region65: #{tpu_custom_call.1} parent=5 // pred_check
        _
      $region66: #{tpu_custom_call.1} parent=5 // pred_check_branch
        %379 = sbr.rel (%p376) target = $region68
      $region67: #{tpu_custom_call.1} parent=5 // pred_region
        %s380 = ssub.s32 %s21, 1
        %p381 = scmp.lt.s32.totalorder %s26, 2
        %s382 = scalar_select %p381, %s26, 2
        %s383 = smul.addr %s382, 12
        %s384 = smul.addr %s383, 4
        %s385 = scalar_lea.vmem %s0, %s384
        %p386 = pneg %p47
        %p387 = pneg %p44
        %p388 = scmp.lt.s32.totalorder %s26, 2
        %s389 = scalar_select %p388, %s26, 2
        %s390 = smul.addr %s389, 6
        %s391 = smul.addr %s390, 4
        %s392 = scalar_lea.vmem %s1, %s391
        %p393 = pneg %p73
        %p394 = pneg %p70
        %p395 = pneg %p94
        %p396 = pneg %p91
        %p397 = pneg %p115
        %p398 = pneg %p112
        %p399 = pneg %p136
        %p400 = pneg %p133
        %p401 = pneg %p157
        %p402 = pneg %p154
        %p403 = pneg %p178
        %p404 = pneg %p175
        %p405 = pneg %p199
        %p406 = pneg %p196
        %p407 = pneg %p220
        %p408 = pneg %p217
        %p409 = pneg %p241
        %p410 = pneg %p238
        %p411 = pneg %p262
        %p412 = pneg %p259
        %p413 = pneg %p283
        %p414 = pneg %p280
        %p415 = pneg %p309
        %p416 = pneg %p306
        %s417 = sand.u32 %s296, 1
        %s418 = scalar_lea.sflag [#allocation3], %s417
        %s419 = sand.u32 %s296, 1
        %s420 = smul.addr %s419, 6
        %s421 = scalar_lea.vmem [#allocation2], %s420
        %p422 = scmp.lt.s32.totalorder %s26, 2
        %s423 = scalar_select %p422, %s26, 2
        %s424 = smul.addr %s423, 12
        %s425 = smul.addr %s424, 4
        %s426 = scalar_lea.vmem %s0, %s425
        %p427 = scmp.lt.s32.totalorder %s26, 2
        %s428 = scalar_select %p427, %s26, 2
        %s429 = smul.addr %s428, 6
        %s430 = smul.addr %s429, 4
        %s431 = scalar_lea.vmem %s1, %s430
        %v433 = vld [vmem:[%s426] sm:$0xff]
        %v434 = vld [vmem:[%s426 + $0x8] sm:$0xf]
        %v435 = vld [vmem:[%s426 + $0xc] sm:$0xff]
        %v436 = vld [vmem:[%s426 + $0x14] sm:$0xf]
        %v437 = vld [vmem:[%s426 + $0x18] sm:$0xff]
        %v438 = vld [vmem:[%s426 + $0x20] sm:$0xf]
        %v439 = vld [vmem:[%s426 + $0x24] sm:$0x77]
        %v440 = vld [vmem:[%s426 + $0x2c] sm:$0x7]
        %v441 = vld [vmem:[%s431] sm:$0xff]
        %v442 = vld [vmem:[%s431 + $0x8] sm:$0xf]
        %v443 = vld [vmem:[%s431 + $0xc] sm:$0x33]
        %v444 = vld [vmem:[%s431 + $0x14] sm:$0x3]
        %v445 = vld [vmem:[%s2] sm:$0xff]
        %v446 = vld [vmem:[%s2 + $0x8] sm:$0xff]
        %v447 = vld [vmem:[%s2 + $0x10] sm:$0xff]
        %v448 = vld [vmem:[%s2 + $0x18] sm:$0xff]
        %v449 = vld [vmem:[%s2 + $0x20] sm:$0xff]
        %v450 = vld [vmem:[%s2 + $0x28] sm:$0xff]
        %v451 = vld [vmem:[%s2 + $0x30] sm:$0xff]
        %v452 = vld [vmem:[%s2 + $0x38] sm:$0xff]
        %v453 = vld [vmem:[%s2 + $0x40] sm:$0xff]
        %v454 = vld [vmem:[%s2 + $0x48] sm:$0xff]
        %v455 = vld [vmem:[%s2 + $0x50] sm:$0xff]
        %v456 = vld [vmem:[%s2 + $0x58] sm:$0xff]
        %v457 = vld [vmem:[%s2 + $0x60] sm:$0xff]
        %v458 = vld [vmem:[%s2 + $0x68] sm:$0xff]
        %v459 = vld [vmem:[%s2 + $0x70] sm:$0xff]
        %v460 = vld [vmem:[%s2 + $0x78] sm:$0xff]
        %v461 = vld [vmem:[%s2 + $0x80] sm:$0xff]
        %v462 = vld [vmem:[%s2 + $0x88] sm:$0xff]
        %v463 = vld [vmem:[%s2 + $0x90] sm:$0xff]
        %v464 = vld [vmem:[%s2 + $0x98] sm:$0xff]
        %v465 = vld [vmem:[%s2 + $0xa0] sm:$0xff]
        %v466 = vld [vmem:[%s2 + $0xa8] sm:$0xff]
        %v467 = vld [vmem:[%s2 + $0xb0] sm:$0xff]
        %v468 = vld [vmem:[%s2 + $0xb8] sm:$0xff]
        %v469 = vld [vmem:[%s2 + $0xc0] sm:$0xff]
        %v470 = vld [vmem:[%s2 + $0xc8] sm:$0xff]
        %v471 = vld [vmem:[%s2 + $0xd0] sm:$0xff]
        %v472 = vld [vmem:[%s2 + $0xd8] sm:$0xff]
        %v473 = vld [vmem:[%s2 + $0xe0] sm:$0xff]
        %v474 = vld [vmem:[%s2 + $0xe8] sm:$0xff]
        %v475 = vld [vmem:[%s2 + $0xf0] sm:$0xff]
        %v476 = vld [vmem:[%s2 + $0xf8] sm:$0xff]
        %v477 = vld [vmem:[%s2 + $0x100] sm:$0xff]
        %v478 = vld [vmem:[%s2 + $0x108] sm:$0xff]
        %v479 = vld [vmem:[%s2 + $0x110] sm:$0xff]
        %v480 = vld [vmem:[%s2 + $0x118] sm:$0xff]
        %v481 = vld [vmem:[%s2 + $0x120] sm:$0xff]
        %v482 = vld [vmem:[%s2 + $0x128] sm:$0x33]
        %s483 = scalar_lea.vmem %s2, 304
        %v484 = vld [vmem:[%s483] sm:$0xff]
        %v485 = vld [vmem:[%s483 + $0x8] sm:$0xff]
        %v486 = vld [vmem:[%s483 + $0x10] sm:$0xff]
        %v487 = vld [vmem:[%s483 + $0x18] sm:$0xff]
        %v488 = vld [vmem:[%s483 + $0x20] sm:$0xff]
        %v489 = vld [vmem:[%s483 + $0x28] sm:$0xff]
        %v490 = vld [vmem:[%s483 + $0x30] sm:$0xff]
        %v491 = vld [vmem:[%s483 + $0x38] sm:$0xff]
        %v492 = vld [vmem:[%s483 + $0x40] sm:$0xff]
        %v493 = vld [vmem:[%s483 + $0x48] sm:$0xff]
        %v494 = vld [vmem:[%s483 + $0x50] sm:$0xff]
        %v495 = vld [vmem:[%s483 + $0x58] sm:$0xff]
        %v496 = vld [vmem:[%s483 + $0x60] sm:$0xff]
        %v497 = vld [vmem:[%s483 + $0x68] sm:$0xff]
        %v498 = vld [vmem:[%s483 + $0x70] sm:$0xff]
        %v499 = vld [vmem:[%s483 + $0x78] sm:$0xff]
        %v500 = vld [vmem:[%s483 + $0x80] sm:$0xff]
        %v501 = vld [vmem:[%s483 + $0x88] sm:$0xff]
        %v502 = vld [vmem:[%s483 + $0x90] sm:$0xff]
        %v503 = vld [vmem:[%s483 + $0x98] sm:$0xff]
        %v504 = vld [vmem:[%s483 + $0xa0] sm:$0xff]
        %v505 = vld [vmem:[%s483 + $0xa8] sm:$0xff]
        %v506 = vld [vmem:[%s483 + $0xb0] sm:$0xff]
        %v507 = vld [vmem:[%s483 + $0xb8] sm:$0xff]
        %v508 = vld [vmem:[%s483 + $0xc0] sm:$0xff]
        %v509 = vld [vmem:[%s483 + $0xc8] sm:$0xff]
        %v510 = vld [vmem:[%s483 + $0xd0] sm:$0xff]
        %v511 = vld [vmem:[%s483 + $0xd8] sm:$0xff]
        %v512 = vld [vmem:[%s483 + $0xe0] sm:$0xff]
        %v513 = vld [vmem:[%s483 + $0xe8] sm:$0xff]
        %v514 = vld [vmem:[%s483 + $0xf0] sm:$0xff]
        %v515 = vld [vmem:[%s483 + $0xf8] sm:$0xff]
        %v516 = vld [vmem:[%s483 + $0x100] sm:$0xff]
        %v517 = vld [vmem:[%s483 + $0x108] sm:$0xff]
        %v518 = vld [vmem:[%s483 + $0x110] sm:$0xff]
        %v519 = vld [vmem:[%s483 + $0x118] sm:$0xff]
        %v520 = vld [vmem:[%s483 + $0x120] sm:$0xff]
        %v521 = vld [vmem:[%s483 + $0x128] sm:$0x33]
        %v530 = vunpack.c.l.b16 %v433
        %v531 = vunpack.c.h.b16 %v433
        %v532 = vunpack.c.l.b16 %v434
        %v533 = vunpack.c.l.b16 %v435
        %v534 = vunpack.c.h.b16 %v435
        %v535 = vunpack.c.l.b16 %v436
        %v536 = vunpack.c.l.b16 %v437
        %v537 = vunpack.c.h.b16 %v437
        %v538 = vunpack.c.l.b16 %v438
        %v539 = vunpack.c.l.b16 %v439
        %v540 = vunpack.c.h.b16 %v439
        %v541 = vunpack.c.l.b16 %v440
        %v542 = vpack.c.b16 %v533, %v530
        %v543 = vpack.c.b16 %v534, %v531
        %v544 = vpack.c.b16 %v535, %v532
        %v545 = vpack.c.b16 %v539, %v536
        %v546 = vpack.c.b16 %v540, %v537
        %v547 = vpack.c.b16 %v541, %v538
        %vm548 = vsmask.f32 6400
        %v550 = vshrl.u32 %v542, 16
        %v552 = vrot.slane %v550, 1
        %v553 = vshll.u32 %v542, 16
        %v555 = vrot.slane %v553, 2
        %v556 = vor.u32 %v552, %v555
        %v558 = vshrl.u32 %v545, 16
        %v560 = vrot.slane %v558, 1
        %v561 = vshll.u32 %v545, 16
        %v563 = vrot.slane %v561, 2
        %v564 = vor.u32 %v560, %v563
        %v565 = vsel %vm548, %v556, %v564
        %v567 = vshrl.u32 %v543, 16
        %v569 = vrot.slane %v567, 1
        %v570 = vshll.u32 %v543, 16
        %v572 = vrot.slane %v570, 2
        %v573 = vor.u32 %v569, %v572
        %v575 = vshrl.u32 %v546, 16
        %v577 = vrot.slane %v575, 1
        %v578 = vshll.u32 %v546, 16
        %v580 = vrot.slane %v578, 2
        %v581 = vor.u32 %v577, %v580
        %v582 = vsel %vm548, %v573, %v581
        %v584 = vshrl.u32 %v544, 16
        %v586 = vrot.slane %v584, 1
        %v587 = vshll.u32 %v544, 16
        %v589 = vrot.slane %v587, 2
        %v590 = vor.u32 %v586, %v589
        %v592 = vshrl.u32 %v547, 16
        %v594 = vrot.slane %v592, 1
        %v595 = vshll.u32 %v547, 16
        %v597 = vrot.slane %v595, 2
        %v598 = vor.u32 %v594, %v597
        %v599 = vsel %vm548, %v590, %v598
        %v642 = vunpack.c.l.b16 %v484
        %v643 = vunpack.c.h.b16 %v484
        %v644 = vunpack.c.l.b16 %v485
        %v645 = vunpack.c.h.b16 %v485
        %v646 = vunpack.c.l.b16 %v486
        %v647 = vunpack.c.h.b16 %v486
        %v648 = vunpack.c.l.b16 %v487
        %v649 = vunpack.c.h.b16 %v487
        %v650 = vunpack.c.l.b16 %v488
        %v651 = vunpack.c.h.b16 %v488
        %v652 = vunpack.c.l.b16 %v489
        %v653 = vunpack.c.h.b16 %v489
        %v654 = vunpack.c.l.b16 %v490
        %v655 = vunpack.c.h.b16 %v490
        %v656 = vunpack.c.l.b16 %v491
        %v657 = vunpack.c.h.b16 %v491
        %v658 = vunpack.c.l.b16 %v492
        %v659 = vunpack.c.h.b16 %v492
        %v660 = vunpack.c.l.b16 %v493
        %v661 = vunpack.c.h.b16 %v493
        %v662 = vunpack.c.l.b16 %v494
        %v663 = vunpack.c.h.b16 %v494
        %v664 = vunpack.c.l.b16 %v495
        %v665 = vunpack.c.h.b16 %v495
        %v666 = vunpack.c.l.b16 %v496
        %v667 = vunpack.c.h.b16 %v496
        %v668 = vunpack.c.l.b16 %v497
        %v669 = vunpack.c.h.b16 %v497
        %v670 = vunpack.c.l.b16 %v498
        %v671 = vunpack.c.h.b16 %v498
        %v672 = vunpack.c.l.b16 %v499
        %v673 = vunpack.c.h.b16 %v499
        %v674 = vunpack.c.l.b16 %v500
        %v675 = vunpack.c.h.b16 %v500
        %v676 = vunpack.c.l.b16 %v501
        %v677 = vunpack.c.h.b16 %v501
        %v678 = vunpack.c.l.b16 %v502
        %v679 = vunpack.c.h.b16 %v502
        %v680 = vunpack.c.l.b16 %v503
        %v681 = vunpack.c.h.b16 %v503
        %v682 = vunpack.c.l.b16 %v504
        %v683 = vunpack.c.h.b16 %v504
        %v684 = vunpack.c.l.b16 %v505
        %v685 = vunpack.c.h.b16 %v505
        %v686 = vunpack.c.l.b16 %v506
        %v687 = vunpack.c.h.b16 %v506
        %v688 = vunpack.c.l.b16 %v507
        %v689 = vunpack.c.h.b16 %v507
        %v690 = vunpack.c.l.b16 %v508
        %v691 = vunpack.c.h.b16 %v508
        %v692 = vunpack.c.l.b16 %v509
        %v693 = vunpack.c.h.b16 %v509
        %v694 = vunpack.c.l.b16 %v510
        %v695 = vunpack.c.h.b16 %v510
        %v696 = vunpack.c.l.b16 %v511
        %v697 = vunpack.c.h.b16 %v511
        %v698 = vunpack.c.l.b16 %v512
        %v699 = vunpack.c.h.b16 %v512
        %v700 = vunpack.c.l.b16 %v513
        %v701 = vunpack.c.h.b16 %v513
        %v702 = vunpack.c.l.b16 %v514
        %v703 = vunpack.c.h.b16 %v514
        %v704 = vunpack.c.l.b16 %v515
        %v705 = vunpack.c.h.b16 %v515
        %v706 = vunpack.c.l.b16 %v516
        %v707 = vunpack.c.h.b16 %v516
        %v708 = vunpack.c.l.b16 %v517
        %v709 = vunpack.c.h.b16 %v517
        %v710 = vunpack.c.l.b16 %v518
        %v711 = vunpack.c.h.b16 %v518
        %v712 = vunpack.c.l.b16 %v519
        %v713 = vunpack.c.h.b16 %v519
        %v714 = vunpack.c.l.b16 %v520
        %v715 = vunpack.c.h.b16 %v520
        %v716 = vunpack.c.l.b16 %v521
        %v717 = vunpack.c.h.b16 %v521
        %v718 = vpack.c.b16 %v644, %v642
        %v719 = vpack.c.b16 %v645, %v643
        %v720 = vpack.c.b16 %v648, %v646
        %v721 = vpack.c.b16 %v649, %v647
        %v722 = vpack.c.b16 %v652, %v650
        %v723 = vpack.c.b16 %v653, %v651
        %v724 = vpack.c.b16 %v656, %v654
        %v725 = vpack.c.b16 %v657, %v655
        %v726 = vpack.c.b16 %v660, %v658
        %v727 = vpack.c.b16 %v661, %v659
        %v728 = vpack.c.b16 %v664, %v662
        %v729 = vpack.c.b16 %v665, %v663
        %v730 = vpack.c.b16 %v668, %v666
        %v731 = vpack.c.b16 %v669, %v667
        %v732 = vpack.c.b16 %v672, %v670
        %v733 = vpack.c.b16 %v673, %v671
        %v734 = vpack.c.b16 %v676, %v674
        %v735 = vpack.c.b16 %v677, %v675
        %v736 = vpack.c.b16 %v680, %v678
        %v737 = vpack.c.b16 %v681, %v679
        %v738 = vpack.c.b16 %v684, %v682
        %v739 = vpack.c.b16 %v685, %v683
        %v740 = vpack.c.b16 %v688, %v686
        %v741 = vpack.c.b16 %v689, %v687
        %v742 = vpack.c.b16 %v692, %v690
        %v743 = vpack.c.b16 %v693, %v691
        %v744 = vpack.c.b16 %v696, %v694
        %v745 = vpack.c.b16 %v697, %v695
        %v746 = vpack.c.b16 %v700, %v698
        %v747 = vpack.c.b16 %v701, %v699
        %v748 = vpack.c.b16 %v704, %v702
        %v749 = vpack.c.b16 %v705, %v703
        %v750 = vpack.c.b16 %v708, %v706
        %v751 = vpack.c.b16 %v709, %v707
        %v752 = vpack.c.b16 %v712, %v710
        %v753 = vpack.c.b16 %v713, %v711
        %v754 = vpack.c.b16 %v716, %v714
        %v755 = vpack.c.b16 %v717, %v715
        %vm792 = vcmask 359424
        %v794 = vsel %vm792, %v599, 0
        %v797 = vsel %vm792, %v598, 0
        %vm799 = vcmask 1045504
        %v801 = vsel %vm799, %v754, 0
        %v804 = vsel %vm799, %v755, 0
        %806 = vmatpush.bf16.msra.mxu0 %v732
        %807 = vmatpush.bf16.msra.mxu0 %v730
        %808 = vmatpush.bf16.msra.mxu0 %v728
        %809 = vmatpush.bf16.msra.mxu0 %v726
        %810 = vmatpush.bf16.msra.mxu0 %v724
        %811 = vmatpush.bf16.msra.mxu0 %v722
        %812 = vmatpush.bf16.msra.mxu0 %v720
        %813 = vmatpush.bf16.msra.mxu0 %v718
        %814 = vmatmul.bf16.gmra.mxu0 %v565
        %v815 = vpop.f32.mrf.mxu0
        %v816 = vadd.f32 0.0, %v815
        %v817 = vpop.f32.mrf.mxu0
        %v818 = vadd.f32 0.0, %v817
        %819 = vmatmul.bf16.gmra.mxu0 %v564
        %v820 = vpop.f32.mrf.mxu0
        %v821 = vadd.f32 0.0, %v820
        %v822 = vpop.f32.mrf.mxu0
        %823 = vdwg.mxu0
        %824 = vmatpush.bf16.msra.mxu0 %v748
        %825 = vmatpush.bf16.msra.mxu0 %v746
        %826 = vmatpush.bf16.msra.mxu0 %v744
        %827 = vmatpush.bf16.msra.mxu0 %v742
        %828 = vmatpush.bf16.msra.mxu0 %v740
        %829 = vmatpush.bf16.msra.mxu0 %v738
        %830 = vmatpush.bf16.msra.mxu0 %v736
        %831 = vmatpush.bf16.msra.mxu0 %v734
        %832 = vmatmul.bf16.gmra.mxu0 %v582
        %v833 = vpop.f32.mrf.mxu0
        %v834 = vadd.f32 %v816, %v833
        %v835 = vpop.f32.mrf.mxu0
        %v836 = vadd.f32 %v818, %v835
        %837 = vmatmul.bf16.gmra.mxu0 %v581
        %v838 = vpop.f32.mrf.mxu0
        %v839 = vadd.f32 %v821, %v838
        %v840 = vpop.f32.mrf.mxu0
        %841 = vdwg.mxu0
        %842 = vmatpush.bf16.msra.mxu0 0
        %843 = vmatpush.bf16.msra.mxu0 0
        %844 = vmatpush.bf16.msra.mxu0 0
        %845 = vmatpush.bf16.msra.mxu0 0
        %846 = vmatpush.bf16.msra.mxu0 0
        %847 = vmatpush.bf16.msra.mxu0 %v801
        %848 = vmatpush.bf16.msra.mxu0 %v752
        %849 = vmatpush.bf16.msra.mxu0 %v750
        %850 = vmatmul.bf16.gmra.mxu0 %v794
        %v851 = vpop.f32.mrf.mxu0
        %v852 = vadd.f32 %v834, %v851
        %v853 = vpop.f32.mrf.mxu0
        %v854 = vadd.f32 %v836, %v853
        %855 = vmatmul.bf16.gmra.mxu0 %v797
        %v856 = vpop.f32.mrf.mxu0
        %v857 = vadd.f32 %v839, %v856
        %v858 = vpop.f32.mrf.mxu0
        %859 = vdwg.mxu0
        %860 = vmatpush.bf16.msra.mxu0 %v733
        %861 = vmatpush.bf16.msra.mxu0 %v731
        %862 = vmatpush.bf16.msra.mxu0 %v729
        %863 = vmatpush.bf16.msra.mxu0 %v727
        %864 = vmatpush.bf16.msra.mxu0 %v725
        %865 = vmatpush.bf16.msra.mxu0 %v723
        %866 = vmatpush.bf16.msra.mxu0 %v721
        %867 = vmatpush.bf16.msra.mxu0 %v719
        %868 = vmatmul.bf16.gmra.mxu0 %v565
        %v869 = vpop.f32.mrf.mxu0
        %v870 = vadd.f32 0.0, %v869
        %v871 = vpop.f32.mrf.mxu0
        %v872 = vadd.f32 0.0, %v871
        %873 = vmatmul.bf16.gmra.mxu0 %v564
        %v874 = vpop.f32.mrf.mxu0
        %v875 = vadd.f32 0.0, %v874
        %v876 = vpop.f32.mrf.mxu0
        %877 = vdwg.mxu0
        %878 = vmatpush.bf16.msra.mxu0 %v749
        %879 = vmatpush.bf16.msra.mxu0 %v747
        %880 = vmatpush.bf16.msra.mxu0 %v745
        %881 = vmatpush.bf16.msra.mxu0 %v743
        %882 = vmatpush.bf16.msra.mxu0 %v741
        %883 = vmatpush.bf16.msra.mxu0 %v739
        %884 = vmatpush.bf16.msra.mxu0 %v737
        %885 = vmatpush.bf16.msra.mxu0 %v735
        %886 = vmatmul.bf16.gmra.mxu0 %v582
        %v887 = vpop.f32.mrf.mxu0
        %v888 = vadd.f32 %v870, %v887
        %v889 = vpop.f32.mrf.mxu0
        %v890 = vadd.f32 %v872, %v889
        %891 = vmatmul.bf16.gmra.mxu0 %v581
        %v892 = vpop.f32.mrf.mxu0
        %v893 = vadd.f32 %v875, %v892
        %v894 = vpop.f32.mrf.mxu0
        %895 = vdwg.mxu0
        %896 = vmatpush.bf16.msra.mxu0 0
        %897 = vmatpush.bf16.msra.mxu0 0
        %898 = vmatpush.bf16.msra.mxu0 0
        %899 = vmatpush.bf16.msra.mxu0 0
        %900 = vmatpush.bf16.msra.mxu0 0
        %901 = vmatpush.bf16.msra.mxu0 %v804
        %902 = vmatpush.bf16.msra.mxu0 %v753
        %903 = vmatpush.bf16.msra.mxu0 %v751
        %904 = vmatmul.bf16.gmra.mxu0 %v794
        %v905 = vpop.f32.mrf.mxu0
        %v906 = vadd.f32 %v888, %v905
        %v907 = vpop.f32.mrf.mxu0
        %v908 = vadd.f32 %v890, %v907
        %909 = vmatmul.bf16.gmra.mxu0 %v797
        %v910 = vpop.f32.mrf.mxu0
        %v911 = vadd.f32 %v893, %v910
        %v912 = vpop.f32.mrf.mxu0
        %913 = vdwg.mxu0
        %vm914 = vcmask 1046528
        %v915 = vrot.slane %v542, 1
        %v916 = vrot.slane %v545, 1
        %v917 = vsel %vm914, %v915, %v916
        %v918 = vrot.slane %v543, 1
        %v919 = vrot.slane %v546, 1
        %v920 = vsel %vm914, %v918, %v919
        %v921 = vrot.slane %v544, 1
        %v922 = vrot.slane %v547, 1
        %v923 = vsel %vm914, %v921, %v922
        %v966 = vunpack.c.l.b16 %v445
        %v967 = vunpack.c.h.b16 %v445
        %v968 = vunpack.c.l.b16 %v446
        %v969 = vunpack.c.h.b16 %v446
        %v970 = vunpack.c.l.b16 %v447
        %v971 = vunpack.c.h.b16 %v447
        %v972 = vunpack.c.l.b16 %v448
        %v973 = vunpack.c.h.b16 %v448
        %v974 = vunpack.c.l.b16 %v449
        %v975 = vunpack.c.h.b16 %v449
        %v976 = vunpack.c.l.b16 %v450
        %v977 = vunpack.c.h.b16 %v450
        %v978 = vunpack.c.l.b16 %v451
        %v979 = vunpack.c.h.b16 %v451
        %v980 = vunpack.c.l.b16 %v452
        %v981 = vunpack.c.h.b16 %v452
        %v982 = vunpack.c.l.b16 %v453
        %v983 = vunpack.c.h.b16 %v453
        %v984 = vunpack.c.l.b16 %v454
        %v985 = vunpack.c.h.b16 %v454
        %v986 = vunpack.c.l.b16 %v455
        %v987 = vunpack.c.h.b16 %v455
        %v988 = vunpack.c.l.b16 %v456
        %v989 = vunpack.c.h.b16 %v456
        %v990 = vunpack.c.l.b16 %v457
        %v991 = vunpack.c.h.b16 %v457
        %v992 = vunpack.c.l.b16 %v458
        %v993 = vunpack.c.h.b16 %v458
        %v994 = vunpack.c.l.b16 %v459
        %v995 = vunpack.c.h.b16 %v459
        %v996 = vunpack.c.l.b16 %v460
        %v997 = vunpack.c.h.b16 %v460
        %v998 = vunpack.c.l.b16 %v461
        %v999 = vunpack.c.h.b16 %v461
        %v1000 = vunpack.c.l.b16 %v462
        %v1001 = vunpack.c.h.b16 %v462
        %v1002 = vunpack.c.l.b16 %v463
        %v1003 = vunpack.c.h.b16 %v463
        %v1004 = vunpack.c.l.b16 %v464
        %v1005 = vunpack.c.h.b16 %v464
        %v1006 = vunpack.c.l.b16 %v465
        %v1007 = vunpack.c.h.b16 %v465
        %v1008 = vunpack.c.l.b16 %v466
        %v1009 = vunpack.c.h.b16 %v466
        %v1010 = vunpack.c.l.b16 %v467
        %v1011 = vunpack.c.h.b16 %v467
        %v1012 = vunpack.c.l.b16 %v468
        %v1013 = vunpack.c.h.b16 %v468
        %v1014 = vunpack.c.l.b16 %v469
        %v1015 = vunpack.c.h.b16 %v469
        %v1016 = vunpack.c.l.b16 %v470
        %v1017 = vunpack.c.h.b16 %v470
        %v1018 = vunpack.c.l.b16 %v471
        %v1019 = vunpack.c.h.b16 %v471
        %v1020 = vunpack.c.l.b16 %v472
        %v1021 = vunpack.c.h.b16 %v472
        %v1022 = vunpack.c.l.b16 %v473
        %v1023 = vunpack.c.h.b16 %v473
        %v1024 = vunpack.c.l.b16 %v474
        %v1025 = vunpack.c.h.b16 %v474
        %v1026 = vunpack.c.l.b16 %v475
        %v1027 = vunpack.c.h.b16 %v475
        %v1028 = vunpack.c.l.b16 %v476
        %v1029 = vunpack.c.h.b16 %v476
        %v1030 = vunpack.c.l.b16 %v477
        %v1031 = vunpack.c.h.b16 %v477
        %v1032 = vunpack.c.l.b16 %v478
        %v1033 = vunpack.c.h.b16 %v478
        %v1034 = vunpack.c.l.b16 %v479
        %v1035 = vunpack.c.h.b16 %v479
        %v1036 = vunpack.c.l.b16 %v480
        %v1037 = vunpack.c.h.b16 %v480
        %v1038 = vunpack.c.l.b16 %v481
        %v1039 = vunpack.c.h.b16 %v481
        %v1040 = vunpack.c.l.b16 %v482
        %v1041 = vunpack.c.h.b16 %v482
        %v1042 = vpack.c.b16 %v968, %v966
        %v1043 = vpack.c.b16 %v969, %v967
        %v1044 = vpack.c.b16 %v972, %v970
        %v1045 = vpack.c.b16 %v973, %v971
        %v1046 = vpack.c.b16 %v976, %v974
        %v1047 = vpack.c.b16 %v977, %v975
        %v1048 = vpack.c.b16 %v980, %v978
        %v1049 = vpack.c.b16 %v981, %v979
        %v1050 = vpack.c.b16 %v984, %v982
        %v1051 = vpack.c.b16 %v985, %v983
        %v1052 = vpack.c.b16 %v988, %v986
        %v1053 = vpack.c.b16 %v989, %v987
        %v1054 = vpack.c.b16 %v992, %v990
        %v1055 = vpack.c.b16 %v993, %v991
        %v1056 = vpack.c.b16 %v996, %v994
        %v1057 = vpack.c.b16 %v997, %v995
        %v1058 = vpack.c.b16 %v1000, %v998
        %v1059 = vpack.c.b16 %v1001, %v999
        %v1060 = vpack.c.b16 %v1004, %v1002
        %v1061 = vpack.c.b16 %v1005, %v1003
        %v1062 = vpack.c.b16 %v1008, %v1006
        %v1063 = vpack.c.b16 %v1009, %v1007
        %v1064 = vpack.c.b16 %v1012, %v1010
        %v1065 = vpack.c.b16 %v1013, %v1011
        %v1066 = vpack.c.b16 %v1016, %v1014
        %v1067 = vpack.c.b16 %v1017, %v1015
        %v1068 = vpack.c.b16 %v1020, %v1018
        %v1069 = vpack.c.b16 %v1021, %v1019
        %v1070 = vpack.c.b16 %v1024, %v1022
        %v1071 = vpack.c.b16 %v1025, %v1023
        %v1072 = vpack.c.b16 %v1028, %v1026
        %v1073 = vpack.c.b16 %v1029, %v1027
        %v1074 = vpack.c.b16 %v1032, %v1030
        %v1075 = vpack.c.b16 %v1033, %v1031
        %v1076 = vpack.c.b16 %v1036, %v1034
        %v1077 = vpack.c.b16 %v1037, %v1035
        %v1078 = vpack.c.b16 %v1040, %v1038
        %v1079 = vpack.c.b16 %v1041, %v1039
        %v1117 = vsel %vm792, %v923, 0
        %v1120 = vsel %vm792, %v922, 0
        %v1123 = vsel %vm799, %v1078, 0
        %v1126 = vsel %vm799, %v1079, 0
        %1128 = vmatpush.bf16.msra.mxu0 %v1056
        %1129 = vmatpush.bf16.msra.mxu0 %v1054
        %1130 = vmatpush.bf16.msra.mxu0 %v1052
        %1131 = vmatpush.bf16.msra.mxu0 %v1050
        %1132 = vmatpush.bf16.msra.mxu0 %v1048
        %1133 = vmatpush.bf16.msra.mxu0 %v1046
        %1134 = vmatpush.bf16.msra.mxu0 %v1044
        %1135 = vmatpush.bf16.msra.mxu0 %v1042
        %1136 = vmatmul.bf16.gmra.mxu0 %v917
        %v1137 = vpop.f32.mrf.mxu0
        %v1138 = vadd.f32 %v852, %v1137
        %v1139 = vpop.f32.mrf.mxu0
        %v1140 = vadd.f32 %v854, %v1139
        %1141 = vmatmul.bf16.gmra.mxu0 %v916
        %v1142 = vpop.f32.mrf.mxu0
        %v1143 = vadd.f32 %v857, %v1142
        %v1144 = vpop.f32.mrf.mxu0
        %1145 = vdwg.mxu0
        %1146 = vmatpush.bf16.msra.mxu0 %v1072
        %1147 = vmatpush.bf16.msra.mxu0 %v1070
        %1148 = vmatpush.bf16.msra.mxu0 %v1068
        %1149 = vmatpush.bf16.msra.mxu0 %v1066
        %1150 = vmatpush.bf16.msra.mxu0 %v1064
        %1151 = vmatpush.bf16.msra.mxu0 %v1062
        %1152 = vmatpush.bf16.msra.mxu0 %v1060
        %1153 = vmatpush.bf16.msra.mxu0 %v1058
        %1154 = vmatmul.bf16.gmra.mxu0 %v920
        %v1155 = vpop.f32.mrf.mxu0
        %v1156 = vadd.f32 %v1138, %v1155
        %v1157 = vpop.f32.mrf.mxu0
        %v1158 = vadd.f32 %v1140, %v1157
        %1159 = vmatmul.bf16.gmra.mxu0 %v919
        %v1160 = vpop.f32.mrf.mxu0
        %v1161 = vadd.f32 %v1143, %v1160
        %v1162 = vpop.f32.mrf.mxu0
        %1163 = vdwg.mxu0
        %1164 = vmatpush.bf16.msra.mxu0 0
        %1165 = vmatpush.bf16.msra.mxu0 0
        %1166 = vmatpush.bf16.msra.mxu0 0
        %1167 = vmatpush.bf16.msra.mxu0 0
        %1168 = vmatpush.bf16.msra.mxu0 0
        %1169 = vmatpush.bf16.msra.mxu0 %v1123
        %1170 = vmatpush.bf16.msra.mxu0 %v1076
        %1171 = vmatpush.bf16.msra.mxu0 %v1074
        %1172 = vmatmul.bf16.gmra.mxu0 %v1117
        %v1173 = vpop.f32.mrf.mxu0
        %v1174 = vadd.f32 %v1156, %v1173
        %v1175 = vpop.f32.mrf.mxu0
        %v1176 = vadd.f32 %v1158, %v1175
        %1177 = vmatmul.bf16.gmra.mxu0 %v1120
        %v1178 = vpop.f32.mrf.mxu0
        %v1179 = vadd.f32 %v1161, %v1178
        %v1180 = vpop.f32.mrf.mxu0
        %1181 = vdwg.mxu0
        %1182 = vmatpush.bf16.msra.mxu0 %v1057
        %1183 = vmatpush.bf16.msra.mxu0 %v1055
        %1184 = vmatpush.bf16.msra.mxu0 %v1053
        %1185 = vmatpush.bf16.msra.mxu0 %v1051
        %1186 = vmatpush.bf16.msra.mxu0 %v1049
        %1187 = vmatpush.bf16.msra.mxu0 %v1047
        %1188 = vmatpush.bf16.msra.mxu0 %v1045
        %1189 = vmatpush.bf16.msra.mxu0 %v1043
        %1190 = vmatmul.bf16.gmra.mxu0 %v917
        %v1191 = vpop.f32.mrf.mxu0
        %v1192 = vadd.f32 %v906, %v1191
        %v1193 = vpop.f32.mrf.mxu0
        %v1194 = vadd.f32 %v908, %v1193
        %1195 = vmatmul.bf16.gmra.mxu0 %v916
        %v1196 = vpop.f32.mrf.mxu0
        %v1197 = vadd.f32 %v911, %v1196
        %v1198 = vpop.f32.mrf.mxu0
        %1199 = vdwg.mxu0
        %1200 = vmatpush.bf16.msra.mxu0 %v1073
        %1201 = vmatpush.bf16.msra.mxu0 %v1071
        %1202 = vmatpush.bf16.msra.mxu0 %v1069
        %1203 = vmatpush.bf16.msra.mxu0 %v1067
        %1204 = vmatpush.bf16.msra.mxu0 %v1065
        %1205 = vmatpush.bf16.msra.mxu0 %v1063
        %1206 = vmatpush.bf16.msra.mxu0 %v1061
        %1207 = vmatpush.bf16.msra.mxu0 %v1059
        %1208 = vmatmul.bf16.gmra.mxu0 %v920
        %v1209 = vpop.f32.mrf.mxu0
        %v1210 = vadd.f32 %v1192, %v1209
        %v1211 = vpop.f32.mrf.mxu0
        %v1212 = vadd.f32 %v1194, %v1211
        %1213 = vmatmul.bf16.gmra.mxu0 %v919
        %v1214 = vpop.f32.mrf.mxu0
        %v1215 = vadd.f32 %v1197, %v1214
        %v1216 = vpop.f32.mrf.mxu0
        %1217 = vdwg.mxu0
        %1218 = vmatpush.bf16.msra.mxu0 0
        %1219 = vmatpush.bf16.msra.mxu0 0
        %1220 = vmatpush.bf16.msra.mxu0 0
        %1221 = vmatpush.bf16.msra.mxu0 0
        %1222 = vmatpush.bf16.msra.mxu0 0
        %1223 = vmatpush.bf16.msra.mxu0 %v1126
        %1224 = vmatpush.bf16.msra.mxu0 %v1077
        %1225 = vmatpush.bf16.msra.mxu0 %v1075
        %1226 = vmatmul.bf16.gmra.mxu0 %v1117
        %v1227 = vpop.f32.mrf.mxu0
        %v1228 = vadd.f32 %v1210, %v1227
        %v1229 = vpop.f32.mrf.mxu0
        %v1230 = vadd.f32 %v1212, %v1229
        %1231 = vmatmul.bf16.gmra.mxu0 %v1120
        %v1232 = vpop.f32.mrf.mxu0
        %v1233 = vadd.f32 %v1215, %v1232
        %v1234 = vpop.f32.mrf.mxu0
        %1235 = vdwg.mxu0
        %s1236 = scalar_lea.vmem %s2, 608
        %v1237 = vld [vmem:[%s1236] sm:$0xff]
        %v1238 = vld [vmem:[%s1236 + $0x8] sm:$0xff]
        %v1239 = vld [vmem:[%s1236 + $0x10] sm:$0xff]
        %v1240 = vld [vmem:[%s1236 + $0x18] sm:$0xff]
        %v1241 = vld [vmem:[%s1236 + $0x20] sm:$0xff]
        %v1242 = vld [vmem:[%s1236 + $0x28] sm:$0xff]
        %v1243 = vld [vmem:[%s1236 + $0x30] sm:$0xff]
        %v1244 = vld [vmem:[%s1236 + $0x38] sm:$0xff]
        %v1245 = vld [vmem:[%s1236 + $0x40] sm:$0xff]
        %v1246 = vld [vmem:[%s1236 + $0x48] sm:$0xff]
        %v1247 = vld [vmem:[%s1236 + $0x50] sm:$0xff]
        %v1248 = vld [vmem:[%s1236 + $0x58] sm:$0xff]
        %v1249 = vld [vmem:[%s1236 + $0x60] sm:$0xff]
        %v1250 = vld [vmem:[%s1236 + $0x68] sm:$0xff]
        %v1251 = vld [vmem:[%s1236 + $0x70] sm:$0xff]
        %v1252 = vld [vmem:[%s1236 + $0x78] sm:$0xff]
        %v1253 = vld [vmem:[%s1236 + $0x80] sm:$0xff]
        %v1254 = vld [vmem:[%s1236 + $0x88] sm:$0xff]
        %v1255 = vld [vmem:[%s1236 + $0x90] sm:$0xff]
        %v1256 = vld [vmem:[%s1236 + $0x98] sm:$0xff]
        %v1257 = vld [vmem:[%s1236 + $0xa0] sm:$0xff]
        %v1258 = vld [vmem:[%s1236 + $0xa8] sm:$0xff]
        %v1259 = vld [vmem:[%s1236 + $0xb0] sm:$0xff]
        %v1260 = vld [vmem:[%s1236 + $0xb8] sm:$0xff]
        %v1261 = vld [vmem:[%s1236 + $0xc0] sm:$0xff]
        %v1262 = vld [vmem:[%s1236 + $0xc8] sm:$0xff]
        %v1263 = vld [vmem:[%s1236 + $0xd0] sm:$0xff]
        %v1264 = vld [vmem:[%s1236 + $0xd8] sm:$0xff]
        %v1265 = vld [vmem:[%s1236 + $0xe0] sm:$0xff]
        %v1266 = vld [vmem:[%s1236 + $0xe8] sm:$0xff]
        %v1267 = vld [vmem:[%s1236 + $0xf0] sm:$0xff]
        %v1268 = vld [vmem:[%s1236 + $0xf8] sm:$0xff]
        %v1269 = vld [vmem:[%s1236 + $0x100] sm:$0xff]
        %v1270 = vld [vmem:[%s1236 + $0x108] sm:$0xff]
        %v1271 = vld [vmem:[%s1236 + $0x110] sm:$0xff]
        %v1272 = vld [vmem:[%s1236 + $0x118] sm:$0xff]
        %v1273 = vld [vmem:[%s1236 + $0x120] sm:$0xff]
        %v1274 = vld [vmem:[%s1236 + $0x128] sm:$0x33]
        %vm1275 = vcmask 1045504
        %v1276 = vrot.slane %v542, 2
        %v1277 = vrot.slane %v545, 2
        %v1278 = vsel %vm1275, %v1276, %v1277
        %v1279 = vrot.slane %v543, 2
        %v1280 = vrot.slane %v546, 2
        %v1281 = vsel %vm1275, %v1279, %v1280
        %v1282 = vrot.slane %v544, 2
        %v1283 = vrot.slane %v547, 2
        %v1284 = vsel %vm1275, %v1282, %v1283
        %v1327 = vunpack.c.l.b16 %v1237
        %v1328 = vunpack.c.h.b16 %v1237
        %v1329 = vunpack.c.l.b16 %v1238
        %v1330 = vunpack.c.h.b16 %v1238
        %v1331 = vunpack.c.l.b16 %v1239
        %v1332 = vunpack.c.h.b16 %v1239
        %v1333 = vunpack.c.l.b16 %v1240
        %v1334 = vunpack.c.h.b16 %v1240
        %v1335 = vunpack.c.l.b16 %v1241
        %v1336 = vunpack.c.h.b16 %v1241
        %v1337 = vunpack.c.l.b16 %v1242
        %v1338 = vunpack.c.h.b16 %v1242
        %v1339 = vunpack.c.l.b16 %v1243
        %v1340 = vunpack.c.h.b16 %v1243
        %v1341 = vunpack.c.l.b16 %v1244
        %v1342 = vunpack.c.h.b16 %v1244
        %v1343 = vunpack.c.l.b16 %v1245
        %v1344 = vunpack.c.h.b16 %v1245
        %v1345 = vunpack.c.l.b16 %v1246
        %v1346 = vunpack.c.h.b16 %v1246
        %v1347 = vunpack.c.l.b16 %v1247
        %v1348 = vunpack.c.h.b16 %v1247
        %v1349 = vunpack.c.l.b16 %v1248
        %v1350 = vunpack.c.h.b16 %v1248
        %v1351 = vunpack.c.l.b16 %v1249
        %v1352 = vunpack.c.h.b16 %v1249
        %v1353 = vunpack.c.l.b16 %v1250
        %v1354 = vunpack.c.h.b16 %v1250
        %v1355 = vunpack.c.l.b16 %v1251
        %v1356 = vunpack.c.h.b16 %v1251
        %v1357 = vunpack.c.l.b16 %v1252
        %v1358 = vunpack.c.h.b16 %v1252
        %v1359 = vunpack.c.l.b16 %v1253
        %v1360 = vunpack.c.h.b16 %v1253
        %v1361 = vunpack.c.l.b16 %v1254
        %v1362 = vunpack.c.h.b16 %v1254
        %v1363 = vunpack.c.l.b16 %v1255
        %v1364 = vunpack.c.h.b16 %v1255
        %v1365 = vunpack.c.l.b16 %v1256
        %v1366 = vunpack.c.h.b16 %v1256
        %v1367 = vunpack.c.l.b16 %v1257
        %v1368 = vunpack.c.h.b16 %v1257
        %v1369 = vunpack.c.l.b16 %v1258
        %v1370 = vunpack.c.h.b16 %v1258
        %v1371 = vunpack.c.l.b16 %v1259
        %v1372 = vunpack.c.h.b16 %v1259
        %v1373 = vunpack.c.l.b16 %v1260
        %v1374 = vunpack.c.h.b16 %v1260
        %v1375 = vunpack.c.l.b16 %v1261
        %v1376 = vunpack.c.h.b16 %v1261
        %v1377 = vunpack.c.l.b16 %v1262
        %v1378 = vunpack.c.h.b16 %v1262
        %v1379 = vunpack.c.l.b16 %v1263
        %v1380 = vunpack.c.h.b16 %v1263
        %v1381 = vunpack.c.l.b16 %v1264
        %v1382 = vunpack.c.h.b16 %v1264
        %v1383 = vunpack.c.l.b16 %v1265
        %v1384 = vunpack.c.h.b16 %v1265
        %v1385 = vunpack.c.l.b16 %v1266
        %v1386 = vunpack.c.h.b16 %v1266
        %v1387 = vunpack.c.l.b16 %v1267
        %v1388 = vunpack.c.h.b16 %v1267
        %v1389 = vunpack.c.l.b16 %v1268
        %v1390 = vunpack.c.h.b16 %v1268
        %v1391 = vunpack.c.l.b16 %v1269
        %v1392 = vunpack.c.h.b16 %v1269
        %v1393 = vunpack.c.l.b16 %v1270
        %v1394 = vunpack.c.h.b16 %v1270
        %v1395 = vunpack.c.l.b16 %v1271
        %v1396 = vunpack.c.h.b16 %v1271
        %v1397 = vunpack.c.l.b16 %v1272
        %v1398 = vunpack.c.h.b16 %v1272
        %v1399 = vunpack.c.l.b16 %v1273
        %v1400 = vunpack.c.h.b16 %v1273
        %v1401 = vunpack.c.l.b16 %v1274
        %v1402 = vunpack.c.h.b16 %v1274
        %v1403 = vpack.c.b16 %v1329, %v1327
        %v1404 = vpack.c.b16 %v1330, %v1328
        %v1405 = vpack.c.b16 %v1333, %v1331
        %v1406 = vpack.c.b16 %v1334, %v1332
        %v1407 = vpack.c.b16 %v1337, %v1335
        %v1408 = vpack.c.b16 %v1338, %v1336
        %v1409 = vpack.c.b16 %v1341, %v1339
        %v1410 = vpack.c.b16 %v1342, %v1340
        %v1411 = vpack.c.b16 %v1345, %v1343
        %v1412 = vpack.c.b16 %v1346, %v1344
        %v1413 = vpack.c.b16 %v1349, %v1347
        %v1414 = vpack.c.b16 %v1350, %v1348
        %v1415 = vpack.c.b16 %v1353, %v1351
        %v1416 = vpack.c.b16 %v1354, %v1352
        %v1417 = vpack.c.b16 %v1357, %v1355
        %v1418 = vpack.c.b16 %v1358, %v1356
        %v1419 = vpack.c.b16 %v1361, %v1359
        %v1420 = vpack.c.b16 %v1362, %v1360
        %v1421 = vpack.c.b16 %v1365, %v1363
        %v1422 = vpack.c.b16 %v1366, %v1364
        %v1423 = vpack.c.b16 %v1369, %v1367
        %v1424 = vpack.c.b16 %v1370, %v1368
        %v1425 = vpack.c.b16 %v1373, %v1371
        %v1426 = vpack.c.b16 %v1374, %v1372
        %v1427 = vpack.c.b16 %v1377, %v1375
        %v1428 = vpack.c.b16 %v1378, %v1376
        %v1429 = vpack.c.b16 %v1381, %v1379
        %v1430 = vpack.c.b16 %v1382, %v1380
        %v1431 = vpack.c.b16 %v1385, %v1383
        %v1432 = vpack.c.b16 %v1386, %v1384
        %v1433 = vpack.c.b16 %v1389, %v1387
        %v1434 = vpack.c.b16 %v1390, %v1388
        %v1435 = vpack.c.b16 %v1393, %v1391
        %v1436 = vpack.c.b16 %v1394, %v1392
        %v1437 = vpack.c.b16 %v1397, %v1395
        %v1438 = vpack.c.b16 %v1398, %v1396
        %v1439 = vpack.c.b16 %v1401, %v1399
        %v1440 = vpack.c.b16 %v1402, %v1400
        %v1478 = vsel %vm792, %v1284, 0
        %v1481 = vsel %vm792, %v1283, 0
        %v1484 = vsel %vm799, %v1439, 0
        %v1487 = vsel %vm799, %v1440, 0
        %1489 = vmatpush.bf16.msra.mxu0 %v1417
        %1490 = vmatpush.bf16.msra.mxu0 %v1415
        %1491 = vmatpush.bf16.msra.mxu0 %v1413
        %1492 = vmatpush.bf16.msra.mxu0 %v1411
        %1493 = vmatpush.bf16.msra.mxu0 %v1409
        %1494 = vmatpush.bf16.msra.mxu0 %v1407
        %1495 = vmatpush.bf16.msra.mxu0 %v1405
        %1496 = vmatpush.bf16.msra.mxu0 %v1403
        %1497 = vmatmul.bf16.gmra.mxu0 %v1278
        %v1498 = vpop.f32.mrf.mxu0
        %v1499 = vadd.f32 0.0, %v1498
        %v1500 = vpop.f32.mrf.mxu0
        %v1501 = vadd.f32 0.0, %v1500
        %1502 = vmatmul.bf16.gmra.mxu0 %v1277
        %v1503 = vpop.f32.mrf.mxu0
        %v1504 = vadd.f32 0.0, %v1503
        %v1505 = vpop.f32.mrf.mxu0
        %1506 = vdwg.mxu0
        %1507 = vmatpush.bf16.msra.mxu0 %v1433
        %1508 = vmatpush.bf16.msra.mxu0 %v1431
        %1509 = vmatpush.bf16.msra.mxu0 %v1429
        %1510 = vmatpush.bf16.msra.mxu0 %v1427
        %1511 = vmatpush.bf16.msra.mxu0 %v1425
        %1512 = vmatpush.bf16.msra.mxu0 %v1423
        %1513 = vmatpush.bf16.msra.mxu0 %v1421
        %1514 = vmatpush.bf16.msra.mxu0 %v1419
        %1515 = vmatmul.bf16.gmra.mxu0 %v1281
        %v1516 = vpop.f32.mrf.mxu0
        %v1517 = vadd.f32 %v1499, %v1516
        %v1518 = vpop.f32.mrf.mxu0
        %v1519 = vadd.f32 %v1501, %v1518
        %1520 = vmatmul.bf16.gmra.mxu0 %v1280
        %v1521 = vpop.f32.mrf.mxu0
        %v1522 = vadd.f32 %v1504, %v1521
        %v1523 = vpop.f32.mrf.mxu0
        %1524 = vdwg.mxu0
        %1525 = vmatpush.bf16.msra.mxu0 0
        %1526 = vmatpush.bf16.msra.mxu0 0
        %1527 = vmatpush.bf16.msra.mxu0 0
        %1528 = vmatpush.bf16.msra.mxu0 0
        %1529 = vmatpush.bf16.msra.mxu0 0
        %1530 = vmatpush.bf16.msra.mxu0 %v1484
        %1531 = vmatpush.bf16.msra.mxu0 %v1437
        %1532 = vmatpush.bf16.msra.mxu0 %v1435
        %1533 = vmatmul.bf16.gmra.mxu0 %v1478
        %v1534 = vpop.f32.mrf.mxu0
        %v1535 = vadd.f32 %v1517, %v1534
        %v1536 = vpop.f32.mrf.mxu0
        %v1537 = vadd.f32 %v1519, %v1536
        %1538 = vmatmul.bf16.gmra.mxu0 %v1481
        %v1539 = vpop.f32.mrf.mxu0
        %v1540 = vadd.f32 %v1522, %v1539
        %v1541 = vpop.f32.mrf.mxu0
        %1542 = vdwg.mxu0
        %1543 = vmatpush.bf16.msra.mxu0 %v1418
        %1544 = vmatpush.bf16.msra.mxu0 %v1416
        %1545 = vmatpush.bf16.msra.mxu0 %v1414
        %1546 = vmatpush.bf16.msra.mxu0 %v1412
        %1547 = vmatpush.bf16.msra.mxu0 %v1410
        %1548 = vmatpush.bf16.msra.mxu0 %v1408
        %1549 = vmatpush.bf16.msra.mxu0 %v1406
        %1550 = vmatpush.bf16.msra.mxu0 %v1404
        %1551 = vmatmul.bf16.gmra.mxu0 %v1278
        %v1552 = vpop.f32.mrf.mxu0
        %v1553 = vadd.f32 0.0, %v1552
        %v1554 = vpop.f32.mrf.mxu0
        %v1555 = vadd.f32 0.0, %v1554
        %1556 = vmatmul.bf16.gmra.mxu0 %v1277
        %v1557 = vpop.f32.mrf.mxu0
        %v1558 = vadd.f32 0.0, %v1557
        %v1559 = vpop.f32.mrf.mxu0
        %1560 = vdwg.mxu0
        %1561 = vmatpush.bf16.msra.mxu0 %v1434
        %1562 = vmatpush.bf16.msra.mxu0 %v1432
        %1563 = vmatpush.bf16.msra.mxu0 %v1430
        %1564 = vmatpush.bf16.msra.mxu0 %v1428
        %1565 = vmatpush.bf16.msra.mxu0 %v1426
        %1566 = vmatpush.bf16.msra.mxu0 %v1424
        %1567 = vmatpush.bf16.msra.mxu0 %v1422
        %1568 = vmatpush.bf16.msra.mxu0 %v1420
        %1569 = vmatmul.bf16.gmra.mxu0 %v1281
        %v1570 = vpop.f32.mrf.mxu0
        %v1571 = vadd.f32 %v1553, %v1570
        %v1572 = vpop.f32.mrf.mxu0
        %v1573 = vadd.f32 %v1555, %v1572
        %1574 = vmatmul.bf16.gmra.mxu0 %v1280
        %v1575 = vpop.f32.mrf.mxu0
        %v1576 = vadd.f32 %v1558, %v1575
        %v1577 = vpop.f32.mrf.mxu0
        %1578 = vdwg.mxu0
        %1579 = vmatpush.bf16.msra.mxu0 0
        %1580 = vmatpush.bf16.msra.mxu0 0
        %1581 = vmatpush.bf16.msra.mxu0 0
        %1582 = vmatpush.bf16.msra.mxu0 0
        %1583 = vmatpush.bf16.msra.mxu0 0
        %1584 = vmatpush.bf16.msra.mxu0 %v1487
        %1585 = vmatpush.bf16.msra.mxu0 %v1438
        %1586 = vmatpush.bf16.msra.mxu0 %v1436
        %1587 = vmatmul.bf16.gmra.mxu0 %v1478
        %v1588 = vpop.f32.mrf.mxu0
        %v1589 = vadd.f32 %v1571, %v1588
        %v1590 = vpop.f32.mrf.mxu0
        %v1591 = vadd.f32 %v1573, %v1590
        %1592 = vmatmul.bf16.gmra.mxu0 %v1481
        %v1593 = vpop.f32.mrf.mxu0
        %v1594 = vadd.f32 %v1576, %v1593
        %v1595 = vpop.f32.mrf.mxu0
        %1596 = vdwg.mxu0
        %v1597 = vadd.f32 %v1174, %v1535
        %v1598 = vadd.f32 %v1228, %v1589
        %v1599 = vadd.f32 %v1176, %v1537
        %v1600 = vadd.f32 %v1230, %v1591
        %v1601 = vadd.f32 %v1179, %v1540
        %v1602 = vadd.f32 %v1233, %v1594
        %v1603 = vld [vmem:[%s3] sm:$0x3]
        %v1605 = vperm.slane %v1603, 0
        %v1606 = vperm.slane %v1603, 1
        %v1609 = vadd.f32 %v1597, %v1605
        %v1610 = vadd.f32 %v1598, %v1606
        %v1611 = vadd.f32 %v1599, %v1605
        %v1612 = vadd.f32 %v1600, %v1606
        %v1613 = vadd.f32 %v1601, %v1605
        %v1614 = vadd.f32 %v1602, %v1606
        %v1615 = vld [vmem:[%s4] sm:$0xff]
        %v1616 = vld [vmem:[%s4 + $0x8] sm:$0xff]
        %v1617 = vld [vmem:[%s4 + $0x10] sm:$0xff]
        %v1618 = vld [vmem:[%s4 + $0x18] sm:$0xff]
        %v1619 = vld [vmem:[%s4 + $0x20] sm:$0xff]
        %v1620 = vld [vmem:[%s4 + $0x28] sm:$0xff]
        %v1621 = vld [vmem:[%s4 + $0x30] sm:$0xff]
        %v1622 = vld [vmem:[%s4 + $0x38] sm:$0xff]
        %v1623 = vld [vmem:[%s4 + $0x40] sm:$0xff]
        %v1624 = vld [vmem:[%s4 + $0x48] sm:$0xff]
        %v1625 = vld [vmem:[%s4 + $0x50] sm:$0xff]
        %v1626 = vld [vmem:[%s4 + $0x58] sm:$0xff]
        %v1627 = vld [vmem:[%s4 + $0x60] sm:$0xff]
        %v1628 = vld [vmem:[%s4 + $0x68] sm:$0xff]
        %v1629 = vld [vmem:[%s4 + $0x70] sm:$0xff]
        %v1630 = vld [vmem:[%s4 + $0x78] sm:$0xff]
        %v1631 = vld [vmem:[%s4 + $0x80] sm:$0xff]
        %v1632 = vld [vmem:[%s4 + $0x88] sm:$0xff]
        %v1633 = vld [vmem:[%s4 + $0x90] sm:$0xff]
        %v1634 = vld [vmem:[%s4 + $0x98] sm:$0xff]
        %v1635 = vld [vmem:[%s4 + $0xa0] sm:$0xff]
        %v1636 = vld [vmem:[%s4 + $0xa8] sm:$0xff]
        %v1637 = vld [vmem:[%s4 + $0xb0] sm:$0xff]
        %v1638 = vld [vmem:[%s4 + $0xb8] sm:$0xff]
        %v1639 = vld [vmem:[%s4 + $0xc0] sm:$0xff]
        %v1640 = vld [vmem:[%s4 + $0xc8] sm:$0xff]
        %v1641 = vld [vmem:[%s4 + $0xd0] sm:$0xff]
        %v1642 = vld [vmem:[%s4 + $0xd8] sm:$0xff]
        %v1643 = vld [vmem:[%s4 + $0xe0] sm:$0xff]
        %v1644 = vld [vmem:[%s4 + $0xe8] sm:$0xff]
        %v1645 = vld [vmem:[%s4 + $0xf0] sm:$0xff]
        %v1646 = vld [vmem:[%s4 + $0xf8] sm:$0xff]
        %v1647 = vld [vmem:[%s4 + $0x100] sm:$0xff]
        %v1648 = vld [vmem:[%s4 + $0x108] sm:$0xff]
        %v1649 = vld [vmem:[%s4 + $0x110] sm:$0xff]
        %v1650 = vld [vmem:[%s4 + $0x118] sm:$0xff]
        %v1651 = vld [vmem:[%s4 + $0x120] sm:$0xff]
        %v1652 = vld [vmem:[%s4 + $0x128] sm:$0x33]
        %s1653 = scalar_lea.vmem %s4, 304
        %v1654 = vld [vmem:[%s1653] sm:$0xff]
        %v1655 = vld [vmem:[%s1653 + $0x8] sm:$0xff]
        %v1656 = vld [vmem:[%s1653 + $0x10] sm:$0xff]
        %v1657 = vld [vmem:[%s1653 + $0x18] sm:$0xff]
        %v1658 = vld [vmem:[%s1653 + $0x20] sm:$0xff]
        %v1659 = vld [vmem:[%s1653 + $0x28] sm:$0xff]
        %v1660 = vld [vmem:[%s1653 + $0x30] sm:$0xff]
        %v1661 = vld [vmem:[%s1653 + $0x38] sm:$0xff]
        %v1662 = vld [vmem:[%s1653 + $0x40] sm:$0xff]
        %v1663 = vld [vmem:[%s1653 + $0x48] sm:$0xff]
        %v1664 = vld [vmem:[%s1653 + $0x50] sm:$0xff]
        %v1665 = vld [vmem:[%s1653 + $0x58] sm:$0xff]
        %v1666 = vld [vmem:[%s1653 + $0x60] sm:$0xff]
        %v1667 = vld [vmem:[%s1653 + $0x68] sm:$0xff]
        %v1668 = vld [vmem:[%s1653 + $0x70] sm:$0xff]
        %v1669 = vld [vmem:[%s1653 + $0x78] sm:$0xff]
        %v1670 = vld [vmem:[%s1653 + $0x80] sm:$0xff]
        %v1671 = vld [vmem:[%s1653 + $0x88] sm:$0xff]
        %v1672 = vld [vmem:[%s1653 + $0x90] sm:$0xff]
        %v1673 = vld [vmem:[%s1653 + $0x98] sm:$0xff]
        %v1674 = vld [vmem:[%s1653 + $0xa0] sm:$0xff]
        %v1675 = vld [vmem:[%s1653 + $0xa8] sm:$0xff]
        %v1676 = vld [vmem:[%s1653 + $0xb0] sm:$0xff]
        %v1677 = vld [vmem:[%s1653 + $0xb8] sm:$0xff]
        %v1678 = vld [vmem:[%s1653 + $0xc0] sm:$0xff]
        %v1679 = vld [vmem:[%s1653 + $0xc8] sm:$0xff]
        %v1680 = vld [vmem:[%s1653 + $0xd0] sm:$0xff]
        %v1681 = vld [vmem:[%s1653 + $0xd8] sm:$0xff]
        %v1682 = vld [vmem:[%s1653 + $0xe0] sm:$0xff]
        %v1683 = vld [vmem:[%s1653 + $0xe8] sm:$0xff]
        %v1684 = vld [vmem:[%s1653 + $0xf0] sm:$0xff]
        %v1685 = vld [vmem:[%s1653 + $0xf8] sm:$0xff]
        %v1686 = vld [vmem:[%s1653 + $0x100] sm:$0xff]
        %v1687 = vld [vmem:[%s1653 + $0x108] sm:$0xff]
        %v1688 = vld [vmem:[%s1653 + $0x110] sm:$0xff]
        %v1689 = vld [vmem:[%s1653 + $0x118] sm:$0xff]
        %v1690 = vld [vmem:[%s1653 + $0x120] sm:$0xff]
        %v1691 = vld [vmem:[%s1653 + $0x128] sm:$0x33]
        %v1730 = vunpack.c.l.b16 %v1654
        %v1731 = vunpack.c.h.b16 %v1654
        %v1732 = vunpack.c.l.b16 %v1655
        %v1733 = vunpack.c.h.b16 %v1655
        %v1734 = vunpack.c.l.b16 %v1656
        %v1735 = vunpack.c.h.b16 %v1656
        %v1736 = vunpack.c.l.b16 %v1657
        %v1737 = vunpack.c.h.b16 %v1657
        %v1738 = vunpack.c.l.b16 %v1658
        %v1739 = vunpack.c.h.b16 %v1658
        %v1740 = vunpack.c.l.b16 %v1659
        %v1741 = vunpack.c.h.b16 %v1659
        %v1742 = vunpack.c.l.b16 %v1660
        %v1743 = vunpack.c.h.b16 %v1660
        %v1744 = vunpack.c.l.b16 %v1661
        %v1745 = vunpack.c.h.b16 %v1661
        %v1746 = vunpack.c.l.b16 %v1662
        %v1747 = vunpack.c.h.b16 %v1662
        %v1748 = vunpack.c.l.b16 %v1663
        %v1749 = vunpack.c.h.b16 %v1663
        %v1750 = vunpack.c.l.b16 %v1664
        %v1751 = vunpack.c.h.b16 %v1664
        %v1752 = vunpack.c.l.b16 %v1665
        %v1753 = vunpack.c.h.b16 %v1665
        %v1754 = vunpack.c.l.b16 %v1666
        %v1755 = vunpack.c.h.b16 %v1666
        %v1756 = vunpack.c.l.b16 %v1667
        %v1757 = vunpack.c.h.b16 %v1667
        %v1758 = vunpack.c.l.b16 %v1668
        %v1759 = vunpack.c.h.b16 %v1668
        %v1760 = vunpack.c.l.b16 %v1669
        %v1761 = vunpack.c.h.b16 %v1669
        %v1762 = vunpack.c.l.b16 %v1670
        %v1763 = vunpack.c.h.b16 %v1670
        %v1764 = vunpack.c.l.b16 %v1671
        %v1765 = vunpack.c.h.b16 %v1671
        %v1766 = vunpack.c.l.b16 %v1672
        %v1767 = vunpack.c.h.b16 %v1672
        %v1768 = vunpack.c.l.b16 %v1673
        %v1769 = vunpack.c.h.b16 %v1673
        %v1770 = vunpack.c.l.b16 %v1674
        %v1771 = vunpack.c.h.b16 %v1674
        %v1772 = vunpack.c.l.b16 %v1675
        %v1773 = vunpack.c.h.b16 %v1675
        %v1774 = vunpack.c.l.b16 %v1676
        %v1775 = vunpack.c.h.b16 %v1676
        %v1776 = vunpack.c.l.b16 %v1677
        %v1777 = vunpack.c.h.b16 %v1677
        %v1778 = vunpack.c.l.b16 %v1678
        %v1779 = vunpack.c.h.b16 %v1678
        %v1780 = vunpack.c.l.b16 %v1679
        %v1781 = vunpack.c.h.b16 %v1679
        %v1782 = vunpack.c.l.b16 %v1680
        %v1783 = vunpack.c.h.b16 %v1680
        %v1784 = vunpack.c.l.b16 %v1681
        %v1785 = vunpack.c.h.b16 %v1681
        %v1786 = vunpack.c.l.b16 %v1682
        %v1787 = vunpack.c.h.b16 %v1682
        %v1788 = vunpack.c.l.b16 %v1683
        %v1789 = vunpack.c.h.b16 %v1683
        %v1790 = vunpack.c.l.b16 %v1684
        %v1791 = vunpack.c.h.b16 %v1684
        %v1792 = vunpack.c.l.b16 %v1685
        %v1793 = vunpack.c.h.b16 %v1685
        %v1794 = vunpack.c.l.b16 %v1686
        %v1795 = vunpack.c.h.b16 %v1686
        %v1796 = vunpack.c.l.b16 %v1687
        %v1797 = vunpack.c.h.b16 %v1687
        %v1798 = vunpack.c.l.b16 %v1688
        %v1799 = vunpack.c.h.b16 %v1688
        %v1800 = vunpack.c.l.b16 %v1689
        %v1801 = vunpack.c.h.b16 %v1689
        %v1802 = vunpack.c.l.b16 %v1690
        %v1803 = vunpack.c.h.b16 %v1690
        %v1804 = vunpack.c.l.b16 %v1691
        %v1805 = vunpack.c.h.b16 %v1691
        %v1806 = vpack.c.b16 %v1732, %v1730
        %v1807 = vpack.c.b16 %v1733, %v1731
        %v1808 = vpack.c.b16 %v1736, %v1734
        %v1809 = vpack.c.b16 %v1737, %v1735
        %v1810 = vpack.c.b16 %v1740, %v1738
        %v1811 = vpack.c.b16 %v1741, %v1739
        %v1812 = vpack.c.b16 %v1744, %v1742
        %v1813 = vpack.c.b16 %v1745, %v1743
        %v1814 = vpack.c.b16 %v1748, %v1746
        %v1815 = vpack.c.b16 %v1749, %v1747
        %v1816 = vpack.c.b16 %v1752, %v1750
        %v1817 = vpack.c.b16 %v1753, %v1751
        %v1818 = vpack.c.b16 %v1756, %v1754
        %v1819 = vpack.c.b16 %v1757, %v1755
        %v1820 = vpack.c.b16 %v1760, %v1758
        %v1821 = vpack.c.b16 %v1761, %v1759
        %v1822 = vpack.c.b16 %v1764, %v1762
        %v1823 = vpack.c.b16 %v1765, %v1763
        %v1824 = vpack.c.b16 %v1768, %v1766
        %v1825 = vpack.c.b16 %v1769, %v1767
        %v1826 = vpack.c.b16 %v1772, %v1770
        %v1827 = vpack.c.b16 %v1773, %v1771
        %v1828 = vpack.c.b16 %v1776, %v1774
        %v1829 = vpack.c.b16 %v1777, %v1775
        %v1830 = vpack.c.b16 %v1780, %v1778
        %v1831 = vpack.c.b16 %v1781, %v1779
        %v1832 = vpack.c.b16 %v1784, %v1782
        %v1833 = vpack.c.b16 %v1785, %v1783
        %v1834 = vpack.c.b16 %v1788, %v1786
        %v1835 = vpack.c.b16 %v1789, %v1787
        %v1836 = vpack.c.b16 %v1792, %v1790
        %v1837 = vpack.c.b16 %v1793, %v1791
        %v1838 = vpack.c.b16 %v1796, %v1794
        %v1839 = vpack.c.b16 %v1797, %v1795
        %v1840 = vpack.c.b16 %v1800, %v1798
        %v1841 = vpack.c.b16 %v1801, %v1799
        %v1842 = vpack.c.b16 %v1804, %v1802
        %v1843 = vpack.c.b16 %v1805, %v1803
        %v1881 = vsel %vm799, %v1842, 0
        %v1884 = vsel %vm799, %v1843, 0
        %1886 = vmatpush.bf16.msra.mxu0 %v1820
        %1887 = vmatpush.bf16.msra.mxu0 %v1818
        %1888 = vmatpush.bf16.msra.mxu0 %v1816
        %1889 = vmatpush.bf16.msra.mxu0 %v1814
        %1890 = vmatpush.bf16.msra.mxu0 %v1812
        %1891 = vmatpush.bf16.msra.mxu0 %v1810
        %1892 = vmatpush.bf16.msra.mxu0 %v1808
        %1893 = vmatpush.bf16.msra.mxu0 %v1806
        %1894 = vmatmul.bf16.gmra.mxu0 %v917
        %v1895 = vpop.f32.mrf.mxu0
        %v1896 = vadd.f32 0.0, %v1895
        %v1897 = vpop.f32.mrf.mxu0
        %v1898 = vadd.f32 0.0, %v1897
        %1899 = vmatmul.bf16.gmra.mxu0 %v916
        %v1900 = vpop.f32.mrf.mxu0
        %v1901 = vadd.f32 0.0, %v1900
        %v1902 = vpop.f32.mrf.mxu0
        %v1903 = vadd.f32 0.0, %v1902
        %1904 = vdwg.mxu0
        %1905 = vmatpush.bf16.msra.mxu0 %v1836
        %1906 = vmatpush.bf16.msra.mxu0 %v1834
        %1907 = vmatpush.bf16.msra.mxu0 %v1832
        %1908 = vmatpush.bf16.msra.mxu0 %v1830
        %1909 = vmatpush.bf16.msra.mxu0 %v1828
        %1910 = vmatpush.bf16.msra.mxu0 %v1826
        %1911 = vmatpush.bf16.msra.mxu0 %v1824
        %1912 = vmatpush.bf16.msra.mxu0 %v1822
        %1913 = vmatmul.bf16.gmra.mxu0 %v920
        %v1914 = vpop.f32.mrf.mxu0
        %v1915 = vadd.f32 %v1896, %v1914
        %v1916 = vpop.f32.mrf.mxu0
        %v1917 = vadd.f32 %v1898, %v1916
        %1918 = vmatmul.bf16.gmra.mxu0 %v919
        %v1919 = vpop.f32.mrf.mxu0
        %v1920 = vadd.f32 %v1901, %v1919
        %v1921 = vpop.f32.mrf.mxu0
        %v1922 = vadd.f32 %v1903, %v1921
        %1923 = vdwg.mxu0
        %1924 = vmatpush.bf16.msra.mxu0 0
        %1925 = vmatpush.bf16.msra.mxu0 0
        %1926 = vmatpush.bf16.msra.mxu0 0
        %1927 = vmatpush.bf16.msra.mxu0 0
        %1928 = vmatpush.bf16.msra.mxu0 0
        %1929 = vmatpush.bf16.msra.mxu0 %v1881
        %1930 = vmatpush.bf16.msra.mxu0 %v1840
        %1931 = vmatpush.bf16.msra.mxu0 %v1838
        %1932 = vmatmul.bf16.gmra.mxu0 %v1117
        %v1933 = vpop.f32.mrf.mxu0
        %v1934 = vadd.f32 %v1915, %v1933
        %v1935 = vpop.f32.mrf.mxu0
        %v1936 = vadd.f32 %v1917, %v1935
        %1937 = vmatmul.bf16.gmra.mxu0 %v1120
        %v1938 = vpop.f32.mrf.mxu0
        %v1939 = vadd.f32 %v1920, %v1938
        %v1940 = vpop.f32.mrf.mxu0
        %v1941 = vadd.f32 %v1922, %v1940
        %1942 = vdwg.mxu0
        %1943 = vmatpush.bf16.msra.mxu0 %v1821
        %1944 = vmatpush.bf16.msra.mxu0 %v1819
        %1945 = vmatpush.bf16.msra.mxu0 %v1817
        %1946 = vmatpush.bf16.msra.mxu0 %v1815
        %1947 = vmatpush.bf16.msra.mxu0 %v1813
        %1948 = vmatpush.bf16.msra.mxu0 %v1811
        %1949 = vmatpush.bf16.msra.mxu0 %v1809
        %1950 = vmatpush.bf16.msra.mxu0 %v1807
        %1951 = vmatmul.bf16.gmra.mxu0 %v917
        %v1952 = vpop.f32.mrf.mxu0
        %v1953 = vadd.f32 0.0, %v1952
        %v1954 = vpop.f32.mrf.mxu0
        %v1955 = vadd.f32 0.0, %v1954
        %1956 = vmatmul.bf16.gmra.mxu0 %v916
        %v1957 = vpop.f32.mrf.mxu0
        %v1958 = vadd.f32 0.0, %v1957
        %v1959 = vpop.f32.mrf.mxu0
        %v1960 = vadd.f32 0.0, %v1959
        %1961 = vdwg.mxu0
        %1962 = vmatpush.bf16.msra.mxu0 %v1837
        %1963 = vmatpush.bf16.msra.mxu0 %v1835
        %1964 = vmatpush.bf16.msra.mxu0 %v1833
        %1965 = vmatpush.bf16.msra.mxu0 %v1831
        %1966 = vmatpush.bf16.msra.mxu0 %v1829
        %1967 = vmatpush.bf16.msra.mxu0 %v1827
        %1968 = vmatpush.bf16.msra.mxu0 %v1825
        %1969 = vmatpush.bf16.msra.mxu0 %v1823
        %1970 = vmatmul.bf16.gmra.mxu0 %v920
        %v1971 = vpop.f32.mrf.mxu0
        %v1972 = vadd.f32 %v1953, %v1971
        %v1973 = vpop.f32.mrf.mxu0
        %v1974 = vadd.f32 %v1955, %v1973
        %1975 = vmatmul.bf16.gmra.mxu0 %v919
        %v1976 = vpop.f32.mrf.mxu0
        %v1977 = vadd.f32 %v1958, %v1976
        %v1978 = vpop.f32.mrf.mxu0
        %v1979 = vadd.f32 %v1960, %v1978
        %1980 = vdwg.mxu0
        %1981 = vmatpush.bf16.msra.mxu0 0
        %1982 = vmatpush.bf16.msra.mxu0 0
        %1983 = vmatpush.bf16.msra.mxu0 0
        %1984 = vmatpush.bf16.msra.mxu0 0
        %1985 = vmatpush.bf16.msra.mxu0 0
        %1986 = vmatpush.bf16.msra.mxu0 %v1884
        %1987 = vmatpush.bf16.msra.mxu0 %v1841
        %1988 = vmatpush.bf16.msra.mxu0 %v1839
        %1989 = vmatmul.bf16.gmra.mxu0 %v1117
        %v1990 = vpop.f32.mrf.mxu0
        %v1991 = vadd.f32 %v1972, %v1990
        %v1992 = vpop.f32.mrf.mxu0
        %v1993 = vadd.f32 %v1974, %v1992
        %1994 = vmatmul.bf16.gmra.mxu0 %v1120
        %v1995 = vpop.f32.mrf.mxu0
        %v1996 = vadd.f32 %v1977, %v1995
        %v1997 = vpop.f32.mrf.mxu0
        %v1998 = vadd.f32 %v1979, %v1997
        %1999 = vdwg.mxu0
        %vm2000 = vsmask.f32 7424
        %v2001 = vrot.slane %v553, 1
        %v2002 = vor.u32 %v550, %v2001
        %v2003 = vrot.slane %v561, 1
        %v2004 = vsel %vm2000, %v2002, %v2003
        %v2005 = vrot.slane %v570, 1
        %v2006 = vor.u32 %v567, %v2005
        %v2007 = vrot.slane %v578, 1
        %v2008 = vsel %vm2000, %v2006, %v2007
        %v2009 = vrot.slane %v587, 1
        %v2010 = vor.u32 %v584, %v2009
        %v2011 = vrot.slane %v595, 1
        %v2012 = vsel %vm2000, %v2010, %v2011
        %v2013 = vor.u32 %v558, %v2003
        %v2014 = vor.u32 %v575, %v2007
        %v2015 = vor.u32 %v592, %v2011
        %v2058 = vunpack.c.l.b16 %v1615
        %v2059 = vunpack.c.h.b16 %v1615
        %v2060 = vunpack.c.l.b16 %v1616
        %v2061 = vunpack.c.h.b16 %v1616
        %v2062 = vunpack.c.l.b16 %v1617
        %v2063 = vunpack.c.h.b16 %v1617
        %v2064 = vunpack.c.l.b16 %v1618
        %v2065 = vunpack.c.h.b16 %v1618
        %v2066 = vunpack.c.l.b16 %v1619
        %v2067 = vunpack.c.h.b16 %v1619
        %v2068 = vunpack.c.l.b16 %v1620
        %v2069 = vunpack.c.h.b16 %v1620
        %v2070 = vunpack.c.l.b16 %v1621
        %v2071 = vunpack.c.h.b16 %v1621
        %v2072 = vunpack.c.l.b16 %v1622
        %v2073 = vunpack.c.h.b16 %v1622
        %v2074 = vunpack.c.l.b16 %v1623
        %v2075 = vunpack.c.h.b16 %v1623
        %v2076 = vunpack.c.l.b16 %v1624
        %v2077 = vunpack.c.h.b16 %v1624
        %v2078 = vunpack.c.l.b16 %v1625
        %v2079 = vunpack.c.h.b16 %v1625
        %v2080 = vunpack.c.l.b16 %v1626
        %v2081 = vunpack.c.h.b16 %v1626
        %v2082 = vunpack.c.l.b16 %v1627
        %v2083 = vunpack.c.h.b16 %v1627
        %v2084 = vunpack.c.l.b16 %v1628
        %v2085 = vunpack.c.h.b16 %v1628
        %v2086 = vunpack.c.l.b16 %v1629
        %v2087 = vunpack.c.h.b16 %v1629
        %v2088 = vunpack.c.l.b16 %v1630
        %v2089 = vunpack.c.h.b16 %v1630
        %v2090 = vunpack.c.l.b16 %v1631
        %v2091 = vunpack.c.h.b16 %v1631
        %v2092 = vunpack.c.l.b16 %v1632
        %v2093 = vunpack.c.h.b16 %v1632
        %v2094 = vunpack.c.l.b16 %v1633
        %v2095 = vunpack.c.h.b16 %v1633
        %v2096 = vunpack.c.l.b16 %v1634
        %v2097 = vunpack.c.h.b16 %v1634
        %v2098 = vunpack.c.l.b16 %v1635
        %v2099 = vunpack.c.h.b16 %v1635
        %v2100 = vunpack.c.l.b16 %v1636
        %v2101 = vunpack.c.h.b16 %v1636
        %v2102 = vunpack.c.l.b16 %v1637
        %v2103 = vunpack.c.h.b16 %v1637
        %v2104 = vunpack.c.l.b16 %v1638
        %v2105 = vunpack.c.h.b16 %v1638
        %v2106 = vunpack.c.l.b16 %v1639
        %v2107 = vunpack.c.h.b16 %v1639
        %v2108 = vunpack.c.l.b16 %v1640
        %v2109 = vunpack.c.h.b16 %v1640
        %v2110 = vunpack.c.l.b16 %v1641
        %v2111 = vunpack.c.h.b16 %v1641
        %v2112 = vunpack.c.l.b16 %v1642
        %v2113 = vunpack.c.h.b16 %v1642
        %v2114 = vunpack.c.l.b16 %v1643
        %v2115 = vunpack.c.h.b16 %v1643
        %v2116 = vunpack.c.l.b16 %v1644
        %v2117 = vunpack.c.h.b16 %v1644
        %v2118 = vunpack.c.l.b16 %v1645
        %v2119 = vunpack.c.h.b16 %v1645
        %v2120 = vunpack.c.l.b16 %v1646
        %v2121 = vunpack.c.h.b16 %v1646
        %v2122 = vunpack.c.l.b16 %v1647
        %v2123 = vunpack.c.h.b16 %v1647
        %v2124 = vunpack.c.l.b16 %v1648
        %v2125 = vunpack.c.h.b16 %v1648
        %v2126 = vunpack.c.l.b16 %v1649
        %v2127 = vunpack.c.h.b16 %v1649
        %v2128 = vunpack.c.l.b16 %v1650
        %v2129 = vunpack.c.h.b16 %v1650
        %v2130 = vunpack.c.l.b16 %v1651
        %v2131 = vunpack.c.h.b16 %v1651
        %v2132 = vunpack.c.l.b16 %v1652
        %v2133 = vunpack.c.h.b16 %v1652
        %v2134 = vpack.c.b16 %v2060, %v2058
        %v2135 = vpack.c.b16 %v2061, %v2059
        %v2136 = vpack.c.b16 %v2064, %v2062
        %v2137 = vpack.c.b16 %v2065, %v2063
        %v2138 = vpack.c.b16 %v2068, %v2066
        %v2139 = vpack.c.b16 %v2069, %v2067
        %v2140 = vpack.c.b16 %v2072, %v2070
        %v2141 = vpack.c.b16 %v2073, %v2071
        %v2142 = vpack.c.b16 %v2076, %v2074
        %v2143 = vpack.c.b16 %v2077, %v2075
        %v2144 = vpack.c.b16 %v2080, %v2078
        %v2145 = vpack.c.b16 %v2081, %v2079
        %v2146 = vpack.c.b16 %v2084, %v2082
        %v2147 = vpack.c.b16 %v2085, %v2083
        %v2148 = vpack.c.b16 %v2088, %v2086
        %v2149 = vpack.c.b16 %v2089, %v2087
        %v2150 = vpack.c.b16 %v2092, %v2090
        %v2151 = vpack.c.b16 %v2093, %v2091
        %v2152 = vpack.c.b16 %v2096, %v2094
        %v2153 = vpack.c.b16 %v2097, %v2095
        %v2154 = vpack.c.b16 %v2100, %v2098
        %v2155 = vpack.c.b16 %v2101, %v2099
        %v2156 = vpack.c.b16 %v2104, %v2102
        %v2157 = vpack.c.b16 %v2105, %v2103
        %v2158 = vpack.c.b16 %v2108, %v2106
        %v2159 = vpack.c.b16 %v2109, %v2107
        %v2160 = vpack.c.b16 %v2112, %v2110
        %v2161 = vpack.c.b16 %v2113, %v2111
        %v2162 = vpack.c.b16 %v2116, %v2114
        %v2163 = vpack.c.b16 %v2117, %v2115
        %v2164 = vpack.c.b16 %v2120, %v2118
        %v2165 = vpack.c.b16 %v2121, %v2119
        %v2166 = vpack.c.b16 %v2124, %v2122
        %v2167 = vpack.c.b16 %v2125, %v2123
        %v2168 = vpack.c.b16 %v2128, %v2126
        %v2169 = vpack.c.b16 %v2129, %v2127
        %v2170 = vpack.c.b16 %v2132, %v2130
        %v2171 = vpack.c.b16 %v2133, %v2131
        %v2209 = vsel %vm792, %v2012, 0
        %v2212 = vsel %vm792, %v2015, 0
        %v2215 = vsel %vm799, %v2170, 0
        %v2218 = vsel %vm799, %v2171, 0
        %2220 = vmatpush.bf16.msra.mxu0 %v2148
        %2221 = vmatpush.bf16.msra.mxu0 %v2146
        %2222 = vmatpush.bf16.msra.mxu0 %v2144
        %2223 = vmatpush.bf16.msra.mxu0 %v2142
        %2224 = vmatpush.bf16.msra.mxu0 %v2140
        %2225 = vmatpush.bf16.msra.mxu0 %v2138
        %2226 = vmatpush.bf16.msra.mxu0 %v2136
        %2227 = vmatpush.bf16.msra.mxu0 %v2134
        %2228 = vmatmul.bf16.gmra.mxu0 %v2004
        %v2229 = vpop.f32.mrf.mxu0
        %v2230 = vadd.f32 %v1934, %v2229
        %v2231 = vpop.f32.mrf.mxu0
        %v2232 = vadd.f32 %v1936, %v2231
        %2233 = vmatmul.bf16.gmra.mxu0 %v2013
        %v2234 = vpop.f32.mrf.mxu0
        %v2235 = vadd.f32 %v1939, %v2234
        %v2236 = vpop.f32.mrf.mxu0
        %v2237 = vadd.f32 %v1941, %v2236
        %2238 = vdwg.mxu0
        %2239 = vmatpush.bf16.msra.mxu0 %v2164
        %2240 = vmatpush.bf16.msra.mxu0 %v2162
        %2241 = vmatpush.bf16.msra.mxu0 %v2160
        %2242 = vmatpush.bf16.msra.mxu0 %v2158
        %2243 = vmatpush.bf16.msra.mxu0 %v2156
        %2244 = vmatpush.bf16.msra.mxu0 %v2154
        %2245 = vmatpush.bf16.msra.mxu0 %v2152
        %2246 = vmatpush.bf16.msra.mxu0 %v2150
        %2247 = vmatmul.bf16.gmra.mxu0 %v2008
        %v2248 = vpop.f32.mrf.mxu0
        %v2249 = vadd.f32 %v2230, %v2248
        %v2250 = vpop.f32.mrf.mxu0
        %v2251 = vadd.f32 %v2232, %v2250
        %2252 = vmatmul.bf16.gmra.mxu0 %v2014
        %v2253 = vpop.f32.mrf.mxu0
        %v2254 = vadd.f32 %v2235, %v2253
        %v2255 = vpop.f32.mrf.mxu0
        %v2256 = vadd.f32 %v2237, %v2255
        %2257 = vdwg.mxu0
        %2258 = vmatpush.bf16.msra.mxu0 0
        %2259 = vmatpush.bf16.msra.mxu0 0
        %2260 = vmatpush.bf16.msra.mxu0 0
        %2261 = vmatpush.bf16.msra.mxu0 0
        %2262 = vmatpush.bf16.msra.mxu0 0
        %2263 = vmatpush.bf16.msra.mxu0 %v2215
        %2264 = vmatpush.bf16.msra.mxu0 %v2168
        %2265 = vmatpush.bf16.msra.mxu0 %v2166
        %2266 = vmatmul.bf16.gmra.mxu0 %v2209
        %v2267 = vpop.f32.mrf.mxu0
        %v2268 = vadd.f32 %v2249, %v2267
        %v2269 = vpop.f32.mrf.mxu0
        %v2270 = vadd.f32 %v2251, %v2269
        %2271 = vmatmul.bf16.gmra.mxu0 %v2212
        %v2272 = vpop.f32.mrf.mxu0
        %v2273 = vadd.f32 %v2254, %v2272
        %v2274 = vpop.f32.mrf.mxu0
        %v2275 = vadd.f32 %v2256, %v2274
        %2276 = vdwg.mxu0
        %2277 = vmatpush.bf16.msra.mxu0 %v2149
        %2278 = vmatpush.bf16.msra.mxu0 %v2147
        %2279 = vmatpush.bf16.msra.mxu0 %v2145
        %2280 = vmatpush.bf16.msra.mxu0 %v2143
        %2281 = vmatpush.bf16.msra.mxu0 %v2141
        %2282 = vmatpush.bf16.msra.mxu0 %v2139
        %2283 = vmatpush.bf16.msra.mxu0 %v2137
        %2284 = vmatpush.bf16.msra.mxu0 %v2135
        %2285 = vmatmul.bf16.gmra.mxu0 %v2004
        %v2286 = vpop.f32.mrf.mxu0
        %v2287 = vadd.f32 %v1991, %v2286
        %v2288 = vpop.f32.mrf.mxu0
        %v2289 = vadd.f32 %v1993, %v2288
        %2290 = vmatmul.bf16.gmra.mxu0 %v2013
        %v2291 = vpop.f32.mrf.mxu0
        %v2292 = vadd.f32 %v1996, %v2291
        %v2293 = vpop.f32.mrf.mxu0
        %v2294 = vadd.f32 %v1998, %v2293
        %2295 = vdwg.mxu0
        %2296 = vmatpush.bf16.msra.mxu0 %v2165
        %2297 = vmatpush.bf16.msra.mxu0 %v2163
        %2298 = vmatpush.bf16.msra.mxu0 %v2161
        %2299 = vmatpush.bf16.msra.mxu0 %v2159
        %2300 = vmatpush.bf16.msra.mxu0 %v2157
        %2301 = vmatpush.bf16.msra.mxu0 %v2155
        %2302 = vmatpush.bf16.msra.mxu0 %v2153
        %2303 = vmatpush.bf16.msra.mxu0 %v2151
        %2304 = vmatmul.bf16.gmra.mxu0 %v2008
        %v2305 = vpop.f32.mrf.mxu0
        %v2306 = vadd.f32 %v2287, %v2305
        %v2307 = vpop.f32.mrf.mxu0
        %v2308 = vadd.f32 %v2289, %v2307
        %2309 = vmatmul.bf16.gmra.mxu0 %v2014
        %v2310 = vpop.f32.mrf.mxu0
        %v2311 = vadd.f32 %v2292, %v2310
        %v2312 = vpop.f32.mrf.mxu0
        %v2313 = vadd.f32 %v2294, %v2312
        %2314 = vdwg.mxu0
        %2315 = vmatpush.bf16.msra.mxu0 0
        %2316 = vmatpush.bf16.msra.mxu0 0
        %2317 = vmatpush.bf16.msra.mxu0 0
        %2318 = vmatpush.bf16.msra.mxu0 0
        %2319 = vmatpush.bf16.msra.mxu0 0
        %2320 = vmatpush.bf16.msra.mxu0 %v2218
        %2321 = vmatpush.bf16.msra.mxu0 %v2169
        %2322 = vmatpush.bf16.msra.mxu0 %v2167
        %2323 = vmatmul.bf16.gmra.mxu0 %v2209
        %v2324 = vpop.f32.mrf.mxu0
        %v2325 = vadd.f32 %v2306, %v2324
        %v2326 = vpop.f32.mrf.mxu0
        %v2327 = vadd.f32 %v2308, %v2326
        %2328 = vmatmul.bf16.gmra.mxu0 %v2212
        %v2329 = vpop.f32.mrf.mxu0
        %v2330 = vadd.f32 %v2311, %v2329
        %v2331 = vpop.f32.mrf.mxu0
        %v2332 = vadd.f32 %v2313, %v2331
        %2333 = vdwg.mxu0
        %s2334 = scalar_lea.vmem %s4, 608
        %v2335 = vld [vmem:[%s2334] sm:$0xff]
        %v2336 = vld [vmem:[%s2334 + $0x8] sm:$0xff]
        %v2337 = vld [vmem:[%s2334 + $0x10] sm:$0xff]
        %v2338 = vld [vmem:[%s2334 + $0x18] sm:$0xff]
        %v2339 = vld [vmem:[%s2334 + $0x20] sm:$0xff]
        %v2340 = vld [vmem:[%s2334 + $0x28] sm:$0xff]
        %v2341 = vld [vmem:[%s2334 + $0x30] sm:$0xff]
        %v2342 = vld [vmem:[%s2334 + $0x38] sm:$0xff]
        %v2343 = vld [vmem:[%s2334 + $0x40] sm:$0xff]
        %v2344 = vld [vmem:[%s2334 + $0x48] sm:$0xff]
        %v2345 = vld [vmem:[%s2334 + $0x50] sm:$0xff]
        %v2346 = vld [vmem:[%s2334 + $0x58] sm:$0xff]
        %v2347 = vld [vmem:[%s2334 + $0x60] sm:$0xff]
        %v2348 = vld [vmem:[%s2334 + $0x68] sm:$0xff]
        %v2349 = vld [vmem:[%s2334 + $0x70] sm:$0xff]
        %v2350 = vld [vmem:[%s2334 + $0x78] sm:$0xff]
        %v2351 = vld [vmem:[%s2334 + $0x80] sm:$0xff]
        %v2352 = vld [vmem:[%s2334 + $0x88] sm:$0xff]
        %v2353 = vld [vmem:[%s2334 + $0x90] sm:$0xff]
        %v2354 = vld [vmem:[%s2334 + $0x98] sm:$0xff]
        %v2355 = vld [vmem:[%s2334 + $0xa0] sm:$0xff]
        %v2356 = vld [vmem:[%s2334 + $0xa8] sm:$0xff]
        %v2357 = vld [vmem:[%s2334 + $0xb0] sm:$0xff]
        %v2358 = vld [vmem:[%s2334 + $0xb8] sm:$0xff]
        %v2359 = vld [vmem:[%s2334 + $0xc0] sm:$0xff]
        %v2360 = vld [vmem:[%s2334 + $0xc8] sm:$0xff]
        %v2361 = vld [vmem:[%s2334 + $0xd0] sm:$0xff]
        %v2362 = vld [vmem:[%s2334 + $0xd8] sm:$0xff]
        %v2363 = vld [vmem:[%s2334 + $0xe0] sm:$0xff]
        %v2364 = vld [vmem:[%s2334 + $0xe8] sm:$0xff]
        %v2365 = vld [vmem:[%s2334 + $0xf0] sm:$0xff]
        %v2366 = vld [vmem:[%s2334 + $0xf8] sm:$0xff]
        %v2367 = vld [vmem:[%s2334 + $0x100] sm:$0xff]
        %v2368 = vld [vmem:[%s2334 + $0x108] sm:$0xff]
        %v2369 = vld [vmem:[%s2334 + $0x110] sm:$0xff]
        %v2370 = vld [vmem:[%s2334 + $0x118] sm:$0xff]
        %v2371 = vld [vmem:[%s2334 + $0x120] sm:$0xff]
        %v2372 = vld [vmem:[%s2334 + $0x128] sm:$0x33]
        %v2411 = vunpack.c.l.b16 %v2335
        %v2412 = vunpack.c.h.b16 %v2335
        %v2413 = vunpack.c.l.b16 %v2336
        %v2414 = vunpack.c.h.b16 %v2336
        %v2415 = vunpack.c.l.b16 %v2337
        %v2416 = vunpack.c.h.b16 %v2337
        %v2417 = vunpack.c.l.b16 %v2338
        %v2418 = vunpack.c.h.b16 %v2338
        %v2419 = vunpack.c.l.b16 %v2339
        %v2420 = vunpack.c.h.b16 %v2339
        %v2421 = vunpack.c.l.b16 %v2340
        %v2422 = vunpack.c.h.b16 %v2340
        %v2423 = vunpack.c.l.b16 %v2341
        %v2424 = vunpack.c.h.b16 %v2341
        %v2425 = vunpack.c.l.b16 %v2342
        %v2426 = vunpack.c.h.b16 %v2342
        %v2427 = vunpack.c.l.b16 %v2343
        %v2428 = vunpack.c.h.b16 %v2343
        %v2429 = vunpack.c.l.b16 %v2344
        %v2430 = vunpack.c.h.b16 %v2344
        %v2431 = vunpack.c.l.b16 %v2345
        %v2432 = vunpack.c.h.b16 %v2345
        %v2433 = vunpack.c.l.b16 %v2346
        %v2434 = vunpack.c.h.b16 %v2346
        %v2435 = vunpack.c.l.b16 %v2347
        %v2436 = vunpack.c.h.b16 %v2347
        %v2437 = vunpack.c.l.b16 %v2348
        %v2438 = vunpack.c.h.b16 %v2348
        %v2439 = vunpack.c.l.b16 %v2349
        %v2440 = vunpack.c.h.b16 %v2349
        %v2441 = vunpack.c.l.b16 %v2350
        %v2442 = vunpack.c.h.b16 %v2350
        %v2443 = vunpack.c.l.b16 %v2351
        %v2444 = vunpack.c.h.b16 %v2351
        %v2445 = vunpack.c.l.b16 %v2352
        %v2446 = vunpack.c.h.b16 %v2352
        %v2447 = vunpack.c.l.b16 %v2353
        %v2448 = vunpack.c.h.b16 %v2353
        %v2449 = vunpack.c.l.b16 %v2354
        %v2450 = vunpack.c.h.b16 %v2354
        %v2451 = vunpack.c.l.b16 %v2355
        %v2452 = vunpack.c.h.b16 %v2355
        %v2453 = vunpack.c.l.b16 %v2356
        %v2454 = vunpack.c.h.b16 %v2356
        %v2455 = vunpack.c.l.b16 %v2357
        %v2456 = vunpack.c.h.b16 %v2357
        %v2457 = vunpack.c.l.b16 %v2358
        %v2458 = vunpack.c.h.b16 %v2358
        %v2459 = vunpack.c.l.b16 %v2359
        %v2460 = vunpack.c.h.b16 %v2359
        %v2461 = vunpack.c.l.b16 %v2360
        %v2462 = vunpack.c.h.b16 %v2360
        %v2463 = vunpack.c.l.b16 %v2361
        %v2464 = vunpack.c.h.b16 %v2361
        %v2465 = vunpack.c.l.b16 %v2362
        %v2466 = vunpack.c.h.b16 %v2362
        %v2467 = vunpack.c.l.b16 %v2363
        %v2468 = vunpack.c.h.b16 %v2363
        %v2469 = vunpack.c.l.b16 %v2364
        %v2470 = vunpack.c.h.b16 %v2364
        %v2471 = vunpack.c.l.b16 %v2365
        %v2472 = vunpack.c.h.b16 %v2365
        %v2473 = vunpack.c.l.b16 %v2366
        %v2474 = vunpack.c.h.b16 %v2366
        %v2475 = vunpack.c.l.b16 %v2367
        %v2476 = vunpack.c.h.b16 %v2367
        %v2477 = vunpack.c.l.b16 %v2368
        %v2478 = vunpack.c.h.b16 %v2368
        %v2479 = vunpack.c.l.b16 %v2369
        %v2480 = vunpack.c.h.b16 %v2369
        %v2481 = vunpack.c.l.b16 %v2370
        %v2482 = vunpack.c.h.b16 %v2370
        %v2483 = vunpack.c.l.b16 %v2371
        %v2484 = vunpack.c.h.b16 %v2371
        %v2485 = vunpack.c.l.b16 %v2372
        %v2486 = vunpack.c.h.b16 %v2372
        %v2487 = vpack.c.b16 %v2413, %v2411
        %v2488 = vpack.c.b16 %v2414, %v2412
        %v2489 = vpack.c.b16 %v2417, %v2415
        %v2490 = vpack.c.b16 %v2418, %v2416
        %v2491 = vpack.c.b16 %v2421, %v2419
        %v2492 = vpack.c.b16 %v2422, %v2420
        %v2493 = vpack.c.b16 %v2425, %v2423
        %v2494 = vpack.c.b16 %v2426, %v2424
        %v2495 = vpack.c.b16 %v2429, %v2427
        %v2496 = vpack.c.b16 %v2430, %v2428
        %v2497 = vpack.c.b16 %v2433, %v2431
        %v2498 = vpack.c.b16 %v2434, %v2432
        %v2499 = vpack.c.b16 %v2437, %v2435
        %v2500 = vpack.c.b16 %v2438, %v2436
        %v2501 = vpack.c.b16 %v2441, %v2439
        %v2502 = vpack.c.b16 %v2442, %v2440
        %v2503 = vpack.c.b16 %v2445, %v2443
        %v2504 = vpack.c.b16 %v2446, %v2444
        %v2505 = vpack.c.b16 %v2449, %v2447
        %v2506 = vpack.c.b16 %v2450, %v2448
        %v2507 = vpack.c.b16 %v2453, %v2451
        %v2508 = vpack.c.b16 %v2454, %v2452
        %v2509 = vpack.c.b16 %v2457, %v2455
        %v2510 = vpack.c.b16 %v2458, %v2456
        %v2511 = vpack.c.b16 %v2461, %v2459
        %v2512 = vpack.c.b16 %v2462, %v2460
        %v2513 = vpack.c.b16 %v2465, %v2463
        %v2514 = vpack.c.b16 %v2466, %v2464
        %v2515 = vpack.c.b16 %v2469, %v2467
        %v2516 = vpack.c.b16 %v2470, %v2468
        %v2517 = vpack.c.b16 %v2473, %v2471
        %v2518 = vpack.c.b16 %v2474, %v2472
        %v2519 = vpack.c.b16 %v2477, %v2475
        %v2520 = vpack.c.b16 %v2478, %v2476
        %v2521 = vpack.c.b16 %v2481, %v2479
        %v2522 = vpack.c.b16 %v2482, %v2480
        %v2523 = vpack.c.b16 %v2485, %v2483
        %v2524 = vpack.c.b16 %v2486, %v2484
        %v2562 = vsel %vm799, %v2523, 0
        %v2565 = vsel %vm799, %v2524, 0
        %2567 = vmatpush.bf16.msra.mxu0 %v2501
        %2568 = vmatpush.bf16.msra.mxu0 %v2499
        %2569 = vmatpush.bf16.msra.mxu0 %v2497
        %2570 = vmatpush.bf16.msra.mxu0 %v2495
        %2571 = vmatpush.bf16.msra.mxu0 %v2493
        %2572 = vmatpush.bf16.msra.mxu0 %v2491
        %2573 = vmatpush.bf16.msra.mxu0 %v2489
        %2574 = vmatpush.bf16.msra.mxu0 %v2487
        %2575 = vmatmul.bf16.gmra.mxu0 %v565
        %v2576 = vpop.f32.mrf.mxu0
        %v2577 = vadd.f32 0.0, %v2576
        %v2578 = vpop.f32.mrf.mxu0
        %v2579 = vadd.f32 0.0, %v2578
        %2580 = vmatmul.bf16.gmra.mxu0 %v564
        %v2581 = vpop.f32.mrf.mxu0
        %v2582 = vadd.f32 0.0, %v2581
        %v2583 = vpop.f32.mrf.mxu0
        %v2584 = vadd.f32 0.0, %v2583
        %2585 = vdwg.mxu0
        %2586 = vmatpush.bf16.msra.mxu0 %v2517
        %2587 = vmatpush.bf16.msra.mxu0 %v2515
        %2588 = vmatpush.bf16.msra.mxu0 %v2513
        %2589 = vmatpush.bf16.msra.mxu0 %v2511
        %2590 = vmatpush.bf16.msra.mxu0 %v2509
        %2591 = vmatpush.bf16.msra.mxu0 %v2507
        %2592 = vmatpush.bf16.msra.mxu0 %v2505
        %2593 = vmatpush.bf16.msra.mxu0 %v2503
        %2594 = vmatmul.bf16.gmra.mxu0 %v582
        %v2595 = vpop.f32.mrf.mxu0
        %v2596 = vadd.f32 %v2577, %v2595
        %v2597 = vpop.f32.mrf.mxu0
        %v2598 = vadd.f32 %v2579, %v2597
        %2599 = vmatmul.bf16.gmra.mxu0 %v581
        %v2600 = vpop.f32.mrf.mxu0
        %v2601 = vadd.f32 %v2582, %v2600
        %v2602 = vpop.f32.mrf.mxu0
        %v2603 = vadd.f32 %v2584, %v2602
        %2604 = vdwg.mxu0
        %2605 = vmatpush.bf16.msra.mxu0 0
        %2606 = vmatpush.bf16.msra.mxu0 0
        %2607 = vmatpush.bf16.msra.mxu0 0
        %2608 = vmatpush.bf16.msra.mxu0 0
        %2609 = vmatpush.bf16.msra.mxu0 0
        %2610 = vmatpush.bf16.msra.mxu0 %v2562
        %2611 = vmatpush.bf16.msra.mxu0 %v2521
        %2612 = vmatpush.bf16.msra.mxu0 %v2519
        %2613 = vmatmul.bf16.gmra.mxu0 %v794
        %v2614 = vpop.f32.mrf.mxu0
        %v2615 = vadd.f32 %v2596, %v2614
        %v2616 = vpop.f32.mrf.mxu0
        %v2617 = vadd.f32 %v2598, %v2616
        %2618 = vmatmul.bf16.gmra.mxu0 %v797
        %v2619 = vpop.f32.mrf.mxu0
        %v2620 = vadd.f32 %v2601, %v2619
        %v2621 = vpop.f32.mrf.mxu0
        %v2622 = vadd.f32 %v2603, %v2621
        %2623 = vdwg.mxu0
        %2624 = vmatpush.bf16.msra.mxu0 %v2502
        %2625 = vmatpush.bf16.msra.mxu0 %v2500
        %2626 = vmatpush.bf16.msra.mxu0 %v2498
        %2627 = vmatpush.bf16.msra.mxu0 %v2496
        %2628 = vmatpush.bf16.msra.mxu0 %v2494
        %2629 = vmatpush.bf16.msra.mxu0 %v2492
        %2630 = vmatpush.bf16.msra.mxu0 %v2490
        %2631 = vmatpush.bf16.msra.mxu0 %v2488
        %2632 = vmatmul.bf16.gmra.mxu0 %v565
        %v2633 = vpop.f32.mrf.mxu0
        %v2634 = vadd.f32 0.0, %v2633
        %v2635 = vpop.f32.mrf.mxu0
        %v2636 = vadd.f32 0.0, %v2635
        %2637 = vmatmul.bf16.gmra.mxu0 %v564
        %v2638 = vpop.f32.mrf.mxu0
        %v2639 = vadd.f32 0.0, %v2638
        %v2640 = vpop.f32.mrf.mxu0
        %v2641 = vadd.f32 0.0, %v2640
        %2642 = vdwg.mxu0
        %2643 = vmatpush.bf16.msra.mxu0 %v2518
        %2644 = vmatpush.bf16.msra.mxu0 %v2516
        %2645 = vmatpush.bf16.msra.mxu0 %v2514
        %2646 = vmatpush.bf16.msra.mxu0 %v2512
        %2647 = vmatpush.bf16.msra.mxu0 %v2510
        %2648 = vmatpush.bf16.msra.mxu0 %v2508
        %2649 = vmatpush.bf16.msra.mxu0 %v2506
        %2650 = vmatpush.bf16.msra.mxu0 %v2504
        %2651 = vmatmul.bf16.gmra.mxu0 %v582
        %v2652 = vpop.f32.mrf.mxu0
        %v2653 = vadd.f32 %v2634, %v2652
        %v2654 = vpop.f32.mrf.mxu0
        %v2655 = vadd.f32 %v2636, %v2654
        %2656 = vmatmul.bf16.gmra.mxu0 %v581
        %v2657 = vpop.f32.mrf.mxu0
        %v2658 = vadd.f32 %v2639, %v2657
        %v2659 = vpop.f32.mrf.mxu0
        %v2660 = vadd.f32 %v2641, %v2659
        %2661 = vdwg.mxu0
        %2662 = vmatpush.bf16.msra.mxu0 0
        %2663 = vmatpush.bf16.msra.mxu0 0
        %2664 = vmatpush.bf16.msra.mxu0 0
        %2665 = vmatpush.bf16.msra.mxu0 0
        %2666 = vmatpush.bf16.msra.mxu0 0
        %2667 = vmatpush.bf16.msra.mxu0 %v2565
        %2668 = vmatpush.bf16.msra.mxu0 %v2522
        %2669 = vmatpush.bf16.msra.mxu0 %v2520
        %2670 = vmatmul.bf16.gmra.mxu0 %v794
        %v2671 = vpop.f32.mrf.mxu0
        %v2672 = vadd.f32 %v2653, %v2671
        %v2673 = vpop.f32.mrf.mxu0
        %v2674 = vadd.f32 %v2655, %v2673
        %2675 = vmatmul.bf16.gmra.mxu0 %v797
        %v2676 = vpop.f32.mrf.mxu0
        %v2677 = vadd.f32 %v2658, %v2676
        %v2678 = vpop.f32.mrf.mxu0
        %v2679 = vadd.f32 %v2660, %v2678
        %2680 = vdwg.mxu0
        %v2681 = vadd.f32 %v2268, %v2615
        %v2682 = vadd.f32 %v2325, %v2672
        %v2683 = vadd.f32 %v2270, %v2617
        %v2684 = vadd.f32 %v2327, %v2674
        %v2685 = vadd.f32 %v2273, %v2620
        %v2686 = vadd.f32 %v2330, %v2677
        %v2687 = vadd.f32 %v2275, %v2622
        %v2688 = vadd.f32 %v2332, %v2679
        %s2689 = scalar_lea.vmem %s4, 912
        %v2690 = vld [vmem:[%s2689] sm:$0xff]
        %v2691 = vld [vmem:[%s2689 + $0x8] sm:$0xff]
        %v2692 = vld [vmem:[%s2689 + $0x10] sm:$0xff]
        %v2693 = vld [vmem:[%s2689 + $0x18] sm:$0xff]
        %v2694 = vld [vmem:[%s2689 + $0x20] sm:$0xff]
        %v2695 = vld [vmem:[%s2689 + $0x28] sm:$0xff]
        %v2696 = vld [vmem:[%s2689 + $0x30] sm:$0xff]
        %v2697 = vld [vmem:[%s2689 + $0x38] sm:$0xff]
        %v2698 = vld [vmem:[%s2689 + $0x40] sm:$0xff]
        %v2699 = vld [vmem:[%s2689 + $0x48] sm:$0xff]
        %v2700 = vld [vmem:[%s2689 + $0x50] sm:$0xff]
        %v2701 = vld [vmem:[%s2689 + $0x58] sm:$0xff]
        %v2702 = vld [vmem:[%s2689 + $0x60] sm:$0xff]
        %v2703 = vld [vmem:[%s2689 + $0x68] sm:$0xff]
        %v2704 = vld [vmem:[%s2689 + $0x70] sm:$0xff]
        %v2705 = vld [vmem:[%s2689 + $0x78] sm:$0xff]
        %v2706 = vld [vmem:[%s2689 + $0x80] sm:$0xff]
        %v2707 = vld [vmem:[%s2689 + $0x88] sm:$0xff]
        %v2708 = vld [vmem:[%s2689 + $0x90] sm:$0xff]
        %v2709 = vld [vmem:[%s2689 + $0x98] sm:$0xff]
        %v2710 = vld [vmem:[%s2689 + $0xa0] sm:$0xff]
        %v2711 = vld [vmem:[%s2689 + $0xa8] sm:$0xff]
        %v2712 = vld [vmem:[%s2689 + $0xb0] sm:$0xff]
        %v2713 = vld [vmem:[%s2689 + $0xb8] sm:$0xff]
        %v2714 = vld [vmem:[%s2689 + $0xc0] sm:$0xff]
        %v2715 = vld [vmem:[%s2689 + $0xc8] sm:$0xff]
        %v2716 = vld [vmem:[%s2689 + $0xd0] sm:$0xff]
        %v2717 = vld [vmem:[%s2689 + $0xd8] sm:$0xff]
        %v2718 = vld [vmem:[%s2689 + $0xe0] sm:$0xff]
        %v2719 = vld [vmem:[%s2689 + $0xe8] sm:$0xff]
        %v2720 = vld [vmem:[%s2689 + $0xf0] sm:$0xff]
        %v2721 = vld [vmem:[%s2689 + $0xf8] sm:$0xff]
        %v2722 = vld [vmem:[%s2689 + $0x100] sm:$0xff]
        %v2723 = vld [vmem:[%s2689 + $0x108] sm:$0xff]
        %v2724 = vld [vmem:[%s2689 + $0x110] sm:$0xff]
        %v2725 = vld [vmem:[%s2689 + $0x118] sm:$0xff]
        %v2726 = vld [vmem:[%s2689 + $0x120] sm:$0xff]
        %v2727 = vld [vmem:[%s2689 + $0x128] sm:$0x33]
        %v2766 = vunpack.c.l.b16 %v2690
        %v2767 = vunpack.c.h.b16 %v2690
        %v2768 = vunpack.c.l.b16 %v2691
        %v2769 = vunpack.c.h.b16 %v2691
        %v2770 = vunpack.c.l.b16 %v2692
        %v2771 = vunpack.c.h.b16 %v2692
        %v2772 = vunpack.c.l.b16 %v2693
        %v2773 = vunpack.c.h.b16 %v2693
        %v2774 = vunpack.c.l.b16 %v2694
        %v2775 = vunpack.c.h.b16 %v2694
        %v2776 = vunpack.c.l.b16 %v2695
        %v2777 = vunpack.c.h.b16 %v2695
        %v2778 = vunpack.c.l.b16 %v2696
        %v2779 = vunpack.c.h.b16 %v2696
        %v2780 = vunpack.c.l.b16 %v2697
        %v2781 = vunpack.c.h.b16 %v2697
        %v2782 = vunpack.c.l.b16 %v2698
        %v2783 = vunpack.c.h.b16 %v2698
        %v2784 = vunpack.c.l.b16 %v2699
        %v2785 = vunpack.c.h.b16 %v2699
        %v2786 = vunpack.c.l.b16 %v2700
        %v2787 = vunpack.c.h.b16 %v2700
        %v2788 = vunpack.c.l.b16 %v2701
        %v2789 = vunpack.c.h.b16 %v2701
        %v2790 = vunpack.c.l.b16 %v2702
        %v2791 = vunpack.c.h.b16 %v2702
        %v2792 = vunpack.c.l.b16 %v2703
        %v2793 = vunpack.c.h.b16 %v2703
        %v2794 = vunpack.c.l.b16 %v2704
        %v2795 = vunpack.c.h.b16 %v2704
        %v2796 = vunpack.c.l.b16 %v2705
        %v2797 = vunpack.c.h.b16 %v2705
        %v2798 = vunpack.c.l.b16 %v2706
        %v2799 = vunpack.c.h.b16 %v2706
        %v2800 = vunpack.c.l.b16 %v2707
        %v2801 = vunpack.c.h.b16 %v2707
        %v2802 = vunpack.c.l.b16 %v2708
        %v2803 = vunpack.c.h.b16 %v2708
        %v2804 = vunpack.c.l.b16 %v2709
        %v2805 = vunpack.c.h.b16 %v2709
        %v2806 = vunpack.c.l.b16 %v2710
        %v2807 = vunpack.c.h.b16 %v2710
        %v2808 = vunpack.c.l.b16 %v2711
        %v2809 = vunpack.c.h.b16 %v2711
        %v2810 = vunpack.c.l.b16 %v2712
        %v2811 = vunpack.c.h.b16 %v2712
        %v2812 = vunpack.c.l.b16 %v2713
        %v2813 = vunpack.c.h.b16 %v2713
        %v2814 = vunpack.c.l.b16 %v2714
        %v2815 = vunpack.c.h.b16 %v2714
        %v2816 = vunpack.c.l.b16 %v2715
        %v2817 = vunpack.c.h.b16 %v2715
        %v2818 = vunpack.c.l.b16 %v2716
        %v2819 = vunpack.c.h.b16 %v2716
        %v2820 = vunpack.c.l.b16 %v2717
        %v2821 = vunpack.c.h.b16 %v2717
        %v2822 = vunpack.c.l.b16 %v2718
        %v2823 = vunpack.c.h.b16 %v2718
        %v2824 = vunpack.c.l.b16 %v2719
        %v2825 = vunpack.c.h.b16 %v2719
        %v2826 = vunpack.c.l.b16 %v2720
        %v2827 = vunpack.c.h.b16 %v2720
        %v2828 = vunpack.c.l.b16 %v2721
        %v2829 = vunpack.c.h.b16 %v2721
        %v2830 = vunpack.c.l.b16 %v2722
        %v2831 = vunpack.c.h.b16 %v2722
        %v2832 = vunpack.c.l.b16 %v2723
        %v2833 = vunpack.c.h.b16 %v2723
        %v2834 = vunpack.c.l.b16 %v2724
        %v2835 = vunpack.c.h.b16 %v2724
        %v2836 = vunpack.c.l.b16 %v2725
        %v2837 = vunpack.c.h.b16 %v2725
        %v2838 = vunpack.c.l.b16 %v2726
        %v2839 = vunpack.c.h.b16 %v2726
        %v2840 = vunpack.c.l.b16 %v2727
        %v2841 = vunpack.c.h.b16 %v2727
        %v2842 = vpack.c.b16 %v2768, %v2766
        %v2843 = vpack.c.b16 %v2769, %v2767
        %v2844 = vpack.c.b16 %v2772, %v2770
        %v2845 = vpack.c.b16 %v2773, %v2771
        %v2846 = vpack.c.b16 %v2776, %v2774
        %v2847 = vpack.c.b16 %v2777, %v2775
        %v2848 = vpack.c.b16 %v2780, %v2778
        %v2849 = vpack.c.b16 %v2781, %v2779
        %v2850 = vpack.c.b16 %v2784, %v2782
        %v2851 = vpack.c.b16 %v2785, %v2783
        %v2852 = vpack.c.b16 %v2788, %v2786
        %v2853 = vpack.c.b16 %v2789, %v2787
        %v2854 = vpack.c.b16 %v2792, %v2790
        %v2855 = vpack.c.b16 %v2793, %v2791
        %v2856 = vpack.c.b16 %v2796, %v2794
        %v2857 = vpack.c.b16 %v2797, %v2795
        %v2858 = vpack.c.b16 %v2800, %v2798
        %v2859 = vpack.c.b16 %v2801, %v2799
        %v2860 = vpack.c.b16 %v2804, %v2802
        %v2861 = vpack.c.b16 %v2805, %v2803
        %v2862 = vpack.c.b16 %v2808, %v2806
        %v2863 = vpack.c.b16 %v2809, %v2807
        %v2864 = vpack.c.b16 %v2812, %v2810
        %v2865 = vpack.c.b16 %v2813, %v2811
        %v2866 = vpack.c.b16 %v2816, %v2814
        %v2867 = vpack.c.b16 %v2817, %v2815
        %v2868 = vpack.c.b16 %v2820, %v2818
        %v2869 = vpack.c.b16 %v2821, %v2819
        %v2870 = vpack.c.b16 %v2824, %v2822
        %v2871 = vpack.c.b16 %v2825, %v2823
        %v2872 = vpack.c.b16 %v2828, %v2826
        %v2873 = vpack.c.b16 %v2829, %v2827
        %v2874 = vpack.c.b16 %v2832, %v2830
        %v2875 = vpack.c.b16 %v2833, %v2831
        %v2876 = vpack.c.b16 %v2836, %v2834
        %v2877 = vpack.c.b16 %v2837, %v2835
        %v2878 = vpack.c.b16 %v2840, %v2838
        %v2879 = vpack.c.b16 %v2841, %v2839
        %v2917 = vsel %vm799, %v2878, 0
        %v2920 = vsel %vm799, %v2879, 0
        %2922 = vmatpush.bf16.msra.mxu0 %v2856
        %2923 = vmatpush.bf16.msra.mxu0 %v2854
        %2924 = vmatpush.bf16.msra.mxu0 %v2852
        %2925 = vmatpush.bf16.msra.mxu0 %v2850
        %2926 = vmatpush.bf16.msra.mxu0 %v2848
        %2927 = vmatpush.bf16.msra.mxu0 %v2846
        %2928 = vmatpush.bf16.msra.mxu0 %v2844
        %2929 = vmatpush.bf16.msra.mxu0 %v2842
        %2930 = vmatmul.bf16.gmra.mxu0 %v1278
        %v2931 = vpop.f32.mrf.mxu0
        %v2932 = vadd.f32 0.0, %v2931
        %v2933 = vpop.f32.mrf.mxu0
        %v2934 = vadd.f32 0.0, %v2933
        %2935 = vmatmul.bf16.gmra.mxu0 %v1277
        %v2936 = vpop.f32.mrf.mxu0
        %v2937 = vadd.f32 0.0, %v2936
        %v2938 = vpop.f32.mrf.mxu0
        %v2939 = vadd.f32 0.0, %v2938
        %2940 = vdwg.mxu0
        %2941 = vmatpush.bf16.msra.mxu0 %v2872
        %2942 = vmatpush.bf16.msra.mxu0 %v2870
        %2943 = vmatpush.bf16.msra.mxu0 %v2868
        %2944 = vmatpush.bf16.msra.mxu0 %v2866
        %2945 = vmatpush.bf16.msra.mxu0 %v2864
        %2946 = vmatpush.bf16.msra.mxu0 %v2862
        %2947 = vmatpush.bf16.msra.mxu0 %v2860
        %2948 = vmatpush.bf16.msra.mxu0 %v2858
        %2949 = vmatmul.bf16.gmra.mxu0 %v1281
        %v2950 = vpop.f32.mrf.mxu0
        %v2951 = vadd.f32 %v2932, %v2950
        %v2952 = vpop.f32.mrf.mxu0
        %v2953 = vadd.f32 %v2934, %v2952
        %2954 = vmatmul.bf16.gmra.mxu0 %v1280
        %v2955 = vpop.f32.mrf.mxu0
        %v2956 = vadd.f32 %v2937, %v2955
        %v2957 = vpop.f32.mrf.mxu0
        %v2958 = vadd.f32 %v2939, %v2957
        %2959 = vdwg.mxu0
        %2960 = vmatpush.bf16.msra.mxu0 0
        %2961 = vmatpush.bf16.msra.mxu0 0
        %2962 = vmatpush.bf16.msra.mxu0 0
        %2963 = vmatpush.bf16.msra.mxu0 0
        %2964 = vmatpush.bf16.msra.mxu0 0
        %2965 = vmatpush.bf16.msra.mxu0 %v2917
        %2966 = vmatpush.bf16.msra.mxu0 %v2876
        %2967 = vmatpush.bf16.msra.mxu0 %v2874
        %2968 = vmatmul.bf16.gmra.mxu0 %v1478
        %v2969 = vpop.f32.mrf.mxu0
        %v2970 = vadd.f32 %v2951, %v2969
        %v2971 = vpop.f32.mrf.mxu0
        %v2972 = vadd.f32 %v2953, %v2971
        %2973 = vmatmul.bf16.gmra.mxu0 %v1481
        %v2974 = vpop.f32.mrf.mxu0
        %v2975 = vadd.f32 %v2956, %v2974
        %v2976 = vpop.f32.mrf.mxu0
        %v2977 = vadd.f32 %v2958, %v2976
        %2978 = vdwg.mxu0
        %2979 = vmatpush.bf16.msra.mxu0 %v2857
        %2980 = vmatpush.bf16.msra.mxu0 %v2855
        %2981 = vmatpush.bf16.msra.mxu0 %v2853
        %2982 = vmatpush.bf16.msra.mxu0 %v2851
        %2983 = vmatpush.bf16.msra.mxu0 %v2849
        %2984 = vmatpush.bf16.msra.mxu0 %v2847
        %2985 = vmatpush.bf16.msra.mxu0 %v2845
        %2986 = vmatpush.bf16.msra.mxu0 %v2843
        %2987 = vmatmul.bf16.gmra.mxu0 %v1278
        %v2988 = vpop.f32.mrf.mxu0
        %v2989 = vadd.f32 0.0, %v2988
        %v2990 = vpop.f32.mrf.mxu0
        %v2991 = vadd.f32 0.0, %v2990
        %2992 = vmatmul.bf16.gmra.mxu0 %v1277
        %v2993 = vpop.f32.mrf.mxu0
        %v2994 = vadd.f32 0.0, %v2993
        %v2995 = vpop.f32.mrf.mxu0
        %v2996 = vadd.f32 0.0, %v2995
        %2997 = vdwg.mxu0
        %2998 = vmatpush.bf16.msra.mxu0 %v2873
        %2999 = vmatpush.bf16.msra.mxu0 %v2871
        %3000 = vmatpush.bf16.msra.mxu0 %v2869
        %3001 = vmatpush.bf16.msra.mxu0 %v2867
        %3002 = vmatpush.bf16.msra.mxu0 %v2865
        %3003 = vmatpush.bf16.msra.mxu0 %v2863
        %3004 = vmatpush.bf16.msra.mxu0 %v2861
        %3005 = vmatpush.bf16.msra.mxu0 %v2859
        %3006 = vmatmul.bf16.gmra.mxu0 %v1281
        %v3007 = vpop.f32.mrf.mxu0
        %v3008 = vadd.f32 %v2989, %v3007
        %v3009 = vpop.f32.mrf.mxu0
        %v3010 = vadd.f32 %v2991, %v3009
        %3011 = vmatmul.bf16.gmra.mxu0 %v1280
        %v3012 = vpop.f32.mrf.mxu0
        %v3013 = vadd.f32 %v2994, %v3012
        %v3014 = vpop.f32.mrf.mxu0
        %v3015 = vadd.f32 %v2996, %v3014
        %3016 = vdwg.mxu0
        %3017 = vmatpush.bf16.msra.mxu0 0
        %3018 = vmatpush.bf16.msra.mxu0 0
        %3019 = vmatpush.bf16.msra.mxu0 0
        %3020 = vmatpush.bf16.msra.mxu0 0
        %3021 = vmatpush.bf16.msra.mxu0 0
        %3022 = vmatpush.bf16.msra.mxu0 %v2920
        %3023 = vmatpush.bf16.msra.mxu0 %v2877
        %3024 = vmatpush.bf16.msra.mxu0 %v2875
        %3025 = vmatmul.bf16.gmra.mxu0 %v1478
        %v3026 = vpop.f32.mrf.mxu0
        %v3027 = vadd.f32 %v3008, %v3026
        %v3028 = vpop.f32.mrf.mxu0
        %v3029 = vadd.f32 %v3010, %v3028
        %3030 = vmatmul.bf16.gmra.mxu0 %v1481
        %v3031 = vpop.f32.mrf.mxu0
        %v3032 = vadd.f32 %v3013, %v3031
        %v3033 = vpop.f32.mrf.mxu0
        %v3034 = vadd.f32 %v3015, %v3033
        %3035 = vdwg.mxu0
        %v3036 = vadd.f32 %v2681, %v2970
        %v3037 = vadd.f32 %v2682, %v3027
        %v3038 = vadd.f32 %v2683, %v2972
        %v3039 = vadd.f32 %v2684, %v3029
        %v3040 = vadd.f32 %v2685, %v2975
        %v3041 = vadd.f32 %v2686, %v3032
        %v3042 = vadd.f32 %v2687, %v2977
        %v3043 = vadd.f32 %v2688, %v3034
        %v3044 = vld [vmem:[%s5] sm:$0x3]
        %v3046 = vperm.slane %v3044, 0
        %v3047 = vperm.slane %v3044, 1
        %v3050 = vadd.f32 %v3036, %v3046
        %v3051 = vadd.f32 %v3037, %v3047
        %v3052 = vadd.f32 %v3038, %v3046
        %v3053 = vadd.f32 %v3039, %v3047
        %v3054 = vadd.f32 %v3040, %v3046
        %v3055 = vadd.f32 %v3041, %v3047
        %v3056 = vadd.f32 %v3042, %v3046
        %v3057 = vadd.f32 %v3043, %v3047
        %v3058 = vld [vmem:[%s6] sm:$0xff]
        %v3059 = vld [vmem:[%s6 + $0x8] sm:$0xff]
        %v3060 = vld [vmem:[%s6 + $0x10] sm:$0xff]
        %v3061 = vld [vmem:[%s6 + $0x18] sm:$0xff]
        %v3062 = vld [vmem:[%s6 + $0x20] sm:$0xff]
        %v3063 = vld [vmem:[%s6 + $0x28] sm:$0xff]
        %v3064 = vld [vmem:[%s6 + $0x30] sm:$0xff]
        %v3065 = vld [vmem:[%s6 + $0x38] sm:$0xff]
        %v3066 = vld [vmem:[%s6 + $0x40] sm:$0xff]
        %v3067 = vld [vmem:[%s6 + $0x48] sm:$0xff]
        %v3068 = vld [vmem:[%s6 + $0x50] sm:$0xff]
        %v3069 = vld [vmem:[%s6 + $0x58] sm:$0xff]
        %v3070 = vld [vmem:[%s6 + $0x60] sm:$0xff]
        %v3071 = vld [vmem:[%s6 + $0x68] sm:$0xff]
        %v3072 = vld [vmem:[%s6 + $0x70] sm:$0xff]
        %v3073 = vld [vmem:[%s6 + $0x78] sm:$0xff]
        %v3074 = vld [vmem:[%s6 + $0x80] sm:$0xff]
        %v3075 = vld [vmem:[%s6 + $0x88] sm:$0xff]
        %v3076 = vld [vmem:[%s6 + $0x90] sm:$0xff]
        %v3077 = vld [vmem:[%s6 + $0x98] sm:$0xff]
        %v3078 = vld [vmem:[%s6 + $0xa0] sm:$0xff]
        %v3079 = vld [vmem:[%s6 + $0xa8] sm:$0xff]
        %v3080 = vld [vmem:[%s6 + $0xb0] sm:$0xff]
        %v3081 = vld [vmem:[%s6 + $0xb8] sm:$0xff]
        %v3082 = vld [vmem:[%s6 + $0xc0] sm:$0xff]
        %v3083 = vld [vmem:[%s6 + $0xc8] sm:$0xff]
        %v3084 = vld [vmem:[%s6 + $0xd0] sm:$0xff]
        %v3085 = vld [vmem:[%s6 + $0xd8] sm:$0xff]
        %v3086 = vld [vmem:[%s6 + $0xe0] sm:$0xff]
        %v3087 = vld [vmem:[%s6 + $0xe8] sm:$0xff]
        %v3088 = vld [vmem:[%s6 + $0xf0] sm:$0xff]
        %v3089 = vld [vmem:[%s6 + $0xf8] sm:$0xff]
        %v3090 = vld [vmem:[%s6 + $0x100] sm:$0xff]
        %v3091 = vld [vmem:[%s6 + $0x108] sm:$0xff]
        %v3092 = vld [vmem:[%s6 + $0x110] sm:$0xff]
        %v3093 = vld [vmem:[%s6 + $0x118] sm:$0xff]
        %v3094 = vld [vmem:[%s6 + $0x120] sm:$0xff]
        %v3095 = vld [vmem:[%s6 + $0x128] sm:$0x33]
        %s3096 = scalar_lea.vmem %s6, 304
        %v3097 = vld [vmem:[%s3096] sm:$0xff]
        %v3098 = vld [vmem:[%s3096 + $0x8] sm:$0xff]
        %v3099 = vld [vmem:[%s3096 + $0x10] sm:$0xff]
        %v3100 = vld [vmem:[%s3096 + $0x18] sm:$0xff]
        %v3101 = vld [vmem:[%s3096 + $0x20] sm:$0xff]
        %v3102 = vld [vmem:[%s3096 + $0x28] sm:$0xff]
        %v3103 = vld [vmem:[%s3096 + $0x30] sm:$0xff]
        %v3104 = vld [vmem:[%s3096 + $0x38] sm:$0xff]
        %v3105 = vld [vmem:[%s3096 + $0x40] sm:$0xff]
        %v3106 = vld [vmem:[%s3096 + $0x48] sm:$0xff]
        %v3107 = vld [vmem:[%s3096 + $0x50] sm:$0xff]
        %v3108 = vld [vmem:[%s3096 + $0x58] sm:$0xff]
        %v3109 = vld [vmem:[%s3096 + $0x60] sm:$0xff]
        %v3110 = vld [vmem:[%s3096 + $0x68] sm:$0xff]
        %v3111 = vld [vmem:[%s3096 + $0x70] sm:$0xff]
        %v3112 = vld [vmem:[%s3096 + $0x78] sm:$0xff]
        %v3113 = vld [vmem:[%s3096 + $0x80] sm:$0xff]
        %v3114 = vld [vmem:[%s3096 + $0x88] sm:$0xff]
        %v3115 = vld [vmem:[%s3096 + $0x90] sm:$0xff]
        %v3116 = vld [vmem:[%s3096 + $0x98] sm:$0xff]
        %v3117 = vld [vmem:[%s3096 + $0xa0] sm:$0xff]
        %v3118 = vld [vmem:[%s3096 + $0xa8] sm:$0xff]
        %v3119 = vld [vmem:[%s3096 + $0xb0] sm:$0xff]
        %v3120 = vld [vmem:[%s3096 + $0xb8] sm:$0xff]
        %v3121 = vld [vmem:[%s3096 + $0xc0] sm:$0xff]
        %v3122 = vld [vmem:[%s3096 + $0xc8] sm:$0xff]
        %v3123 = vld [vmem:[%s3096 + $0xd0] sm:$0xff]
        %v3124 = vld [vmem:[%s3096 + $0xd8] sm:$0xff]
        %v3125 = vld [vmem:[%s3096 + $0xe0] sm:$0xff]
        %v3126 = vld [vmem:[%s3096 + $0xe8] sm:$0xff]
        %v3127 = vld [vmem:[%s3096 + $0xf0] sm:$0xff]
        %v3128 = vld [vmem:[%s3096 + $0xf8] sm:$0xff]
        %v3129 = vld [vmem:[%s3096 + $0x100] sm:$0xff]
        %v3130 = vld [vmem:[%s3096 + $0x108] sm:$0xff]
        %v3131 = vld [vmem:[%s3096 + $0x110] sm:$0xff]
        %v3132 = vld [vmem:[%s3096 + $0x118] sm:$0xff]
        %v3133 = vld [vmem:[%s3096 + $0x120] sm:$0xff]
        %v3134 = vld [vmem:[%s3096 + $0x128] sm:$0x33]
        %v3173 = vunpack.c.l.b16 %v3097
        %v3174 = vunpack.c.h.b16 %v3097
        %v3175 = vunpack.c.l.b16 %v3098
        %v3176 = vunpack.c.h.b16 %v3098
        %v3177 = vunpack.c.l.b16 %v3099
        %v3178 = vunpack.c.h.b16 %v3099
        %v3179 = vunpack.c.l.b16 %v3100
        %v3180 = vunpack.c.h.b16 %v3100
        %v3181 = vunpack.c.l.b16 %v3101
        %v3182 = vunpack.c.h.b16 %v3101
        %v3183 = vunpack.c.l.b16 %v3102
        %v3184 = vunpack.c.h.b16 %v3102
        %v3185 = vunpack.c.l.b16 %v3103
        %v3186 = vunpack.c.h.b16 %v3103
        %v3187 = vunpack.c.l.b16 %v3104
        %v3188 = vunpack.c.h.b16 %v3104
        %v3189 = vunpack.c.l.b16 %v3105
        %v3190 = vunpack.c.h.b16 %v3105
        %v3191 = vunpack.c.l.b16 %v3106
        %v3192 = vunpack.c.h.b16 %v3106
        %v3193 = vunpack.c.l.b16 %v3107
        %v3194 = vunpack.c.h.b16 %v3107
        %v3195 = vunpack.c.l.b16 %v3108
        %v3196 = vunpack.c.h.b16 %v3108
        %v3197 = vunpack.c.l.b16 %v3109
        %v3198 = vunpack.c.h.b16 %v3109
        %v3199 = vunpack.c.l.b16 %v3110
        %v3200 = vunpack.c.h.b16 %v3110
        %v3201 = vunpack.c.l.b16 %v3111
        %v3202 = vunpack.c.h.b16 %v3111
        %v3203 = vunpack.c.l.b16 %v3112
        %v3204 = vunpack.c.h.b16 %v3112
        %v3205 = vunpack.c.l.b16 %v3113
        %v3206 = vunpack.c.h.b16 %v3113
        %v3207 = vunpack.c.l.b16 %v3114
        %v3208 = vunpack.c.h.b16 %v3114
        %v3209 = vunpack.c.l.b16 %v3115
        %v3210 = vunpack.c.h.b16 %v3115
        %v3211 = vunpack.c.l.b16 %v3116
        %v3212 = vunpack.c.h.b16 %v3116
        %v3213 = vunpack.c.l.b16 %v3117
        %v3214 = vunpack.c.h.b16 %v3117
        %v3215 = vunpack.c.l.b16 %v3118
        %v3216 = vunpack.c.h.b16 %v3118
        %v3217 = vunpack.c.l.b16 %v3119
        %v3218 = vunpack.c.h.b16 %v3119
        %v3219 = vunpack.c.l.b16 %v3120
        %v3220 = vunpack.c.h.b16 %v3120
        %v3221 = vunpack.c.l.b16 %v3121
        %v3222 = vunpack.c.h.b16 %v3121
        %v3223 = vunpack.c.l.b16 %v3122
        %v3224 = vunpack.c.h.b16 %v3122
        %v3225 = vunpack.c.l.b16 %v3123
        %v3226 = vunpack.c.h.b16 %v3123
        %v3227 = vunpack.c.l.b16 %v3124
        %v3228 = vunpack.c.h.b16 %v3124
        %v3229 = vunpack.c.l.b16 %v3125
        %v3230 = vunpack.c.h.b16 %v3125
        %v3231 = vunpack.c.l.b16 %v3126
        %v3232 = vunpack.c.h.b16 %v3126
        %v3233 = vunpack.c.l.b16 %v3127
        %v3234 = vunpack.c.h.b16 %v3127
        %v3235 = vunpack.c.l.b16 %v3128
        %v3236 = vunpack.c.h.b16 %v3128
        %v3237 = vunpack.c.l.b16 %v3129
        %v3238 = vunpack.c.h.b16 %v3129
        %v3239 = vunpack.c.l.b16 %v3130
        %v3240 = vunpack.c.h.b16 %v3130
        %v3241 = vunpack.c.l.b16 %v3131
        %v3242 = vunpack.c.h.b16 %v3131
        %v3243 = vunpack.c.l.b16 %v3132
        %v3244 = vunpack.c.h.b16 %v3132
        %v3245 = vunpack.c.l.b16 %v3133
        %v3246 = vunpack.c.h.b16 %v3133
        %v3247 = vunpack.c.l.b16 %v3134
        %v3248 = vunpack.c.h.b16 %v3134
        %v3249 = vpack.c.b16 %v3175, %v3173
        %v3250 = vpack.c.b16 %v3176, %v3174
        %v3251 = vpack.c.b16 %v3179, %v3177
        %v3252 = vpack.c.b16 %v3180, %v3178
        %v3253 = vpack.c.b16 %v3183, %v3181
        %v3254 = vpack.c.b16 %v3184, %v3182
        %v3255 = vpack.c.b16 %v3187, %v3185
        %v3256 = vpack.c.b16 %v3188, %v3186
        %v3257 = vpack.c.b16 %v3191, %v3189
        %v3258 = vpack.c.b16 %v3192, %v3190
        %v3259 = vpack.c.b16 %v3195, %v3193
        %v3260 = vpack.c.b16 %v3196, %v3194
        %v3261 = vpack.c.b16 %v3199, %v3197
        %v3262 = vpack.c.b16 %v3200, %v3198
        %v3263 = vpack.c.b16 %v3203, %v3201
        %v3264 = vpack.c.b16 %v3204, %v3202
        %v3265 = vpack.c.b16 %v3207, %v3205
        %v3266 = vpack.c.b16 %v3208, %v3206
        %v3267 = vpack.c.b16 %v3211, %v3209
        %v3268 = vpack.c.b16 %v3212, %v3210
        %v3269 = vpack.c.b16 %v3215, %v3213
        %v3270 = vpack.c.b16 %v3216, %v3214
        %v3271 = vpack.c.b16 %v3219, %v3217
        %v3272 = vpack.c.b16 %v3220, %v3218
        %v3273 = vpack.c.b16 %v3223, %v3221
        %v3274 = vpack.c.b16 %v3224, %v3222
        %v3275 = vpack.c.b16 %v3227, %v3225
        %v3276 = vpack.c.b16 %v3228, %v3226
        %v3277 = vpack.c.b16 %v3231, %v3229
        %v3278 = vpack.c.b16 %v3232, %v3230
        %v3279 = vpack.c.b16 %v3235, %v3233
        %v3280 = vpack.c.b16 %v3236, %v3234
        %v3281 = vpack.c.b16 %v3239, %v3237
        %v3282 = vpack.c.b16 %v3240, %v3238
        %v3283 = vpack.c.b16 %v3243, %v3241
        %v3284 = vpack.c.b16 %v3244, %v3242
        %v3285 = vpack.c.b16 %v3247, %v3245
        %v3286 = vpack.c.b16 %v3248, %v3246
        %v3324 = vsel %vm799, %v3285, 0
        %v3327 = vsel %vm799, %v3286, 0
        %3329 = vmatpush.bf16.msra.mxu0 %v3263
        %3330 = vmatpush.bf16.msra.mxu0 %v3261
        %3331 = vmatpush.bf16.msra.mxu0 %v3259
        %3332 = vmatpush.bf16.msra.mxu0 %v3257
        %3333 = vmatpush.bf16.msra.mxu0 %v3255
        %3334 = vmatpush.bf16.msra.mxu0 %v3253
        %3335 = vmatpush.bf16.msra.mxu0 %v3251
        %3336 = vmatpush.bf16.msra.mxu0 %v3249
        %3337 = vmatmul.bf16.gmra.mxu0 %v2004
        %v3338 = vpop.f32.mrf.mxu0
        %v3339 = vadd.f32 0.0, %v3338
        %v3340 = vpop.f32.mrf.mxu0
        %v3341 = vadd.f32 0.0, %v3340
        %3342 = vmatmul.bf16.gmra.mxu0 %v2013
        %v3343 = vpop.f32.mrf.mxu0
        %v3344 = vadd.f32 0.0, %v3343
        %v3345 = vpop.f32.mrf.mxu0
        %v3346 = vadd.f32 0.0, %v3345
        %3347 = vdwg.mxu0
        %3348 = vmatpush.bf16.msra.mxu0 %v3279
        %3349 = vmatpush.bf16.msra.mxu0 %v3277
        %3350 = vmatpush.bf16.msra.mxu0 %v3275
        %3351 = vmatpush.bf16.msra.mxu0 %v3273
        %3352 = vmatpush.bf16.msra.mxu0 %v3271
        %3353 = vmatpush.bf16.msra.mxu0 %v3269
        %3354 = vmatpush.bf16.msra.mxu0 %v3267
        %3355 = vmatpush.bf16.msra.mxu0 %v3265
        %3356 = vmatmul.bf16.gmra.mxu0 %v2008
        %v3357 = vpop.f32.mrf.mxu0
        %v3358 = vadd.f32 %v3339, %v3357
        %v3359 = vpop.f32.mrf.mxu0
        %v3360 = vadd.f32 %v3341, %v3359
        %3361 = vmatmul.bf16.gmra.mxu0 %v2014
        %v3362 = vpop.f32.mrf.mxu0
        %v3363 = vadd.f32 %v3344, %v3362
        %v3364 = vpop.f32.mrf.mxu0
        %v3365 = vadd.f32 %v3346, %v3364
        %3366 = vdwg.mxu0
        %3367 = vmatpush.bf16.msra.mxu0 0
        %3368 = vmatpush.bf16.msra.mxu0 0
        %3369 = vmatpush.bf16.msra.mxu0 0
        %3370 = vmatpush.bf16.msra.mxu0 0
        %3371 = vmatpush.bf16.msra.mxu0 0
        %3372 = vmatpush.bf16.msra.mxu0 %v3324
        %3373 = vmatpush.bf16.msra.mxu0 %v3283
        %3374 = vmatpush.bf16.msra.mxu0 %v3281
        %3375 = vmatmul.bf16.gmra.mxu0 %v2209
        %v3376 = vpop.f32.mrf.mxu0
        %v3377 = vadd.f32 %v3358, %v3376
        %v3378 = vpop.f32.mrf.mxu0
        %v3379 = vadd.f32 %v3360, %v3378
        %3380 = vmatmul.bf16.gmra.mxu0 %v2212
        %v3381 = vpop.f32.mrf.mxu0
        %v3382 = vadd.f32 %v3363, %v3381
        %v3383 = vpop.f32.mrf.mxu0
        %v3384 = vadd.f32 %v3365, %v3383
        %3385 = vdwg.mxu0
        %3386 = vmatpush.bf16.msra.mxu0 %v3264
        %3387 = vmatpush.bf16.msra.mxu0 %v3262
        %3388 = vmatpush.bf16.msra.mxu0 %v3260
        %3389 = vmatpush.bf16.msra.mxu0 %v3258
        %3390 = vmatpush.bf16.msra.mxu0 %v3256
        %3391 = vmatpush.bf16.msra.mxu0 %v3254
        %3392 = vmatpush.bf16.msra.mxu0 %v3252
        %3393 = vmatpush.bf16.msra.mxu0 %v3250
        %3394 = vmatmul.bf16.gmra.mxu0 %v2004
        %v3395 = vpop.f32.mrf.mxu0
        %v3396 = vadd.f32 0.0, %v3395
        %v3397 = vpop.f32.mrf.mxu0
        %v3398 = vadd.f32 0.0, %v3397
        %3399 = vmatmul.bf16.gmra.mxu0 %v2013
        %v3400 = vpop.f32.mrf.mxu0
        %v3401 = vadd.f32 0.0, %v3400
        %v3402 = vpop.f32.mrf.mxu0
        %v3403 = vadd.f32 0.0, %v3402
        %3404 = vdwg.mxu0
        %3405 = vmatpush.bf16.msra.mxu0 %v3280
        %3406 = vmatpush.bf16.msra.mxu0 %v3278
        %3407 = vmatpush.bf16.msra.mxu0 %v3276
        %3408 = vmatpush.bf16.msra.mxu0 %v3274
        %3409 = vmatpush.bf16.msra.mxu0 %v3272
        %3410 = vmatpush.bf16.msra.mxu0 %v3270
        %3411 = vmatpush.bf16.msra.mxu0 %v3268
        %3412 = vmatpush.bf16.msra.mxu0 %v3266
        %3413 = vmatmul.bf16.gmra.mxu0 %v2008
        %v3414 = vpop.f32.mrf.mxu0
        %v3415 = vadd.f32 %v3396, %v3414
        %v3416 = vpop.f32.mrf.mxu0
        %v3417 = vadd.f32 %v3398, %v3416
        %3418 = vmatmul.bf16.gmra.mxu0 %v2014
        %v3419 = vpop.f32.mrf.mxu0
        %v3420 = vadd.f32 %v3401, %v3419
        %v3421 = vpop.f32.mrf.mxu0
        %v3422 = vadd.f32 %v3403, %v3421
        %3423 = vdwg.mxu0
        %3424 = vmatpush.bf16.msra.mxu0 0
        %3425 = vmatpush.bf16.msra.mxu0 0
        %3426 = vmatpush.bf16.msra.mxu0 0
        %3427 = vmatpush.bf16.msra.mxu0 0
        %3428 = vmatpush.bf16.msra.mxu0 0
        %3429 = vmatpush.bf16.msra.mxu0 %v3327
        %3430 = vmatpush.bf16.msra.mxu0 %v3284
        %3431 = vmatpush.bf16.msra.mxu0 %v3282
        %3432 = vmatmul.bf16.gmra.mxu0 %v2209
        %v3433 = vpop.f32.mrf.mxu0
        %v3434 = vadd.f32 %v3415, %v3433
        %v3435 = vpop.f32.mrf.mxu0
        %v3436 = vadd.f32 %v3417, %v3435
        %3437 = vmatmul.bf16.gmra.mxu0 %v2212
        %v3438 = vpop.f32.mrf.mxu0
        %v3439 = vadd.f32 %v3420, %v3438
        %v3440 = vpop.f32.mrf.mxu0
        %v3441 = vadd.f32 %v3422, %v3440
        %3442 = vdwg.mxu0
        %v3485 = vunpack.c.l.b16 %v3058
        %v3486 = vunpack.c.h.b16 %v3058
        %v3487 = vunpack.c.l.b16 %v3059
        %v3488 = vunpack.c.h.b16 %v3059
        %v3489 = vunpack.c.l.b16 %v3060
        %v3490 = vunpack.c.h.b16 %v3060
        %v3491 = vunpack.c.l.b16 %v3061
        %v3492 = vunpack.c.h.b16 %v3061
        %v3493 = vunpack.c.l.b16 %v3062
        %v3494 = vunpack.c.h.b16 %v3062
        %v3495 = vunpack.c.l.b16 %v3063
        %v3496 = vunpack.c.h.b16 %v3063
        %v3497 = vunpack.c.l.b16 %v3064
        %v3498 = vunpack.c.h.b16 %v3064
        %v3499 = vunpack.c.l.b16 %v3065
        %v3500 = vunpack.c.h.b16 %v3065
        %v3501 = vunpack.c.l.b16 %v3066
        %v3502 = vunpack.c.h.b16 %v3066
        %v3503 = vunpack.c.l.b16 %v3067
        %v3504 = vunpack.c.h.b16 %v3067
        %v3505 = vunpack.c.l.b16 %v3068
        %v3506 = vunpack.c.h.b16 %v3068
        %v3507 = vunpack.c.l.b16 %v3069
        %v3508 = vunpack.c.h.b16 %v3069
        %v3509 = vunpack.c.l.b16 %v3070
        %v3510 = vunpack.c.h.b16 %v3070
        %v3511 = vunpack.c.l.b16 %v3071
        %v3512 = vunpack.c.h.b16 %v3071
        %v3513 = vunpack.c.l.b16 %v3072
        %v3514 = vunpack.c.h.b16 %v3072
        %v3515 = vunpack.c.l.b16 %v3073
        %v3516 = vunpack.c.h.b16 %v3073
        %v3517 = vunpack.c.l.b16 %v3074
        %v3518 = vunpack.c.h.b16 %v3074
        %v3519 = vunpack.c.l.b16 %v3075
        %v3520 = vunpack.c.h.b16 %v3075
        %v3521 = vunpack.c.l.b16 %v3076
        %v3522 = vunpack.c.h.b16 %v3076
        %v3523 = vunpack.c.l.b16 %v3077
        %v3524 = vunpack.c.h.b16 %v3077
        %v3525 = vunpack.c.l.b16 %v3078
        %v3526 = vunpack.c.h.b16 %v3078
        %v3527 = vunpack.c.l.b16 %v3079
        %v3528 = vunpack.c.h.b16 %v3079
        %v3529 = vunpack.c.l.b16 %v3080
        %v3530 = vunpack.c.h.b16 %v3080
        %v3531 = vunpack.c.l.b16 %v3081
        %v3532 = vunpack.c.h.b16 %v3081
        %v3533 = vunpack.c.l.b16 %v3082
        %v3534 = vunpack.c.h.b16 %v3082
        %v3535 = vunpack.c.l.b16 %v3083
        %v3536 = vunpack.c.h.b16 %v3083
        %v3537 = vunpack.c.l.b16 %v3084
        %v3538 = vunpack.c.h.b16 %v3084
        %v3539 = vunpack.c.l.b16 %v3085
        %v3540 = vunpack.c.h.b16 %v3085
        %v3541 = vunpack.c.l.b16 %v3086
        %v3542 = vunpack.c.h.b16 %v3086
        %v3543 = vunpack.c.l.b16 %v3087
        %v3544 = vunpack.c.h.b16 %v3087
        %v3545 = vunpack.c.l.b16 %v3088
        %v3546 = vunpack.c.h.b16 %v3088
        %v3547 = vunpack.c.l.b16 %v3089
        %v3548 = vunpack.c.h.b16 %v3089
        %v3549 = vunpack.c.l.b16 %v3090
        %v3550 = vunpack.c.h.b16 %v3090
        %v3551 = vunpack.c.l.b16 %v3091
        %v3552 = vunpack.c.h.b16 %v3091
        %v3553 = vunpack.c.l.b16 %v3092
        %v3554 = vunpack.c.h.b16 %v3092
        %v3555 = vunpack.c.l.b16 %v3093
        %v3556 = vunpack.c.h.b16 %v3093
        %v3557 = vunpack.c.l.b16 %v3094
        %v3558 = vunpack.c.h.b16 %v3094
        %v3559 = vunpack.c.l.b16 %v3095
        %v3560 = vunpack.c.h.b16 %v3095
        %v3561 = vpack.c.b16 %v3487, %v3485
        %v3562 = vpack.c.b16 %v3488, %v3486
        %v3563 = vpack.c.b16 %v3491, %v3489
        %v3564 = vpack.c.b16 %v3492, %v3490
        %v3565 = vpack.c.b16 %v3495, %v3493
        %v3566 = vpack.c.b16 %v3496, %v3494
        %v3567 = vpack.c.b16 %v3499, %v3497
        %v3568 = vpack.c.b16 %v3500, %v3498
        %v3569 = vpack.c.b16 %v3503, %v3501
        %v3570 = vpack.c.b16 %v3504, %v3502
        %v3571 = vpack.c.b16 %v3507, %v3505
        %v3572 = vpack.c.b16 %v3508, %v3506
        %v3573 = vpack.c.b16 %v3511, %v3509
        %v3574 = vpack.c.b16 %v3512, %v3510
        %v3575 = vpack.c.b16 %v3515, %v3513
        %v3576 = vpack.c.b16 %v3516, %v3514
        %v3577 = vpack.c.b16 %v3519, %v3517
        %v3578 = vpack.c.b16 %v3520, %v3518
        %v3579 = vpack.c.b16 %v3523, %v3521
        %v3580 = vpack.c.b16 %v3524, %v3522
        %v3581 = vpack.c.b16 %v3527, %v3525
        %v3582 = vpack.c.b16 %v3528, %v3526
        %v3583 = vpack.c.b16 %v3531, %v3529
        %v3584 = vpack.c.b16 %v3532, %v3530
        %v3585 = vpack.c.b16 %v3535, %v3533
        %v3586 = vpack.c.b16 %v3536, %v3534
        %v3587 = vpack.c.b16 %v3539, %v3537
        %v3588 = vpack.c.b16 %v3540, %v3538
        %v3589 = vpack.c.b16 %v3543, %v3541
        %v3590 = vpack.c.b16 %v3544, %v3542
        %v3591 = vpack.c.b16 %v3547, %v3545
        %v3592 = vpack.c.b16 %v3548, %v3546
        %v3593 = vpack.c.b16 %v3551, %v3549
        %v3594 = vpack.c.b16 %v3552, %v3550
        %v3595 = vpack.c.b16 %v3555, %v3553
        %v3596 = vpack.c.b16 %v3556, %v3554
        %v3597 = vpack.c.b16 %v3559, %v3557
        %v3598 = vpack.c.b16 %v3560, %v3558
        %v3635 = vsel %vm792, %v544, 0
        %v3637 = vsel %vm792, %v547, 0
        %v3640 = vsel %vm799, %v3597, 0
        %v3643 = vsel %vm799, %v3598, 0
        %3645 = vmatpush.bf16.msra.mxu0 %v3575
        %3646 = vmatpush.bf16.msra.mxu0 %v3573
        %3647 = vmatpush.bf16.msra.mxu0 %v3571
        %3648 = vmatpush.bf16.msra.mxu0 %v3569
        %3649 = vmatpush.bf16.msra.mxu0 %v3567
        %3650 = vmatpush.bf16.msra.mxu0 %v3565
        %3651 = vmatpush.bf16.msra.mxu0 %v3563
        %3652 = vmatpush.bf16.msra.mxu0 %v3561
        %3653 = vmatmul.bf16.gmra.mxu0 %v542
        %v3654 = vpop.f32.mrf.mxu0
        %v3655 = vadd.f32 %v3377, %v3654
        %v3656 = vpop.f32.mrf.mxu0
        %v3657 = vadd.f32 %v3379, %v3656
        %3658 = vmatmul.bf16.gmra.mxu0 %v545
        %v3659 = vpop.f32.mrf.mxu0
        %v3660 = vadd.f32 %v3382, %v3659
        %v3661 = vpop.f32.mrf.mxu0
        %v3662 = vadd.f32 %v3384, %v3661
        %3663 = vdwg.mxu0
        %3664 = vmatpush.bf16.msra.mxu0 %v3591
        %3665 = vmatpush.bf16.msra.mxu0 %v3589
        %3666 = vmatpush.bf16.msra.mxu0 %v3587
        %3667 = vmatpush.bf16.msra.mxu0 %v3585
        %3668 = vmatpush.bf16.msra.mxu0 %v3583
        %3669 = vmatpush.bf16.msra.mxu0 %v3581
        %3670 = vmatpush.bf16.msra.mxu0 %v3579
        %3671 = vmatpush.bf16.msra.mxu0 %v3577
        %3672 = vmatmul.bf16.gmra.mxu0 %v543
        %v3673 = vpop.f32.mrf.mxu0
        %v3674 = vadd.f32 %v3655, %v3673
        %v3675 = vpop.f32.mrf.mxu0
        %v3676 = vadd.f32 %v3657, %v3675
        %3677 = vmatmul.bf16.gmra.mxu0 %v546
        %v3678 = vpop.f32.mrf.mxu0
        %v3679 = vadd.f32 %v3660, %v3678
        %v3680 = vpop.f32.mrf.mxu0
        %v3681 = vadd.f32 %v3662, %v3680
        %3682 = vdwg.mxu0
        %3683 = vmatpush.bf16.msra.mxu0 0
        %3684 = vmatpush.bf16.msra.mxu0 0
        %3685 = vmatpush.bf16.msra.mxu0 0
        %3686 = vmatpush.bf16.msra.mxu0 0
        %3687 = vmatpush.bf16.msra.mxu0 0
        %3688 = vmatpush.bf16.msra.mxu0 %v3640
        %3689 = vmatpush.bf16.msra.mxu0 %v3595
        %3690 = vmatpush.bf16.msra.mxu0 %v3593
        %3691 = vmatmul.bf16.gmra.mxu0 %v3635
        %v3692 = vpop.f32.mrf.mxu0
        %v3693 = vadd.f32 %v3674, %v3692
        %v3694 = vpop.f32.mrf.mxu0
        %v3695 = vadd.f32 %v3676, %v3694
        %3696 = vmatmul.bf16.gmra.mxu0 %v3637
        %v3697 = vpop.f32.mrf.mxu0
        %v3698 = vadd.f32 %v3679, %v3697
        %v3699 = vpop.f32.mrf.mxu0
        %v3700 = vadd.f32 %v3681, %v3699
        %3701 = vdwg.mxu0
        %3702 = vmatpush.bf16.msra.mxu0 %v3576
        %3703 = vmatpush.bf16.msra.mxu0 %v3574
        %3704 = vmatpush.bf16.msra.mxu0 %v3572
        %3705 = vmatpush.bf16.msra.mxu0 %v3570
        %3706 = vmatpush.bf16.msra.mxu0 %v3568
        %3707 = vmatpush.bf16.msra.mxu0 %v3566
        %3708 = vmatpush.bf16.msra.mxu0 %v3564
        %3709 = vmatpush.bf16.msra.mxu0 %v3562
        %3710 = vmatmul.bf16.gmra.mxu0 %v542
        %v3711 = vpop.f32.mrf.mxu0
        %v3712 = vadd.f32 %v3434, %v3711
        %v3713 = vpop.f32.mrf.mxu0
        %v3714 = vadd.f32 %v3436, %v3713
        %3715 = vmatmul.bf16.gmra.mxu0 %v545
        %v3716 = vpop.f32.mrf.mxu0
        %v3717 = vadd.f32 %v3439, %v3716
        %v3718 = vpop.f32.mrf.mxu0
        %v3719 = vadd.f32 %v3441, %v3718
        %3720 = vdwg.mxu0
        %3721 = vmatpush.bf16.msra.mxu0 %v3592
        %3722 = vmatpush.bf16.msra.mxu0 %v3590
        %3723 = vmatpush.bf16.msra.mxu0 %v3588
        %3724 = vmatpush.bf16.msra.mxu0 %v3586
        %3725 = vmatpush.bf16.msra.mxu0 %v3584
        %3726 = vmatpush.bf16.msra.mxu0 %v3582
        %3727 = vmatpush.bf16.msra.mxu0 %v3580
        %3728 = vmatpush.bf16.msra.mxu0 %v3578
        %3729 = vmatmul.bf16.gmra.mxu0 %v543
        %v3730 = vpop.f32.mrf.mxu0
        %v3731 = vadd.f32 %v3712, %v3730
        %v3732 = vpop.f32.mrf.mxu0
        %v3733 = vadd.f32 %v3714, %v3732
        %3734 = vmatmul.bf16.gmra.mxu0 %v546
        %v3735 = vpop.f32.mrf.mxu0
        %v3736 = vadd.f32 %v3717, %v3735
        %v3737 = vpop.f32.mrf.mxu0
        %v3738 = vadd.f32 %v3719, %v3737
        %3739 = vdwg.mxu0
        %3740 = vmatpush.bf16.msra.mxu0 0
        %3741 = vmatpush.bf16.msra.mxu0 0
        %3742 = vmatpush.bf16.msra.mxu0 0
        %3743 = vmatpush.bf16.msra.mxu0 0
        %3744 = vmatpush.bf16.msra.mxu0 0
        %3745 = vmatpush.bf16.msra.mxu0 %v3643
        %3746 = vmatpush.bf16.msra.mxu0 %v3596
        %3747 = vmatpush.bf16.msra.mxu0 %v3594
        %3748 = vmatmul.bf16.gmra.mxu0 %v3635
        %v3749 = vpop.f32.mrf.mxu0
        %v3750 = vadd.f32 %v3731, %v3749
        %v3751 = vpop.f32.mrf.mxu0
        %v3752 = vadd.f32 %v3733, %v3751
        %3753 = vmatmul.bf16.gmra.mxu0 %v3637
        %v3754 = vpop.f32.mrf.mxu0
        %v3755 = vadd.f32 %v3736, %v3754
        %v3756 = vpop.f32.mrf.mxu0
        %v3757 = vadd.f32 %v3738, %v3756
        %3758 = vdwg.mxu0
        %s3759 = scalar_lea.vmem %s6, 608
        %v3760 = vld [vmem:[%s3759] sm:$0xff]
        %v3761 = vld [vmem:[%s3759 + $0x8] sm:$0xff]
        %v3762 = vld [vmem:[%s3759 + $0x10] sm:$0xff]
        %v3763 = vld [vmem:[%s3759 + $0x18] sm:$0xff]
        %v3764 = vld [vmem:[%s3759 + $0x20] sm:$0xff]
        %v3765 = vld [vmem:[%s3759 + $0x28] sm:$0xff]
        %v3766 = vld [vmem:[%s3759 + $0x30] sm:$0xff]
        %v3767 = vld [vmem:[%s3759 + $0x38] sm:$0xff]
        %v3768 = vld [vmem:[%s3759 + $0x40] sm:$0xff]
        %v3769 = vld [vmem:[%s3759 + $0x48] sm:$0xff]
        %v3770 = vld [vmem:[%s3759 + $0x50] sm:$0xff]
        %v3771 = vld [vmem:[%s3759 + $0x58] sm:$0xff]
        %v3772 = vld [vmem:[%s3759 + $0x60] sm:$0xff]
        %v3773 = vld [vmem:[%s3759 + $0x68] sm:$0xff]
        %v3774 = vld [vmem:[%s3759 + $0x70] sm:$0xff]
        %v3775 = vld [vmem:[%s3759 + $0x78] sm:$0xff]
        %v3776 = vld [vmem:[%s3759 + $0x80] sm:$0xff]
        %v3777 = vld [vmem:[%s3759 + $0x88] sm:$0xff]
        %v3778 = vld [vmem:[%s3759 + $0x90] sm:$0xff]
        %v3779 = vld [vmem:[%s3759 + $0x98] sm:$0xff]
        %v3780 = vld [vmem:[%s3759 + $0xa0] sm:$0xff]
        %v3781 = vld [vmem:[%s3759 + $0xa8] sm:$0xff]
        %v3782 = vld [vmem:[%s3759 + $0xb0] sm:$0xff]
        %v3783 = vld [vmem:[%s3759 + $0xb8] sm:$0xff]
        %v3784 = vld [vmem:[%s3759 + $0xc0] sm:$0xff]
        %v3785 = vld [vmem:[%s3759 + $0xc8] sm:$0xff]
        %v3786 = vld [vmem:[%s3759 + $0xd0] sm:$0xff]
        %v3787 = vld [vmem:[%s3759 + $0xd8] sm:$0xff]
        %v3788 = vld [vmem:[%s3759 + $0xe0] sm:$0xff]
        %v3789 = vld [vmem:[%s3759 + $0xe8] sm:$0xff]
        %v3790 = vld [vmem:[%s3759 + $0xf0] sm:$0xff]
        %v3791 = vld [vmem:[%s3759 + $0xf8] sm:$0xff]
        %v3792 = vld [vmem:[%s3759 + $0x100] sm:$0xff]
        %v3793 = vld [vmem:[%s3759 + $0x108] sm:$0xff]
        %v3794 = vld [vmem:[%s3759 + $0x110] sm:$0xff]
        %v3795 = vld [vmem:[%s3759 + $0x118] sm:$0xff]
        %v3796 = vld [vmem:[%s3759 + $0x120] sm:$0xff]
        %v3797 = vld [vmem:[%s3759 + $0x128] sm:$0x33]
        %v3836 = vunpack.c.l.b16 %v3760
        %v3837 = vunpack.c.h.b16 %v3760
        %v3838 = vunpack.c.l.b16 %v3761
        %v3839 = vunpack.c.h.b16 %v3761
        %v3840 = vunpack.c.l.b16 %v3762
        %v3841 = vunpack.c.h.b16 %v3762
        %v3842 = vunpack.c.l.b16 %v3763
        %v3843 = vunpack.c.h.b16 %v3763
        %v3844 = vunpack.c.l.b16 %v3764
        %v3845 = vunpack.c.h.b16 %v3764
        %v3846 = vunpack.c.l.b16 %v3765
        %v3847 = vunpack.c.h.b16 %v3765
        %v3848 = vunpack.c.l.b16 %v3766
        %v3849 = vunpack.c.h.b16 %v3766
        %v3850 = vunpack.c.l.b16 %v3767
        %v3851 = vunpack.c.h.b16 %v3767
        %v3852 = vunpack.c.l.b16 %v3768
        %v3853 = vunpack.c.h.b16 %v3768
        %v3854 = vunpack.c.l.b16 %v3769
        %v3855 = vunpack.c.h.b16 %v3769
        %v3856 = vunpack.c.l.b16 %v3770
        %v3857 = vunpack.c.h.b16 %v3770
        %v3858 = vunpack.c.l.b16 %v3771
        %v3859 = vunpack.c.h.b16 %v3771
        %v3860 = vunpack.c.l.b16 %v3772
        %v3861 = vunpack.c.h.b16 %v3772
        %v3862 = vunpack.c.l.b16 %v3773
        %v3863 = vunpack.c.h.b16 %v3773
        %v3864 = vunpack.c.l.b16 %v3774
        %v3865 = vunpack.c.h.b16 %v3774
        %v3866 = vunpack.c.l.b16 %v3775
        %v3867 = vunpack.c.h.b16 %v3775
        %v3868 = vunpack.c.l.b16 %v3776
        %v3869 = vunpack.c.h.b16 %v3776
        %v3870 = vunpack.c.l.b16 %v3777
        %v3871 = vunpack.c.h.b16 %v3777
        %v3872 = vunpack.c.l.b16 %v3778
        %v3873 = vunpack.c.h.b16 %v3778
        %v3874 = vunpack.c.l.b16 %v3779
        %v3875 = vunpack.c.h.b16 %v3779
        %v3876 = vunpack.c.l.b16 %v3780
        %v3877 = vunpack.c.h.b16 %v3780
        %v3878 = vunpack.c.l.b16 %v3781
        %v3879 = vunpack.c.h.b16 %v3781
        %v3880 = vunpack.c.l.b16 %v3782
        %v3881 = vunpack.c.h.b16 %v3782
        %v3882 = vunpack.c.l.b16 %v3783
        %v3883 = vunpack.c.h.b16 %v3783
        %v3884 = vunpack.c.l.b16 %v3784
        %v3885 = vunpack.c.h.b16 %v3784
        %v3886 = vunpack.c.l.b16 %v3785
        %v3887 = vunpack.c.h.b16 %v3785
        %v3888 = vunpack.c.l.b16 %v3786
        %v3889 = vunpack.c.h.b16 %v3786
        %v3890 = vunpack.c.l.b16 %v3787
        %v3891 = vunpack.c.h.b16 %v3787
        %v3892 = vunpack.c.l.b16 %v3788
        %v3893 = vunpack.c.h.b16 %v3788
        %v3894 = vunpack.c.l.b16 %v3789
        %v3895 = vunpack.c.h.b16 %v3789
        %v3896 = vunpack.c.l.b16 %v3790
        %v3897 = vunpack.c.h.b16 %v3790
        %v3898 = vunpack.c.l.b16 %v3791
        %v3899 = vunpack.c.h.b16 %v3791
        %v3900 = vunpack.c.l.b16 %v3792
        %v3901 = vunpack.c.h.b16 %v3792
        %v3902 = vunpack.c.l.b16 %v3793
        %v3903 = vunpack.c.h.b16 %v3793
        %v3904 = vunpack.c.l.b16 %v3794
        %v3905 = vunpack.c.h.b16 %v3794
        %v3906 = vunpack.c.l.b16 %v3795
        %v3907 = vunpack.c.h.b16 %v3795
        %v3908 = vunpack.c.l.b16 %v3796
        %v3909 = vunpack.c.h.b16 %v3796
        %v3910 = vunpack.c.l.b16 %v3797
        %v3911 = vunpack.c.h.b16 %v3797
        %v3912 = vpack.c.b16 %v3838, %v3836
        %v3913 = vpack.c.b16 %v3839, %v3837
        %v3914 = vpack.c.b16 %v3842, %v3840
        %v3915 = vpack.c.b16 %v3843, %v3841
        %v3916 = vpack.c.b16 %v3846, %v3844
        %v3917 = vpack.c.b16 %v3847, %v3845
        %v3918 = vpack.c.b16 %v3850, %v3848
        %v3919 = vpack.c.b16 %v3851, %v3849
        %v3920 = vpack.c.b16 %v3854, %v3852
        %v3921 = vpack.c.b16 %v3855, %v3853
        %v3922 = vpack.c.b16 %v3858, %v3856
        %v3923 = vpack.c.b16 %v3859, %v3857
        %v3924 = vpack.c.b16 %v3862, %v3860
        %v3925 = vpack.c.b16 %v3863, %v3861
        %v3926 = vpack.c.b16 %v3866, %v3864
        %v3927 = vpack.c.b16 %v3867, %v3865
        %v3928 = vpack.c.b16 %v3870, %v3868
        %v3929 = vpack.c.b16 %v3871, %v3869
        %v3930 = vpack.c.b16 %v3874, %v3872
        %v3931 = vpack.c.b16 %v3875, %v3873
        %v3932 = vpack.c.b16 %v3878, %v3876
        %v3933 = vpack.c.b16 %v3879, %v3877
        %v3934 = vpack.c.b16 %v3882, %v3880
        %v3935 = vpack.c.b16 %v3883, %v3881
        %v3936 = vpack.c.b16 %v3886, %v3884
        %v3937 = vpack.c.b16 %v3887, %v3885
        %v3938 = vpack.c.b16 %v3890, %v3888
        %v3939 = vpack.c.b16 %v3891, %v3889
        %v3940 = vpack.c.b16 %v3894, %v3892
        %v3941 = vpack.c.b16 %v3895, %v3893
        %v3942 = vpack.c.b16 %v3898, %v3896
        %v3943 = vpack.c.b16 %v3899, %v3897
        %v3944 = vpack.c.b16 %v3902, %v3900
        %v3945 = vpack.c.b16 %v3903, %v3901
        %v3946 = vpack.c.b16 %v3906, %v3904
        %v3947 = vpack.c.b16 %v3907, %v3905
        %v3948 = vpack.c.b16 %v3910, %v3908
        %v3949 = vpack.c.b16 %v3911, %v3909
        %v3987 = vsel %vm799, %v3948, 0
        %v3990 = vsel %vm799, %v3949, 0
        %3992 = vmatpush.bf16.msra.mxu0 %v3926
        %3993 = vmatpush.bf16.msra.mxu0 %v3924
        %3994 = vmatpush.bf16.msra.mxu0 %v3922
        %3995 = vmatpush.bf16.msra.mxu0 %v3920
        %3996 = vmatpush.bf16.msra.mxu0 %v3918
        %3997 = vmatpush.bf16.msra.mxu0 %v3916
        %3998 = vmatpush.bf16.msra.mxu0 %v3914
        %3999 = vmatpush.bf16.msra.mxu0 %v3912
        %4000 = vmatmul.bf16.gmra.mxu0 %v917
        %v4001 = vpop.f32.mrf.mxu0
        %v4002 = vadd.f32 0.0, %v4001
        %v4003 = vpop.f32.mrf.mxu0
        %v4004 = vadd.f32 0.0, %v4003
        %4005 = vmatmul.bf16.gmra.mxu0 %v916
        %v4006 = vpop.f32.mrf.mxu0
        %v4007 = vadd.f32 0.0, %v4006
        %v4008 = vpop.f32.mrf.mxu0
        %v4009 = vadd.f32 0.0, %v4008
        %4010 = vdwg.mxu0
        %4011 = vmatpush.bf16.msra.mxu0 %v3942
        %4012 = vmatpush.bf16.msra.mxu0 %v3940
        %4013 = vmatpush.bf16.msra.mxu0 %v3938
        %4014 = vmatpush.bf16.msra.mxu0 %v3936
        %4015 = vmatpush.bf16.msra.mxu0 %v3934
        %4016 = vmatpush.bf16.msra.mxu0 %v3932
        %4017 = vmatpush.bf16.msra.mxu0 %v3930
        %4018 = vmatpush.bf16.msra.mxu0 %v3928
        %4019 = vmatmul.bf16.gmra.mxu0 %v920
        %v4020 = vpop.f32.mrf.mxu0
        %v4021 = vadd.f32 %v4002, %v4020
        %v4022 = vpop.f32.mrf.mxu0
        %v4023 = vadd.f32 %v4004, %v4022
        %4024 = vmatmul.bf16.gmra.mxu0 %v919
        %v4025 = vpop.f32.mrf.mxu0
        %v4026 = vadd.f32 %v4007, %v4025
        %v4027 = vpop.f32.mrf.mxu0
        %v4028 = vadd.f32 %v4009, %v4027
        %4029 = vdwg.mxu0
        %4030 = vmatpush.bf16.msra.mxu0 0
        %4031 = vmatpush.bf16.msra.mxu0 0
        %4032 = vmatpush.bf16.msra.mxu0 0
        %4033 = vmatpush.bf16.msra.mxu0 0
        %4034 = vmatpush.bf16.msra.mxu0 0
        %4035 = vmatpush.bf16.msra.mxu0 %v3987
        %4036 = vmatpush.bf16.msra.mxu0 %v3946
        %4037 = vmatpush.bf16.msra.mxu0 %v3944
        %4038 = vmatmul.bf16.gmra.mxu0 %v1117
        %v4039 = vpop.f32.mrf.mxu0
        %v4040 = vadd.f32 %v4021, %v4039
        %v4041 = vpop.f32.mrf.mxu0
        %v4042 = vadd.f32 %v4023, %v4041
        %4043 = vmatmul.bf16.gmra.mxu0 %v1120
        %v4044 = vpop.f32.mrf.mxu0
        %v4045 = vadd.f32 %v4026, %v4044
        %v4046 = vpop.f32.mrf.mxu0
        %v4047 = vadd.f32 %v4028, %v4046
        %4048 = vdwg.mxu0
        %4049 = vmatpush.bf16.msra.mxu0 %v3927
        %4050 = vmatpush.bf16.msra.mxu0 %v3925
        %4051 = vmatpush.bf16.msra.mxu0 %v3923
        %4052 = vmatpush.bf16.msra.mxu0 %v3921
        %4053 = vmatpush.bf16.msra.mxu0 %v3919
        %4054 = vmatpush.bf16.msra.mxu0 %v3917
        %4055 = vmatpush.bf16.msra.mxu0 %v3915
        %4056 = vmatpush.bf16.msra.mxu0 %v3913
        %4057 = vmatmul.bf16.gmra.mxu0 %v917
        %v4058 = vpop.f32.mrf.mxu0
        %v4059 = vadd.f32 0.0, %v4058
        %v4060 = vpop.f32.mrf.mxu0
        %v4061 = vadd.f32 0.0, %v4060
        %4062 = vmatmul.bf16.gmra.mxu0 %v916
        %v4063 = vpop.f32.mrf.mxu0
        %v4064 = vadd.f32 0.0, %v4063
        %v4065 = vpop.f32.mrf.mxu0
        %v4066 = vadd.f32 0.0, %v4065
        %4067 = vdwg.mxu0
        %4068 = vmatpush.bf16.msra.mxu0 %v3943
        %4069 = vmatpush.bf16.msra.mxu0 %v3941
        %4070 = vmatpush.bf16.msra.mxu0 %v3939
        %4071 = vmatpush.bf16.msra.mxu0 %v3937
        %4072 = vmatpush.bf16.msra.mxu0 %v3935
        %4073 = vmatpush.bf16.msra.mxu0 %v3933
        %4074 = vmatpush.bf16.msra.mxu0 %v3931
        %4075 = vmatpush.bf16.msra.mxu0 %v3929
        %4076 = vmatmul.bf16.gmra.mxu0 %v920
        %v4077 = vpop.f32.mrf.mxu0
        %v4078 = vadd.f32 %v4059, %v4077
        %v4079 = vpop.f32.mrf.mxu0
        %v4080 = vadd.f32 %v4061, %v4079
        %4081 = vmatmul.bf16.gmra.mxu0 %v919
        %v4082 = vpop.f32.mrf.mxu0
        %v4083 = vadd.f32 %v4064, %v4082
        %v4084 = vpop.f32.mrf.mxu0
        %v4085 = vadd.f32 %v4066, %v4084
        %4086 = vdwg.mxu0
        %4087 = vmatpush.bf16.msra.mxu0 0
        %4088 = vmatpush.bf16.msra.mxu0 0
        %4089 = vmatpush.bf16.msra.mxu0 0
        %4090 = vmatpush.bf16.msra.mxu0 0
        %4091 = vmatpush.bf16.msra.mxu0 0
        %4092 = vmatpush.bf16.msra.mxu0 %v3990
        %4093 = vmatpush.bf16.msra.mxu0 %v3947
        %4094 = vmatpush.bf16.msra.mxu0 %v3945
        %4095 = vmatmul.bf16.gmra.mxu0 %v1117
        %v4096 = vpop.f32.mrf.mxu0
        %v4097 = vadd.f32 %v4078, %v4096
        %v4098 = vpop.f32.mrf.mxu0
        %v4099 = vadd.f32 %v4080, %v4098
        %4100 = vmatmul.bf16.gmra.mxu0 %v1120
        %v4101 = vpop.f32.mrf.mxu0
        %v4102 = vadd.f32 %v4083, %v4101
        %v4103 = vpop.f32.mrf.mxu0
        %v4104 = vadd.f32 %v4085, %v4103
        %4105 = vdwg.mxu0
        %v4106 = vadd.f32 %v3693, %v4040
        %v4107 = vadd.f32 %v3750, %v4097
        %v4108 = vadd.f32 %v3695, %v4042
        %v4109 = vadd.f32 %v3752, %v4099
        %v4110 = vadd.f32 %v3698, %v4045
        %v4111 = vadd.f32 %v3755, %v4102
        %v4112 = vadd.f32 %v3700, %v4047
        %v4113 = vadd.f32 %v3757, %v4104
        %s4114 = scalar_lea.vmem %s6, 912
        %v4115 = vld [vmem:[%s4114] sm:$0xff]
        %v4116 = vld [vmem:[%s4114 + $0x8] sm:$0xff]
        %v4117 = vld [vmem:[%s4114 + $0x10] sm:$0xff]
        %v4118 = vld [vmem:[%s4114 + $0x18] sm:$0xff]
        %v4119 = vld [vmem:[%s4114 + $0x20] sm:$0xff]
        %v4120 = vld [vmem:[%s4114 + $0x28] sm:$0xff]
        %v4121 = vld [vmem:[%s4114 + $0x30] sm:$0xff]
        %v4122 = vld [vmem:[%s4114 + $0x38] sm:$0xff]
        %v4123 = vld [vmem:[%s4114 + $0x40] sm:$0xff]
        %v4124 = vld [vmem:[%s4114 + $0x48] sm:$0xff]
        %v4125 = vld [vmem:[%s4114 + $0x50] sm:$0xff]
        %v4126 = vld [vmem:[%s4114 + $0x58] sm:$0xff]
        %v4127 = vld [vmem:[%s4114 + $0x60] sm:$0xff]
        %v4128 = vld [vmem:[%s4114 + $0x68] sm:$0xff]
        %v4129 = vld [vmem:[%s4114 + $0x70] sm:$0xff]
        %v4130 = vld [vmem:[%s4114 + $0x78] sm:$0xff]
        %v4131 = vld [vmem:[%s4114 + $0x80] sm:$0xff]
        %v4132 = vld [vmem:[%s4114 + $0x88] sm:$0xff]
        %v4133 = vld [vmem:[%s4114 + $0x90] sm:$0xff]
        %v4134 = vld [vmem:[%s4114 + $0x98] sm:$0xff]
        %v4135 = vld [vmem:[%s4114 + $0xa0] sm:$0xff]
        %v4136 = vld [vmem:[%s4114 + $0xa8] sm:$0xff]
        %v4137 = vld [vmem:[%s4114 + $0xb0] sm:$0xff]
        %v4138 = vld [vmem:[%s4114 + $0xb8] sm:$0xff]
        %v4139 = vld [vmem:[%s4114 + $0xc0] sm:$0xff]
        %v4140 = vld [vmem:[%s4114 + $0xc8] sm:$0xff]
        %v4141 = vld [vmem:[%s4114 + $0xd0] sm:$0xff]
        %v4142 = vld [vmem:[%s4114 + $0xd8] sm:$0xff]
        %v4143 = vld [vmem:[%s4114 + $0xe0] sm:$0xff]
        %v4144 = vld [vmem:[%s4114 + $0xe8] sm:$0xff]
        %v4145 = vld [vmem:[%s4114 + $0xf0] sm:$0xff]
        %v4146 = vld [vmem:[%s4114 + $0xf8] sm:$0xff]
        %v4147 = vld [vmem:[%s4114 + $0x100] sm:$0xff]
        %v4148 = vld [vmem:[%s4114 + $0x108] sm:$0xff]
        %v4149 = vld [vmem:[%s4114 + $0x110] sm:$0xff]
        %v4150 = vld [vmem:[%s4114 + $0x118] sm:$0xff]
        %v4151 = vld [vmem:[%s4114 + $0x120] sm:$0xff]
        %v4152 = vld [vmem:[%s4114 + $0x128] sm:$0x33]
        %v4191 = vunpack.c.l.b16 %v4115
        %v4192 = vunpack.c.h.b16 %v4115
        %v4193 = vunpack.c.l.b16 %v4116
        %v4194 = vunpack.c.h.b16 %v4116
        %v4195 = vunpack.c.l.b16 %v4117
        %v4196 = vunpack.c.h.b16 %v4117
        %v4197 = vunpack.c.l.b16 %v4118
        %v4198 = vunpack.c.h.b16 %v4118
        %v4199 = vunpack.c.l.b16 %v4119
        %v4200 = vunpack.c.h.b16 %v4119
        %v4201 = vunpack.c.l.b16 %v4120
        %v4202 = vunpack.c.h.b16 %v4120
        %v4203 = vunpack.c.l.b16 %v4121
        %v4204 = vunpack.c.h.b16 %v4121
        %v4205 = vunpack.c.l.b16 %v4122
        %v4206 = vunpack.c.h.b16 %v4122
        %v4207 = vunpack.c.l.b16 %v4123
        %v4208 = vunpack.c.h.b16 %v4123
        %v4209 = vunpack.c.l.b16 %v4124
        %v4210 = vunpack.c.h.b16 %v4124
        %v4211 = vunpack.c.l.b16 %v4125
        %v4212 = vunpack.c.h.b16 %v4125
        %v4213 = vunpack.c.l.b16 %v4126
        %v4214 = vunpack.c.h.b16 %v4126
        %v4215 = vunpack.c.l.b16 %v4127
        %v4216 = vunpack.c.h.b16 %v4127
        %v4217 = vunpack.c.l.b16 %v4128
        %v4218 = vunpack.c.h.b16 %v4128
        %v4219 = vunpack.c.l.b16 %v4129
        %v4220 = vunpack.c.h.b16 %v4129
        %v4221 = vunpack.c.l.b16 %v4130
        %v4222 = vunpack.c.h.b16 %v4130
        %v4223 = vunpack.c.l.b16 %v4131
        %v4224 = vunpack.c.h.b16 %v4131
        %v4225 = vunpack.c.l.b16 %v4132
        %v4226 = vunpack.c.h.b16 %v4132
        %v4227 = vunpack.c.l.b16 %v4133
        %v4228 = vunpack.c.h.b16 %v4133
        %v4229 = vunpack.c.l.b16 %v4134
        %v4230 = vunpack.c.h.b16 %v4134
        %v4231 = vunpack.c.l.b16 %v4135
        %v4232 = vunpack.c.h.b16 %v4135
        %v4233 = vunpack.c.l.b16 %v4136
        %v4234 = vunpack.c.h.b16 %v4136
        %v4235 = vunpack.c.l.b16 %v4137
        %v4236 = vunpack.c.h.b16 %v4137
        %v4237 = vunpack.c.l.b16 %v4138
        %v4238 = vunpack.c.h.b16 %v4138
        %v4239 = vunpack.c.l.b16 %v4139
        %v4240 = vunpack.c.h.b16 %v4139
        %v4241 = vunpack.c.l.b16 %v4140
        %v4242 = vunpack.c.h.b16 %v4140
        %v4243 = vunpack.c.l.b16 %v4141
        %v4244 = vunpack.c.h.b16 %v4141
        %v4245 = vunpack.c.l.b16 %v4142
        %v4246 = vunpack.c.h.b16 %v4142
        %v4247 = vunpack.c.l.b16 %v4143
        %v4248 = vunpack.c.h.b16 %v4143
        %v4249 = vunpack.c.l.b16 %v4144
        %v4250 = vunpack.c.h.b16 %v4144
        %v4251 = vunpack.c.l.b16 %v4145
        %v4252 = vunpack.c.h.b16 %v4145
        %v4253 = vunpack.c.l.b16 %v4146
        %v4254 = vunpack.c.h.b16 %v4146
        %v4255 = vunpack.c.l.b16 %v4147
        %v4256 = vunpack.c.h.b16 %v4147
        %v4257 = vunpack.c.l.b16 %v4148
        %v4258 = vunpack.c.h.b16 %v4148
        %v4259 = vunpack.c.l.b16 %v4149
        %v4260 = vunpack.c.h.b16 %v4149
        %v4261 = vunpack.c.l.b16 %v4150
        %v4262 = vunpack.c.h.b16 %v4150
        %v4263 = vunpack.c.l.b16 %v4151
        %v4264 = vunpack.c.h.b16 %v4151
        %v4265 = vunpack.c.l.b16 %v4152
        %v4266 = vunpack.c.h.b16 %v4152
        %v4267 = vpack.c.b16 %v4193, %v4191
        %v4268 = vpack.c.b16 %v4194, %v4192
        %v4269 = vpack.c.b16 %v4197, %v4195
        %v4270 = vpack.c.b16 %v4198, %v4196
        %v4271 = vpack.c.b16 %v4201, %v4199
        %v4272 = vpack.c.b16 %v4202, %v4200
        %v4273 = vpack.c.b16 %v4205, %v4203
        %v4274 = vpack.c.b16 %v4206, %v4204
        %v4275 = vpack.c.b16 %v4209, %v4207
        %v4276 = vpack.c.b16 %v4210, %v4208
        %v4277 = vpack.c.b16 %v4213, %v4211
        %v4278 = vpack.c.b16 %v4214, %v4212
        %v4279 = vpack.c.b16 %v4217, %v4215
        %v4280 = vpack.c.b16 %v4218, %v4216
        %v4281 = vpack.c.b16 %v4221, %v4219
        %v4282 = vpack.c.b16 %v4222, %v4220
        %v4283 = vpack.c.b16 %v4225, %v4223
        %v4284 = vpack.c.b16 %v4226, %v4224
        %v4285 = vpack.c.b16 %v4229, %v4227
        %v4286 = vpack.c.b16 %v4230, %v4228
        %v4287 = vpack.c.b16 %v4233, %v4231
        %v4288 = vpack.c.b16 %v4234, %v4232
        %v4289 = vpack.c.b16 %v4237, %v4235
        %v4290 = vpack.c.b16 %v4238, %v4236
        %v4291 = vpack.c.b16 %v4241, %v4239
        %v4292 = vpack.c.b16 %v4242, %v4240
        %v4293 = vpack.c.b16 %v4245, %v4243
        %v4294 = vpack.c.b16 %v4246, %v4244
        %v4295 = vpack.c.b16 %v4249, %v4247
        %v4296 = vpack.c.b16 %v4250, %v4248
        %v4297 = vpack.c.b16 %v4253, %v4251
        %v4298 = vpack.c.b16 %v4254, %v4252
        %v4299 = vpack.c.b16 %v4257, %v4255
        %v4300 = vpack.c.b16 %v4258, %v4256
        %v4301 = vpack.c.b16 %v4261, %v4259
        %v4302 = vpack.c.b16 %v4262, %v4260
        %v4303 = vpack.c.b16 %v4265, %v4263
        %v4304 = vpack.c.b16 %v4266, %v4264
        %v4342 = vsel %vm799, %v4303, 0
        %v4345 = vsel %vm799, %v4304, 0
        %4347 = vmatpush.bf16.msra.mxu0 %v4281
        %4348 = vmatpush.bf16.msra.mxu0 %v4279
        %4349 = vmatpush.bf16.msra.mxu0 %v4277
        %4350 = vmatpush.bf16.msra.mxu0 %v4275
        %4351 = vmatpush.bf16.msra.mxu0 %v4273
        %4352 = vmatpush.bf16.msra.mxu0 %v4271
        %4353 = vmatpush.bf16.msra.mxu0 %v4269
        %4354 = vmatpush.bf16.msra.mxu0 %v4267
        %4355 = vmatmul.bf16.gmra.mxu0 %v565
        %v4356 = vpop.f32.mrf.mxu0
        %v4357 = vadd.f32 0.0, %v4356
        %v4358 = vpop.f32.mrf.mxu0
        %v4359 = vadd.f32 0.0, %v4358
        %4360 = vmatmul.bf16.gmra.mxu0 %v564
        %v4361 = vpop.f32.mrf.mxu0
        %v4362 = vadd.f32 0.0, %v4361
        %v4363 = vpop.f32.mrf.mxu0
        %v4364 = vadd.f32 0.0, %v4363
        %4365 = vdwg.mxu0
        %4366 = vmatpush.bf16.msra.mxu0 %v4297
        %4367 = vmatpush.bf16.msra.mxu0 %v4295
        %4368 = vmatpush.bf16.msra.mxu0 %v4293
        %4369 = vmatpush.bf16.msra.mxu0 %v4291
        %4370 = vmatpush.bf16.msra.mxu0 %v4289
        %4371 = vmatpush.bf16.msra.mxu0 %v4287
        %4372 = vmatpush.bf16.msra.mxu0 %v4285
        %4373 = vmatpush.bf16.msra.mxu0 %v4283
        %4374 = vmatmul.bf16.gmra.mxu0 %v582
        %v4375 = vpop.f32.mrf.mxu0
        %v4376 = vadd.f32 %v4357, %v4375
        %v4377 = vpop.f32.mrf.mxu0
        %v4378 = vadd.f32 %v4359, %v4377
        %4379 = vmatmul.bf16.gmra.mxu0 %v581
        %v4380 = vpop.f32.mrf.mxu0
        %v4381 = vadd.f32 %v4362, %v4380
        %v4382 = vpop.f32.mrf.mxu0
        %v4383 = vadd.f32 %v4364, %v4382
        %4384 = vdwg.mxu0
        %4385 = vmatpush.bf16.msra.mxu0 0
        %4386 = vmatpush.bf16.msra.mxu0 0
        %4387 = vmatpush.bf16.msra.mxu0 0
        %4388 = vmatpush.bf16.msra.mxu0 0
        %4389 = vmatpush.bf16.msra.mxu0 0
        %4390 = vmatpush.bf16.msra.mxu0 %v4342
        %4391 = vmatpush.bf16.msra.mxu0 %v4301
        %4392 = vmatpush.bf16.msra.mxu0 %v4299
        %4393 = vmatmul.bf16.gmra.mxu0 %v794
        %v4394 = vpop.f32.mrf.mxu0
        %v4395 = vadd.f32 %v4376, %v4394
        %v4396 = vpop.f32.mrf.mxu0
        %v4397 = vadd.f32 %v4378, %v4396
        %4398 = vmatmul.bf16.gmra.mxu0 %v797
        %v4399 = vpop.f32.mrf.mxu0
        %v4400 = vadd.f32 %v4381, %v4399
        %v4401 = vpop.f32.mrf.mxu0
        %v4402 = vadd.f32 %v4383, %v4401
        %4403 = vdwg.mxu0
        %4404 = vmatpush.bf16.msra.mxu0 %v4282
        %4405 = vmatpush.bf16.msra.mxu0 %v4280
        %4406 = vmatpush.bf16.msra.mxu0 %v4278
        %4407 = vmatpush.bf16.msra.mxu0 %v4276
        %4408 = vmatpush.bf16.msra.mxu0 %v4274
        %4409 = vmatpush.bf16.msra.mxu0 %v4272
        %4410 = vmatpush.bf16.msra.mxu0 %v4270
        %4411 = vmatpush.bf16.msra.mxu0 %v4268
        %4412 = vmatmul.bf16.gmra.mxu0 %v565
        %v4413 = vpop.f32.mrf.mxu0
        %v4414 = vadd.f32 0.0, %v4413
        %v4415 = vpop.f32.mrf.mxu0
        %v4416 = vadd.f32 0.0, %v4415
        %4417 = vmatmul.bf16.gmra.mxu0 %v564
        %v4418 = vpop.f32.mrf.mxu0
        %v4419 = vadd.f32 0.0, %v4418
        %v4420 = vpop.f32.mrf.mxu0
        %v4421 = vadd.f32 0.0, %v4420
        %4422 = vdwg.mxu0
        %4423 = vmatpush.bf16.msra.mxu0 %v4298
        %4424 = vmatpush.bf16.msra.mxu0 %v4296
        %4425 = vmatpush.bf16.msra.mxu0 %v4294
        %4426 = vmatpush.bf16.msra.mxu0 %v4292
        %4427 = vmatpush.bf16.msra.mxu0 %v4290
        %4428 = vmatpush.bf16.msra.mxu0 %v4288
        %4429 = vmatpush.bf16.msra.mxu0 %v4286
        %4430 = vmatpush.bf16.msra.mxu0 %v4284
        %4431 = vmatmul.bf16.gmra.mxu0 %v582
        %v4432 = vpop.f32.mrf.mxu0
        %v4433 = vadd.f32 %v4414, %v4432
        %v4434 = vpop.f32.mrf.mxu0
        %v4435 = vadd.f32 %v4416, %v4434
        %4436 = vmatmul.bf16.gmra.mxu0 %v581
        %v4437 = vpop.f32.mrf.mxu0
        %v4438 = vadd.f32 %v4419, %v4437
        %v4439 = vpop.f32.mrf.mxu0
        %v4440 = vadd.f32 %v4421, %v4439
        %4441 = vdwg.mxu0
        %4442 = vmatpush.bf16.msra.mxu0 0
        %4443 = vmatpush.bf16.msra.mxu0 0
        %4444 = vmatpush.bf16.msra.mxu0 0
        %4445 = vmatpush.bf16.msra.mxu0 0
        %4446 = vmatpush.bf16.msra.mxu0 0
        %4447 = vmatpush.bf16.msra.mxu0 %v4345
        %4448 = vmatpush.bf16.msra.mxu0 %v4302
        %4449 = vmatpush.bf16.msra.mxu0 %v4300
        %4450 = vmatmul.bf16.gmra.mxu0 %v794
        %v4451 = vpop.f32.mrf.mxu0
        %v4452 = vadd.f32 %v4433, %v4451
        %v4453 = vpop.f32.mrf.mxu0
        %v4454 = vadd.f32 %v4435, %v4453
        %4455 = vmatmul.bf16.gmra.mxu0 %v797
        %v4456 = vpop.f32.mrf.mxu0
        %v4457 = vadd.f32 %v4438, %v4456
        %v4458 = vpop.f32.mrf.mxu0
        %v4459 = vadd.f32 %v4440, %v4458
        %4460 = vdwg.mxu0
        %v4461 = vadd.f32 %v4106, %v4395
        %v4462 = vadd.f32 %v4107, %v4452
        %v4463 = vadd.f32 %v4108, %v4397
        %v4464 = vadd.f32 %v4109, %v4454
        %v4465 = vadd.f32 %v4110, %v4400
        %v4466 = vadd.f32 %v4111, %v4457
        %v4467 = vadd.f32 %v4112, %v4402
        %v4468 = vadd.f32 %v4113, %v4459
        %s4469 = scalar_lea.vmem %s6, 1216
        %v4470 = vld [vmem:[%s4469] sm:$0xff]
        %v4471 = vld [vmem:[%s4469 + $0x8] sm:$0xff]
        %v4472 = vld [vmem:[%s4469 + $0x10] sm:$0xff]
        %v4473 = vld [vmem:[%s4469 + $0x18] sm:$0xff]
        %v4474 = vld [vmem:[%s4469 + $0x20] sm:$0xff]
        %v4475 = vld [vmem:[%s4469 + $0x28] sm:$0xff]
        %v4476 = vld [vmem:[%s4469 + $0x30] sm:$0xff]
        %v4477 = vld [vmem:[%s4469 + $0x38] sm:$0xff]
        %v4478 = vld [vmem:[%s4469 + $0x40] sm:$0xff]
        %v4479 = vld [vmem:[%s4469 + $0x48] sm:$0xff]
        %v4480 = vld [vmem:[%s4469 + $0x50] sm:$0xff]
        %v4481 = vld [vmem:[%s4469 + $0x58] sm:$0xff]
        %v4482 = vld [vmem:[%s4469 + $0x60] sm:$0xff]
        %v4483 = vld [vmem:[%s4469 + $0x68] sm:$0xff]
        %v4484 = vld [vmem:[%s4469 + $0x70] sm:$0xff]
        %v4485 = vld [vmem:[%s4469 + $0x78] sm:$0xff]
        %v4486 = vld [vmem:[%s4469 + $0x80] sm:$0xff]
        %v4487 = vld [vmem:[%s4469 + $0x88] sm:$0xff]
        %v4488 = vld [vmem:[%s4469 + $0x90] sm:$0xff]
        %v4489 = vld [vmem:[%s4469 + $0x98] sm:$0xff]
        %v4490 = vld [vmem:[%s4469 + $0xa0] sm:$0xff]
        %v4491 = vld [vmem:[%s4469 + $0xa8] sm:$0xff]
        %v4492 = vld [vmem:[%s4469 + $0xb0] sm:$0xff]
        %v4493 = vld [vmem:[%s4469 + $0xb8] sm:$0xff]
        %v4494 = vld [vmem:[%s4469 + $0xc0] sm:$0xff]
        %v4495 = vld [vmem:[%s4469 + $0xc8] sm:$0xff]
        %v4496 = vld [vmem:[%s4469 + $0xd0] sm:$0xff]
        %v4497 = vld [vmem:[%s4469 + $0xd8] sm:$0xff]
        %v4498 = vld [vmem:[%s4469 + $0xe0] sm:$0xff]
        %v4499 = vld [vmem:[%s4469 + $0xe8] sm:$0xff]
        %v4500 = vld [vmem:[%s4469 + $0xf0] sm:$0xff]
        %v4501 = vld [vmem:[%s4469 + $0xf8] sm:$0xff]
        %v4502 = vld [vmem:[%s4469 + $0x100] sm:$0xff]
        %v4503 = vld [vmem:[%s4469 + $0x108] sm:$0xff]
        %v4504 = vld [vmem:[%s4469 + $0x110] sm:$0xff]
        %v4505 = vld [vmem:[%s4469 + $0x118] sm:$0xff]
        %v4506 = vld [vmem:[%s4469 + $0x120] sm:$0xff]
        %v4507 = vld [vmem:[%s4469 + $0x128] sm:$0x33]
        %v4546 = vunpack.c.l.b16 %v4470
        %v4547 = vunpack.c.h.b16 %v4470
        %v4548 = vunpack.c.l.b16 %v4471
        %v4549 = vunpack.c.h.b16 %v4471
        %v4550 = vunpack.c.l.b16 %v4472
        %v4551 = vunpack.c.h.b16 %v4472
        %v4552 = vunpack.c.l.b16 %v4473
        %v4553 = vunpack.c.h.b16 %v4473
        %v4554 = vunpack.c.l.b16 %v4474
        %v4555 = vunpack.c.h.b16 %v4474
        %v4556 = vunpack.c.l.b16 %v4475
        %v4557 = vunpack.c.h.b16 %v4475
        %v4558 = vunpack.c.l.b16 %v4476
        %v4559 = vunpack.c.h.b16 %v4476
        %v4560 = vunpack.c.l.b16 %v4477
        %v4561 = vunpack.c.h.b16 %v4477
        %v4562 = vunpack.c.l.b16 %v4478
        %v4563 = vunpack.c.h.b16 %v4478
        %v4564 = vunpack.c.l.b16 %v4479
        %v4565 = vunpack.c.h.b16 %v4479
        %v4566 = vunpack.c.l.b16 %v4480
        %v4567 = vunpack.c.h.b16 %v4480
        %v4568 = vunpack.c.l.b16 %v4481
        %v4569 = vunpack.c.h.b16 %v4481
        %v4570 = vunpack.c.l.b16 %v4482
        %v4571 = vunpack.c.h.b16 %v4482
        %v4572 = vunpack.c.l.b16 %v4483
        %v4573 = vunpack.c.h.b16 %v4483
        %v4574 = vunpack.c.l.b16 %v4484
        %v4575 = vunpack.c.h.b16 %v4484
        %v4576 = vunpack.c.l.b16 %v4485
        %v4577 = vunpack.c.h.b16 %v4485
        %v4578 = vunpack.c.l.b16 %v4486
        %v4579 = vunpack.c.h.b16 %v4486
        %v4580 = vunpack.c.l.b16 %v4487
        %v4581 = vunpack.c.h.b16 %v4487
        %v4582 = vunpack.c.l.b16 %v4488
        %v4583 = vunpack.c.h.b16 %v4488
        %v4584 = vunpack.c.l.b16 %v4489
        %v4585 = vunpack.c.h.b16 %v4489
        %v4586 = vunpack.c.l.b16 %v4490
        %v4587 = vunpack.c.h.b16 %v4490
        %v4588 = vunpack.c.l.b16 %v4491
        %v4589 = vunpack.c.h.b16 %v4491
        %v4590 = vunpack.c.l.b16 %v4492
        %v4591 = vunpack.c.h.b16 %v4492
        %v4592 = vunpack.c.l.b16 %v4493
        %v4593 = vunpack.c.h.b16 %v4493
        %v4594 = vunpack.c.l.b16 %v4494
        %v4595 = vunpack.c.h.b16 %v4494
        %v4596 = vunpack.c.l.b16 %v4495
        %v4597 = vunpack.c.h.b16 %v4495
        %v4598 = vunpack.c.l.b16 %v4496
        %v4599 = vunpack.c.h.b16 %v4496
        %v4600 = vunpack.c.l.b16 %v4497
        %v4601 = vunpack.c.h.b16 %v4497
        %v4602 = vunpack.c.l.b16 %v4498
        %v4603 = vunpack.c.h.b16 %v4498
        %v4604 = vunpack.c.l.b16 %v4499
        %v4605 = vunpack.c.h.b16 %v4499
        %v4606 = vunpack.c.l.b16 %v4500
        %v4607 = vunpack.c.h.b16 %v4500
        %v4608 = vunpack.c.l.b16 %v4501
        %v4609 = vunpack.c.h.b16 %v4501
        %v4610 = vunpack.c.l.b16 %v4502
        %v4611 = vunpack.c.h.b16 %v4502
        %v4612 = vunpack.c.l.b16 %v4503
        %v4613 = vunpack.c.h.b16 %v4503
        %v4614 = vunpack.c.l.b16 %v4504
        %v4615 = vunpack.c.h.b16 %v4504
        %v4616 = vunpack.c.l.b16 %v4505
        %v4617 = vunpack.c.h.b16 %v4505
        %v4618 = vunpack.c.l.b16 %v4506
        %v4619 = vunpack.c.h.b16 %v4506
        %v4620 = vunpack.c.l.b16 %v4507
        %v4621 = vunpack.c.h.b16 %v4507
        %v4622 = vpack.c.b16 %v4548, %v4546
        %v4623 = vpack.c.b16 %v4549, %v4547
        %v4624 = vpack.c.b16 %v4552, %v4550
        %v4625 = vpack.c.b16 %v4553, %v4551
        %v4626 = vpack.c.b16 %v4556, %v4554
        %v4627 = vpack.c.b16 %v4557, %v4555
        %v4628 = vpack.c.b16 %v4560, %v4558
        %v4629 = vpack.c.b16 %v4561, %v4559
        %v4630 = vpack.c.b16 %v4564, %v4562
        %v4631 = vpack.c.b16 %v4565, %v4563
        %v4632 = vpack.c.b16 %v4568, %v4566
        %v4633 = vpack.c.b16 %v4569, %v4567
        %v4634 = vpack.c.b16 %v4572, %v4570
        %v4635 = vpack.c.b16 %v4573, %v4571
        %v4636 = vpack.c.b16 %v4576, %v4574
        %v4637 = vpack.c.b16 %v4577, %v4575
        %v4638 = vpack.c.b16 %v4580, %v4578
        %v4639 = vpack.c.b16 %v4581, %v4579
        %v4640 = vpack.c.b16 %v4584, %v4582
        %v4641 = vpack.c.b16 %v4585, %v4583
        %v4642 = vpack.c.b16 %v4588, %v4586
        %v4643 = vpack.c.b16 %v4589, %v4587
        %v4644 = vpack.c.b16 %v4592, %v4590
        %v4645 = vpack.c.b16 %v4593, %v4591
        %v4646 = vpack.c.b16 %v4596, %v4594
        %v4647 = vpack.c.b16 %v4597, %v4595
        %v4648 = vpack.c.b16 %v4600, %v4598
        %v4649 = vpack.c.b16 %v4601, %v4599
        %v4650 = vpack.c.b16 %v4604, %v4602
        %v4651 = vpack.c.b16 %v4605, %v4603
        %v4652 = vpack.c.b16 %v4608, %v4606
        %v4653 = vpack.c.b16 %v4609, %v4607
        %v4654 = vpack.c.b16 %v4612, %v4610
        %v4655 = vpack.c.b16 %v4613, %v4611
        %v4656 = vpack.c.b16 %v4616, %v4614
        %v4657 = vpack.c.b16 %v4617, %v4615
        %v4658 = vpack.c.b16 %v4620, %v4618
        %v4659 = vpack.c.b16 %v4621, %v4619
        %v4697 = vsel %vm799, %v4658, 0
        %v4700 = vsel %vm799, %v4659, 0
        %4702 = vmatpush.bf16.msra.mxu0 %v4636
        %4703 = vmatpush.bf16.msra.mxu0 %v4634
        %4704 = vmatpush.bf16.msra.mxu0 %v4632
        %4705 = vmatpush.bf16.msra.mxu0 %v4630
        %4706 = vmatpush.bf16.msra.mxu0 %v4628
        %4707 = vmatpush.bf16.msra.mxu0 %v4626
        %4708 = vmatpush.bf16.msra.mxu0 %v4624
        %4709 = vmatpush.bf16.msra.mxu0 %v4622
        %4710 = vmatmul.bf16.gmra.mxu0 %v1278
        %v4711 = vpop.f32.mrf.mxu0
        %v4712 = vadd.f32 0.0, %v4711
        %v4713 = vpop.f32.mrf.mxu0
        %v4714 = vadd.f32 0.0, %v4713
        %4715 = vmatmul.bf16.gmra.mxu0 %v1277
        %v4716 = vpop.f32.mrf.mxu0
        %v4717 = vadd.f32 0.0, %v4716
        %v4718 = vpop.f32.mrf.mxu0
        %v4719 = vadd.f32 0.0, %v4718
        %4720 = vdwg.mxu0
        %4721 = vmatpush.bf16.msra.mxu0 %v4652
        %4722 = vmatpush.bf16.msra.mxu0 %v4650
        %4723 = vmatpush.bf16.msra.mxu0 %v4648
        %4724 = vmatpush.bf16.msra.mxu0 %v4646
        %4725 = vmatpush.bf16.msra.mxu0 %v4644
        %4726 = vmatpush.bf16.msra.mxu0 %v4642
        %4727 = vmatpush.bf16.msra.mxu0 %v4640
        %4728 = vmatpush.bf16.msra.mxu0 %v4638
        %4729 = vmatmul.bf16.gmra.mxu0 %v1281
        %v4730 = vpop.f32.mrf.mxu0
        %v4731 = vadd.f32 %v4712, %v4730
        %v4732 = vpop.f32.mrf.mxu0
        %v4733 = vadd.f32 %v4714, %v4732
        %4734 = vmatmul.bf16.gmra.mxu0 %v1280
        %v4735 = vpop.f32.mrf.mxu0
        %v4736 = vadd.f32 %v4717, %v4735
        %v4737 = vpop.f32.mrf.mxu0
        %v4738 = vadd.f32 %v4719, %v4737
        %4739 = vdwg.mxu0
        %4740 = vmatpush.bf16.msra.mxu0 0
        %4741 = vmatpush.bf16.msra.mxu0 0
        %4742 = vmatpush.bf16.msra.mxu0 0
        %4743 = vmatpush.bf16.msra.mxu0 0
        %4744 = vmatpush.bf16.msra.mxu0 0
        %4745 = vmatpush.bf16.msra.mxu0 %v4697
        %4746 = vmatpush.bf16.msra.mxu0 %v4656
        %4747 = vmatpush.bf16.msra.mxu0 %v4654
        %4748 = vmatmul.bf16.gmra.mxu0 %v1478
        %v4749 = vpop.f32.mrf.mxu0
        %v4750 = vadd.f32 %v4731, %v4749
        %v4751 = vpop.f32.mrf.mxu0
        %v4752 = vadd.f32 %v4733, %v4751
        %4753 = vmatmul.bf16.gmra.mxu0 %v1481
        %v4754 = vpop.f32.mrf.mxu0
        %v4755 = vadd.f32 %v4736, %v4754
        %v4756 = vpop.f32.mrf.mxu0
        %v4757 = vadd.f32 %v4738, %v4756
        %4758 = vdwg.mxu0
        %4759 = vmatpush.bf16.msra.mxu0 %v4637
        %4760 = vmatpush.bf16.msra.mxu0 %v4635
        %4761 = vmatpush.bf16.msra.mxu0 %v4633
        %4762 = vmatpush.bf16.msra.mxu0 %v4631
        %4763 = vmatpush.bf16.msra.mxu0 %v4629
        %4764 = vmatpush.bf16.msra.mxu0 %v4627
        %4765 = vmatpush.bf16.msra.mxu0 %v4625
        %4766 = vmatpush.bf16.msra.mxu0 %v4623
        %4767 = vmatmul.bf16.gmra.mxu0 %v1278
        %v4768 = vpop.f32.mrf.mxu0
        %v4769 = vadd.f32 0.0, %v4768
        %v4770 = vpop.f32.mrf.mxu0
        %v4771 = vadd.f32 0.0, %v4770
        %4772 = vmatmul.bf16.gmra.mxu0 %v1277
        %v4773 = vpop.f32.mrf.mxu0
        %v4774 = vadd.f32 0.0, %v4773
        %v4775 = vpop.f32.mrf.mxu0
        %v4776 = vadd.f32 0.0, %v4775
        %4777 = vdwg.mxu0
        %4778 = vmatpush.bf16.msra.mxu0 %v4653
        %4779 = vmatpush.bf16.msra.mxu0 %v4651
        %4780 = vmatpush.bf16.msra.mxu0 %v4649
        %4781 = vmatpush.bf16.msra.mxu0 %v4647
        %4782 = vmatpush.bf16.msra.mxu0 %v4645
        %4783 = vmatpush.bf16.msra.mxu0 %v4643
        %4784 = vmatpush.bf16.msra.mxu0 %v4641
        %4785 = vmatpush.bf16.msra.mxu0 %v4639
        %4786 = vmatmul.bf16.gmra.mxu0 %v1281
        %v4787 = vpop.f32.mrf.mxu0
        %v4788 = vadd.f32 %v4769, %v4787
        %v4789 = vpop.f32.mrf.mxu0
        %v4790 = vadd.f32 %v4771, %v4789
        %4791 = vmatmul.bf16.gmra.mxu0 %v1280
        %v4792 = vpop.f32.mrf.mxu0
        %v4793 = vadd.f32 %v4774, %v4792
        %v4794 = vpop.f32.mrf.mxu0
        %v4795 = vadd.f32 %v4776, %v4794
        %4796 = vdwg.mxu0
        %4797 = vmatpush.bf16.msra.mxu0 0
        %4798 = vmatpush.bf16.msra.mxu0 0
        %4799 = vmatpush.bf16.msra.mxu0 0
        %4800 = vmatpush.bf16.msra.mxu0 0
        %4801 = vmatpush.bf16.msra.mxu0 0
        %4802 = vmatpush.bf16.msra.mxu0 %v4700
        %4803 = vmatpush.bf16.msra.mxu0 %v4657
        %4804 = vmatpush.bf16.msra.mxu0 %v4655
        %4805 = vmatmul.bf16.gmra.mxu0 %v1478
        %v4806 = vpop.f32.mrf.mxu0
        %v4807 = vadd.f32 %v4788, %v4806
        %v4808 = vpop.f32.mrf.mxu0
        %v4809 = vadd.f32 %v4790, %v4808
        %4810 = vmatmul.bf16.gmra.mxu0 %v1481
        %v4811 = vpop.f32.mrf.mxu0
        %v4812 = vadd.f32 %v4793, %v4811
        %v4813 = vpop.f32.mrf.mxu0
        %v4814 = vadd.f32 %v4795, %v4813
        %4815 = vdwg.mxu0
        %v4816 = vadd.f32 %v4461, %v4750
        %v4817 = vadd.f32 %v4462, %v4807
        %v4818 = vadd.f32 %v4463, %v4752
        %v4819 = vadd.f32 %v4464, %v4809
        %v4820 = vadd.f32 %v4465, %v4755
        %v4821 = vadd.f32 %v4466, %v4812
        %v4822 = vadd.f32 %v4467, %v4757
        %v4823 = vadd.f32 %v4468, %v4814
        %v4824 = vld [vmem:[%s7] sm:$0x3]
        %v4826 = vperm.slane %v4824, 0
        %v4827 = vperm.slane %v4824, 1
        %v4830 = vadd.f32 %v4816, %v4826
        %v4831 = vadd.f32 %v4817, %v4827
        %v4832 = vadd.f32 %v4818, %v4826
        %v4833 = vadd.f32 %v4819, %v4827
        %v4834 = vadd.f32 %v4820, %v4826
        %v4835 = vadd.f32 %v4821, %v4827
        %v4836 = vadd.f32 %v4822, %v4826
        %v4837 = vadd.f32 %v4823, %v4827
        %v4838 = vld [vmem:[%s8] sm:$0xf]
        %v4839 = vld [vmem:[%s8 + $0x4] sm:$0xf]
        %v4840 = vld [vmem:[%s8 + $0x8] sm:$0xf]
        %v4841 = vld [vmem:[%s8 + $0xc] sm:$0xf]
        %v4842 = vld [vmem:[%s8 + $0x10] sm:$0xf]
        %v4843 = vld [vmem:[%s8 + $0x14] sm:$0xf]
        %v4844 = vld [vmem:[%s8 + $0x18] sm:$0xf]
        %v4845 = vld [vmem:[%s8 + $0x1c] sm:$0xf]
        %v4846 = vld [vmem:[%s8 + $0x20] sm:$0xf]
        %v4847 = vld [vmem:[%s8 + $0x24] sm:$0xf]
        %v4848 = vld [vmem:[%s8 + $0x28] sm:$0xf]
        %v4849 = vld [vmem:[%s8 + $0x2c] sm:$0xf]
        %v4850 = vld [vmem:[%s8 + $0x30] sm:$0xf]
        %v4851 = vld [vmem:[%s8 + $0x34] sm:$0xf]
        %v4852 = vld [vmem:[%s8 + $0x38] sm:$0xf]
        %v4853 = vld [vmem:[%s8 + $0x3c] sm:$0xf]
        %v4854 = vld [vmem:[%s8 + $0x40] sm:$0xf]
        %v4855 = vld [vmem:[%s8 + $0x44] sm:$0xf]
        %v4856 = vld [vmem:[%s8 + $0x48] sm:$0xf]
        %v4857 = vld [vmem:[%s8 + $0x4c] sm:$0xf]
        %v4858 = vld [vmem:[%s8 + $0x50] sm:$0xf]
        %v4859 = vld [vmem:[%s8 + $0x54] sm:$0xf]
        %v4860 = vld [vmem:[%s8 + $0x58] sm:$0xf]
        %v4861 = vld [vmem:[%s8 + $0x5c] sm:$0xf]
        %v4862 = vld [vmem:[%s8 + $0x60] sm:$0xf]
        %v4863 = vld [vmem:[%s8 + $0x64] sm:$0xf]
        %v4864 = vld [vmem:[%s8 + $0x68] sm:$0xf]
        %v4865 = vld [vmem:[%s8 + $0x6c] sm:$0xf]
        %v4866 = vld [vmem:[%s8 + $0x70] sm:$0xf]
        %v4867 = vld [vmem:[%s8 + $0x74] sm:$0xf]
        %v4868 = vld [vmem:[%s8 + $0x78] sm:$0xf]
        %v4869 = vld [vmem:[%s8 + $0x7c] sm:$0xf]
        %v4870 = vld [vmem:[%s8 + $0x80] sm:$0xf]
        %v4871 = vld [vmem:[%s8 + $0x84] sm:$0xf]
        %v4872 = vld [vmem:[%s8 + $0x88] sm:$0xf]
        %v4873 = vld [vmem:[%s8 + $0x8c] sm:$0xf]
        %v4874 = vld [vmem:[%s8 + $0x90] sm:$0xf]
        %v4875 = vld [vmem:[%s8 + $0x94] sm:$0x3]
        %s4876 = scalar_lea.vmem %s8, 152
        %v4877 = vld [vmem:[%s4876] sm:$0xf]
        %v4878 = vld [vmem:[%s4876 + $0x4] sm:$0xf]
        %v4879 = vld [vmem:[%s4876 + $0x8] sm:$0xf]
        %v4880 = vld [vmem:[%s4876 + $0xc] sm:$0xf]
        %v4881 = vld [vmem:[%s4876 + $0x10] sm:$0xf]
        %v4882 = vld [vmem:[%s4876 + $0x14] sm:$0xf]
        %v4883 = vld [vmem:[%s4876 + $0x18] sm:$0xf]
        %v4884 = vld [vmem:[%s4876 + $0x1c] sm:$0xf]
        %v4885 = vld [vmem:[%s4876 + $0x20] sm:$0xf]
        %v4886 = vld [vmem:[%s4876 + $0x24] sm:$0xf]
        %v4887 = vld [vmem:[%s4876 + $0x28] sm:$0xf]
        %v4888 = vld [vmem:[%s4876 + $0x2c] sm:$0xf]
        %v4889 = vld [vmem:[%s4876 + $0x30] sm:$0xf]
        %v4890 = vld [vmem:[%s4876 + $0x34] sm:$0xf]
        %v4891 = vld [vmem:[%s4876 + $0x38] sm:$0xf]
        %v4892 = vld [vmem:[%s4876 + $0x3c] sm:$0xf]
        %v4893 = vld [vmem:[%s4876 + $0x40] sm:$0xf]
        %v4894 = vld [vmem:[%s4876 + $0x44] sm:$0xf]
        %v4895 = vld [vmem:[%s4876 + $0x48] sm:$0xf]
        %v4896 = vld [vmem:[%s4876 + $0x4c] sm:$0xf]
        %v4897 = vld [vmem:[%s4876 + $0x50] sm:$0xf]
        %v4898 = vld [vmem:[%s4876 + $0x54] sm:$0xf]
        %v4899 = vld [vmem:[%s4876 + $0x58] sm:$0xf]
        %v4900 = vld [vmem:[%s4876 + $0x5c] sm:$0xf]
        %v4901 = vld [vmem:[%s4876 + $0x60] sm:$0xf]
        %v4902 = vld [vmem:[%s4876 + $0x64] sm:$0xf]
        %v4903 = vld [vmem:[%s4876 + $0x68] sm:$0xf]
        %v4904 = vld [vmem:[%s4876 + $0x6c] sm:$0xf]
        %v4905 = vld [vmem:[%s4876 + $0x70] sm:$0xf]
        %v4906 = vld [vmem:[%s4876 + $0x74] sm:$0xf]
        %v4907 = vld [vmem:[%s4876 + $0x78] sm:$0xf]
        %v4908 = vld [vmem:[%s4876 + $0x7c] sm:$0xf]
        %v4909 = vld [vmem:[%s4876 + $0x80] sm:$0xf]
        %v4910 = vld [vmem:[%s4876 + $0x84] sm:$0xf]
        %v4911 = vld [vmem:[%s4876 + $0x88] sm:$0xf]
        %v4912 = vld [vmem:[%s4876 + $0x8c] sm:$0xf]
        %v4913 = vld [vmem:[%s4876 + $0x90] sm:$0xf]
        %v4914 = vld [vmem:[%s4876 + $0x94] sm:$0x3]
        %v4919 = vunpack.c.l.b16 %v441
        %v4920 = vunpack.c.h.b16 %v441
        %v4921 = vunpack.c.l.b16 %v442
        %v4922 = vunpack.c.l.b16 %v443
        %v4923 = vunpack.c.h.b16 %v443
        %v4924 = vunpack.c.l.b16 %v444
        %v4925 = vpack.c.b16 %v4922, %v4919
        %v4926 = vpack.c.b16 %v4923, %v4920
        %v4927 = vpack.c.b16 %v4924, %v4921
        %v4929 = vshrl.u32 %v4925, 16
        %v4931 = vshll.u32 %v4925, 16
        %v4933 = vrot.slane %v4931, 1
        %v4934 = vor.u32 %v4929, %v4933
        %v4936 = vshrl.u32 %v4926, 16
        %v4938 = vshll.u32 %v4926, 16
        %v4940 = vrot.slane %v4938, 1
        %v4941 = vor.u32 %v4936, %v4940
        %v4943 = vshrl.u32 %v4927, 16
        %v4945 = vshll.u32 %v4927, 16
        %v4947 = vrot.slane %v4945, 1
        %v4948 = vor.u32 %v4943, %v4947
        %v4989 = vunpack.c.l.b16 %v4877
        %v4990 = vunpack.c.l.b16 %v4878
        %v4991 = vunpack.c.l.b16 %v4879
        %v4992 = vunpack.c.l.b16 %v4880
        %v4993 = vunpack.c.l.b16 %v4881
        %v4994 = vunpack.c.l.b16 %v4882
        %v4995 = vunpack.c.l.b16 %v4883
        %v4996 = vunpack.c.l.b16 %v4884
        %v4997 = vunpack.c.l.b16 %v4885
        %v4998 = vunpack.c.l.b16 %v4886
        %v4999 = vunpack.c.l.b16 %v4887
        %v5000 = vunpack.c.l.b16 %v4888
        %v5001 = vunpack.c.l.b16 %v4889
        %v5002 = vunpack.c.l.b16 %v4890
        %v5003 = vunpack.c.l.b16 %v4891
        %v5004 = vunpack.c.l.b16 %v4892
        %v5005 = vunpack.c.l.b16 %v4893
        %v5006 = vunpack.c.l.b16 %v4894
        %v5007 = vunpack.c.l.b16 %v4895
        %v5008 = vunpack.c.l.b16 %v4896
        %v5009 = vunpack.c.l.b16 %v4897
        %v5010 = vunpack.c.l.b16 %v4898
        %v5011 = vunpack.c.l.b16 %v4899
        %v5012 = vunpack.c.l.b16 %v4900
        %v5013 = vunpack.c.l.b16 %v4901
        %v5014 = vunpack.c.l.b16 %v4902
        %v5015 = vunpack.c.l.b16 %v4903
        %v5016 = vunpack.c.l.b16 %v4904
        %v5017 = vunpack.c.l.b16 %v4905
        %v5018 = vunpack.c.l.b16 %v4906
        %v5019 = vunpack.c.l.b16 %v4907
        %v5020 = vunpack.c.l.b16 %v4908
        %v5021 = vunpack.c.l.b16 %v4909
        %v5022 = vunpack.c.l.b16 %v4910
        %v5023 = vunpack.c.l.b16 %v4911
        %v5024 = vunpack.c.l.b16 %v4912
        %v5025 = vunpack.c.l.b16 %v4913
        %v5026 = vunpack.c.l.b16 %v4914
        %v5027 = vpack.c.b16 %v4990, %v4989
        %v5028 = vpack.c.b16 %v4992, %v4991
        %v5029 = vpack.c.b16 %v4994, %v4993
        %v5030 = vpack.c.b16 %v4996, %v4995
        %v5031 = vpack.c.b16 %v4998, %v4997
        %v5032 = vpack.c.b16 %v5000, %v4999
        %v5033 = vpack.c.b16 %v5002, %v5001
        %v5034 = vpack.c.b16 %v5004, %v5003
        %v5035 = vpack.c.b16 %v5006, %v5005
        %v5036 = vpack.c.b16 %v5008, %v5007
        %v5037 = vpack.c.b16 %v5010, %v5009
        %v5038 = vpack.c.b16 %v5012, %v5011
        %v5039 = vpack.c.b16 %v5014, %v5013
        %v5040 = vpack.c.b16 %v5016, %v5015
        %v5041 = vpack.c.b16 %v5018, %v5017
        %v5042 = vpack.c.b16 %v5020, %v5019
        %v5043 = vpack.c.b16 %v5022, %v5021
        %v5044 = vpack.c.b16 %v5024, %v5023
        %v5045 = vpack.c.b16 %v5026, %v5025
        %v5065 = vsel %vm792, %v4948, 0
        %v5068 = vsel %vm799, %v5045, 0
        %5070 = vmatpush.bf16.msra.mxu0 %v5034
        %5071 = vmatpush.bf16.msra.mxu0 %v5033
        %5072 = vmatpush.bf16.msra.mxu0 %v5032
        %5073 = vmatpush.bf16.msra.mxu0 %v5031
        %5074 = vmatpush.bf16.msra.mxu0 %v5030
        %5075 = vmatpush.bf16.msra.mxu0 %v5029
        %5076 = vmatpush.bf16.msra.mxu0 %v5028
        %5077 = vmatpush.bf16.msra.mxu0 %v5027
        %5078 = vmatmul.bf16.gmra.mxu0 %v4934
        %v5079 = vpop.f32.mrf.mxu0
        %v5080 = vadd.f32 0.0, %v5079
        %v5081 = vpop.f32.mrf.mxu0
        %v5082 = vadd.f32 0.0, %v5081
        %5083 = vdwg.mxu0
        %5084 = vmatpush.bf16.msra.mxu0 %v5042
        %5085 = vmatpush.bf16.msra.mxu0 %v5041
        %5086 = vmatpush.bf16.msra.mxu0 %v5040
        %5087 = vmatpush.bf16.msra.mxu0 %v5039
        %5088 = vmatpush.bf16.msra.mxu0 %v5038
        %5089 = vmatpush.bf16.msra.mxu0 %v5037
        %5090 = vmatpush.bf16.msra.mxu0 %v5036
        %5091 = vmatpush.bf16.msra.mxu0 %v5035
        %5092 = vmatmul.bf16.gmra.mxu0 %v4941
        %v5093 = vpop.f32.mrf.mxu0
        %v5094 = vadd.f32 %v5080, %v5093
        %v5095 = vpop.f32.mrf.mxu0
        %v5096 = vadd.f32 %v5082, %v5095
        %5097 = vdwg.mxu0
        %5098 = vmatpush.bf16.msra.mxu0 0
        %5099 = vmatpush.bf16.msra.mxu0 0
        %5100 = vmatpush.bf16.msra.mxu0 0
        %5101 = vmatpush.bf16.msra.mxu0 0
        %5102 = vmatpush.bf16.msra.mxu0 0
        %5103 = vmatpush.bf16.msra.mxu0 %v5068
        %5104 = vmatpush.bf16.msra.mxu0 %v5044
        %5105 = vmatpush.bf16.msra.mxu0 %v5043
        %5106 = vmatmul.bf16.gmra.mxu0 %v5065
        %v5107 = vpop.f32.mrf.mxu0
        %v5108 = vadd.f32 %v5094, %v5107
        %v5109 = vpop.f32.mrf.mxu0
        %v5110 = vadd.f32 %v5096, %v5109
        %5111 = vdwg.mxu0
        %v5152 = vunpack.c.l.b16 %v4838
        %v5153 = vunpack.c.l.b16 %v4839
        %v5154 = vunpack.c.l.b16 %v4840
        %v5155 = vunpack.c.l.b16 %v4841
        %v5156 = vunpack.c.l.b16 %v4842
        %v5157 = vunpack.c.l.b16 %v4843
        %v5158 = vunpack.c.l.b16 %v4844
        %v5159 = vunpack.c.l.b16 %v4845
        %v5160 = vunpack.c.l.b16 %v4846
        %v5161 = vunpack.c.l.b16 %v4847
        %v5162 = vunpack.c.l.b16 %v4848
        %v5163 = vunpack.c.l.b16 %v4849
        %v5164 = vunpack.c.l.b16 %v4850
        %v5165 = vunpack.c.l.b16 %v4851
        %v5166 = vunpack.c.l.b16 %v4852
        %v5167 = vunpack.c.l.b16 %v4853
        %v5168 = vunpack.c.l.b16 %v4854
        %v5169 = vunpack.c.l.b16 %v4855
        %v5170 = vunpack.c.l.b16 %v4856
        %v5171 = vunpack.c.l.b16 %v4857
        %v5172 = vunpack.c.l.b16 %v4858
        %v5173 = vunpack.c.l.b16 %v4859
        %v5174 = vunpack.c.l.b16 %v4860
        %v5175 = vunpack.c.l.b16 %v4861
        %v5176 = vunpack.c.l.b16 %v4862
        %v5177 = vunpack.c.l.b16 %v4863
        %v5178 = vunpack.c.l.b16 %v4864
        %v5179 = vunpack.c.l.b16 %v4865
        %v5180 = vunpack.c.l.b16 %v4866
        %v5181 = vunpack.c.l.b16 %v4867
        %v5182 = vunpack.c.l.b16 %v4868
        %v5183 = vunpack.c.l.b16 %v4869
        %v5184 = vunpack.c.l.b16 %v4870
        %v5185 = vunpack.c.l.b16 %v4871
        %v5186 = vunpack.c.l.b16 %v4872
        %v5187 = vunpack.c.l.b16 %v4873
        %v5188 = vunpack.c.l.b16 %v4874
        %v5189 = vunpack.c.l.b16 %v4875
        %v5190 = vpack.c.b16 %v5153, %v5152
        %v5191 = vpack.c.b16 %v5155, %v5154
        %v5192 = vpack.c.b16 %v5157, %v5156
        %v5193 = vpack.c.b16 %v5159, %v5158
        %v5194 = vpack.c.b16 %v5161, %v5160
        %v5195 = vpack.c.b16 %v5163, %v5162
        %v5196 = vpack.c.b16 %v5165, %v5164
        %v5197 = vpack.c.b16 %v5167, %v5166
        %v5198 = vpack.c.b16 %v5169, %v5168
        %v5199 = vpack.c.b16 %v5171, %v5170
        %v5200 = vpack.c.b16 %v5173, %v5172
        %v5201 = vpack.c.b16 %v5175, %v5174
        %v5202 = vpack.c.b16 %v5177, %v5176
        %v5203 = vpack.c.b16 %v5179, %v5178
        %v5204 = vpack.c.b16 %v5181, %v5180
        %v5205 = vpack.c.b16 %v5183, %v5182
        %v5206 = vpack.c.b16 %v5185, %v5184
        %v5207 = vpack.c.b16 %v5187, %v5186
        %v5208 = vpack.c.b16 %v5189, %v5188
        %v5227 = vsel %vm792, %v4927, 0
        %v5230 = vsel %vm799, %v5208, 0
        %5232 = vmatpush.bf16.msra.mxu0 %v5197
        %5233 = vmatpush.bf16.msra.mxu0 %v5196
        %5234 = vmatpush.bf16.msra.mxu0 %v5195
        %5235 = vmatpush.bf16.msra.mxu0 %v5194
        %5236 = vmatpush.bf16.msra.mxu0 %v5193
        %5237 = vmatpush.bf16.msra.mxu0 %v5192
        %5238 = vmatpush.bf16.msra.mxu0 %v5191
        %5239 = vmatpush.bf16.msra.mxu0 %v5190
        %5240 = vmatmul.bf16.gmra.mxu0 %v4925
        %v5241 = vpop.f32.mrf.mxu0
        %v5242 = vadd.f32 %v5108, %v5241
        %v5243 = vpop.f32.mrf.mxu0
        %v5244 = vadd.f32 %v5110, %v5243
        %5245 = vdwg.mxu0
        %5246 = vmatpush.bf16.msra.mxu0 %v5205
        %5247 = vmatpush.bf16.msra.mxu0 %v5204
        %5248 = vmatpush.bf16.msra.mxu0 %v5203
        %5249 = vmatpush.bf16.msra.mxu0 %v5202
        %5250 = vmatpush.bf16.msra.mxu0 %v5201
        %5251 = vmatpush.bf16.msra.mxu0 %v5200
        %5252 = vmatpush.bf16.msra.mxu0 %v5199
        %5253 = vmatpush.bf16.msra.mxu0 %v5198
        %5254 = vmatmul.bf16.gmra.mxu0 %v4926
        %v5255 = vpop.f32.mrf.mxu0
        %v5256 = vadd.f32 %v5242, %v5255
        %v5257 = vpop.f32.mrf.mxu0
        %v5258 = vadd.f32 %v5244, %v5257
        %5259 = vdwg.mxu0
        %5260 = vmatpush.bf16.msra.mxu0 0
        %5261 = vmatpush.bf16.msra.mxu0 0
        %5262 = vmatpush.bf16.msra.mxu0 0
        %5263 = vmatpush.bf16.msra.mxu0 0
        %5264 = vmatpush.bf16.msra.mxu0 0
        %5265 = vmatpush.bf16.msra.mxu0 %v5230
        %5266 = vmatpush.bf16.msra.mxu0 %v5207
        %5267 = vmatpush.bf16.msra.mxu0 %v5206
        %5268 = vmatmul.bf16.gmra.mxu0 %v5227
        %v5269 = vpop.f32.mrf.mxu0
        %v5270 = vadd.f32 %v5256, %v5269
        %v5271 = vpop.f32.mrf.mxu0
        %v5272 = vadd.f32 %v5258, %v5271
        %5273 = vdwg.mxu0
        %s5274 = scalar_lea.vmem %s8, 304
        %v5275 = vld [vmem:[%s5274] sm:$0xf]
        %v5276 = vld [vmem:[%s5274 + $0x4] sm:$0xf]
        %v5277 = vld [vmem:[%s5274 + $0x8] sm:$0xf]
        %v5278 = vld [vmem:[%s5274 + $0xc] sm:$0xf]
        %v5279 = vld [vmem:[%s5274 + $0x10] sm:$0xf]
        %v5280 = vld [vmem:[%s5274 + $0x14] sm:$0xf]
        %v5281 = vld [vmem:[%s5274 + $0x18] sm:$0xf]
        %v5282 = vld [vmem:[%s5274 + $0x1c] sm:$0xf]
        %v5283 = vld [vmem:[%s5274 + $0x20] sm:$0xf]
        %v5284 = vld [vmem:[%s5274 + $0x24] sm:$0xf]
        %v5285 = vld [vmem:[%s5274 + $0x28] sm:$0xf]
        %v5286 = vld [vmem:[%s5274 + $0x2c] sm:$0xf]
        %v5287 = vld [vmem:[%s5274 + $0x30] sm:$0xf]
        %v5288 = vld [vmem:[%s5274 + $0x34] sm:$0xf]
        %v5289 = vld [vmem:[%s5274 + $0x38] sm:$0xf]
        %v5290 = vld [vmem:[%s5274 + $0x3c] sm:$0xf]
        %v5291 = vld [vmem:[%s5274 + $0x40] sm:$0xf]
        %v5292 = vld [vmem:[%s5274 + $0x44] sm:$0xf]
        %v5293 = vld [vmem:[%s5274 + $0x48] sm:$0xf]
        %v5294 = vld [vmem:[%s5274 + $0x4c] sm:$0xf]
        %v5295 = vld [vmem:[%s5274 + $0x50] sm:$0xf]
        %v5296 = vld [vmem:[%s5274 + $0x54] sm:$0xf]
        %v5297 = vld [vmem:[%s5274 + $0x58] sm:$0xf]
        %v5298 = vld [vmem:[%s5274 + $0x5c] sm:$0xf]
        %v5299 = vld [vmem:[%s5274 + $0x60] sm:$0xf]
        %v5300 = vld [vmem:[%s5274 + $0x64] sm:$0xf]
        %v5301 = vld [vmem:[%s5274 + $0x68] sm:$0xf]
        %v5302 = vld [vmem:[%s5274 + $0x6c] sm:$0xf]
        %v5303 = vld [vmem:[%s5274 + $0x70] sm:$0xf]
        %v5304 = vld [vmem:[%s5274 + $0x74] sm:$0xf]
        %v5305 = vld [vmem:[%s5274 + $0x78] sm:$0xf]
        %v5306 = vld [vmem:[%s5274 + $0x7c] sm:$0xf]
        %v5307 = vld [vmem:[%s5274 + $0x80] sm:$0xf]
        %v5308 = vld [vmem:[%s5274 + $0x84] sm:$0xf]
        %v5309 = vld [vmem:[%s5274 + $0x88] sm:$0xf]
        %v5310 = vld [vmem:[%s5274 + $0x8c] sm:$0xf]
        %v5311 = vld [vmem:[%s5274 + $0x90] sm:$0xf]
        %v5312 = vld [vmem:[%s5274 + $0x94] sm:$0x3]
        %v5313 = vrot.slane %v4925, 1
        %v5314 = vrot.slane %v4926, 1
        %v5315 = vrot.slane %v4927, 1
        %v5356 = vunpack.c.l.b16 %v5275
        %v5357 = vunpack.c.l.b16 %v5276
        %v5358 = vunpack.c.l.b16 %v5277
        %v5359 = vunpack.c.l.b16 %v5278
        %v5360 = vunpack.c.l.b16 %v5279
        %v5361 = vunpack.c.l.b16 %v5280
        %v5362 = vunpack.c.l.b16 %v5281
        %v5363 = vunpack.c.l.b16 %v5282
        %v5364 = vunpack.c.l.b16 %v5283
        %v5365 = vunpack.c.l.b16 %v5284
        %v5366 = vunpack.c.l.b16 %v5285
        %v5367 = vunpack.c.l.b16 %v5286
        %v5368 = vunpack.c.l.b16 %v5287
        %v5369 = vunpack.c.l.b16 %v5288
        %v5370 = vunpack.c.l.b16 %v5289
        %v5371 = vunpack.c.l.b16 %v5290
        %v5372 = vunpack.c.l.b16 %v5291
        %v5373 = vunpack.c.l.b16 %v5292
        %v5374 = vunpack.c.l.b16 %v5293
        %v5375 = vunpack.c.l.b16 %v5294
        %v5376 = vunpack.c.l.b16 %v5295
        %v5377 = vunpack.c.l.b16 %v5296
        %v5378 = vunpack.c.l.b16 %v5297
        %v5379 = vunpack.c.l.b16 %v5298
        %v5380 = vunpack.c.l.b16 %v5299
        %v5381 = vunpack.c.l.b16 %v5300
        %v5382 = vunpack.c.l.b16 %v5301
        %v5383 = vunpack.c.l.b16 %v5302
        %v5384 = vunpack.c.l.b16 %v5303
        %v5385 = vunpack.c.l.b16 %v5304
        %v5386 = vunpack.c.l.b16 %v5305
        %v5387 = vunpack.c.l.b16 %v5306
        %v5388 = vunpack.c.l.b16 %v5307
        %v5389 = vunpack.c.l.b16 %v5308
        %v5390 = vunpack.c.l.b16 %v5309
        %v5391 = vunpack.c.l.b16 %v5310
        %v5392 = vunpack.c.l.b16 %v5311
        %v5393 = vunpack.c.l.b16 %v5312
        %v5394 = vpack.c.b16 %v5357, %v5356
        %v5395 = vpack.c.b16 %v5359, %v5358
        %v5396 = vpack.c.b16 %v5361, %v5360
        %v5397 = vpack.c.b16 %v5363, %v5362
        %v5398 = vpack.c.b16 %v5365, %v5364
        %v5399 = vpack.c.b16 %v5367, %v5366
        %v5400 = vpack.c.b16 %v5369, %v5368
        %v5401 = vpack.c.b16 %v5371, %v5370
        %v5402 = vpack.c.b16 %v5373, %v5372
        %v5403 = vpack.c.b16 %v5375, %v5374
        %v5404 = vpack.c.b16 %v5377, %v5376
        %v5405 = vpack.c.b16 %v5379, %v5378
        %v5406 = vpack.c.b16 %v5381, %v5380
        %v5407 = vpack.c.b16 %v5383, %v5382
        %v5408 = vpack.c.b16 %v5385, %v5384
        %v5409 = vpack.c.b16 %v5387, %v5386
        %v5410 = vpack.c.b16 %v5389, %v5388
        %v5411 = vpack.c.b16 %v5391, %v5390
        %v5412 = vpack.c.b16 %v5393, %v5392
        %v5432 = vsel %vm792, %v5315, 0
        %v5435 = vsel %vm799, %v5412, 0
        %5437 = vmatpush.bf16.msra.mxu0 %v5401
        %5438 = vmatpush.bf16.msra.mxu0 %v5400
        %5439 = vmatpush.bf16.msra.mxu0 %v5399
        %5440 = vmatpush.bf16.msra.mxu0 %v5398
        %5441 = vmatpush.bf16.msra.mxu0 %v5397
        %5442 = vmatpush.bf16.msra.mxu0 %v5396
        %5443 = vmatpush.bf16.msra.mxu0 %v5395
        %5444 = vmatpush.bf16.msra.mxu0 %v5394
        %5445 = vmatmul.bf16.gmra.mxu0 %v5313
        %v5446 = vpop.f32.mrf.mxu0
        %v5447 = vadd.f32 0.0, %v5446
        %v5448 = vpop.f32.mrf.mxu0
        %v5449 = vadd.f32 0.0, %v5448
        %5450 = vdwg.mxu0
        %5451 = vmatpush.bf16.msra.mxu0 %v5409
        %5452 = vmatpush.bf16.msra.mxu0 %v5408
        %5453 = vmatpush.bf16.msra.mxu0 %v5407
        %5454 = vmatpush.bf16.msra.mxu0 %v5406
        %5455 = vmatpush.bf16.msra.mxu0 %v5405
        %5456 = vmatpush.bf16.msra.mxu0 %v5404
        %5457 = vmatpush.bf16.msra.mxu0 %v5403
        %5458 = vmatpush.bf16.msra.mxu0 %v5402
        %5459 = vmatmul.bf16.gmra.mxu0 %v5314
        %v5460 = vpop.f32.mrf.mxu0
        %v5461 = vadd.f32 %v5447, %v5460
        %v5462 = vpop.f32.mrf.mxu0
        %v5463 = vadd.f32 %v5449, %v5462
        %5464 = vdwg.mxu0
        %5465 = vmatpush.bf16.msra.mxu0 0
        %5466 = vmatpush.bf16.msra.mxu0 0
        %5467 = vmatpush.bf16.msra.mxu0 0
        %5468 = vmatpush.bf16.msra.mxu0 0
        %5469 = vmatpush.bf16.msra.mxu0 0
        %5470 = vmatpush.bf16.msra.mxu0 %v5435
        %5471 = vmatpush.bf16.msra.mxu0 %v5411
        %5472 = vmatpush.bf16.msra.mxu0 %v5410
        %5473 = vmatmul.bf16.gmra.mxu0 %v5432
        %v5474 = vpop.f32.mrf.mxu0
        %v5475 = vadd.f32 %v5461, %v5474
        %v5476 = vpop.f32.mrf.mxu0
        %v5477 = vadd.f32 %v5463, %v5476
        %5478 = vdwg.mxu0
        %v5479 = vadd.f32 %v5270, %v5475
        %v5480 = vadd.f32 %v5272, %v5477
        %v5481 = vld [vmem:[%s9] sm:$0x1]
        %v5483 = vperm.slane %v5481, 0
        %v5485 = vadd.f32 %v5479, %v5483
        %v5486 = vadd.f32 %v5480, %v5483
        %v5487 = vmax.f32 %v5485, 0.0
        %vm5488 = vcmask 814080
        %v5489 = vsel %vm5488, %v5487, -inf
        %v5490 = vrot.slane %v5489, 4
        %v5491 = vmax.f32 %v5489, %v5490
        %v5492 = vrot.slane %v5491, 2
        %v5493 = vmax.f32 %v5491, %v5492
        %v5494 = vrot.slane %v5493, 1
        %v5495 = vmax.f32 %v5493, %v5494
        %v5496 = vmax.f32 %v5486, 0.0
        %vm5497 = vcmask 818182
        %v5498 = vsel %vm5497, %v5487, -inf
        %vm5499 = vcmask 812032
        %v5500 = vsel %vm5499, %v5496, -inf
        %v5501 = vmax.f32 %v5498, %v5500
        %v5502 = vrot.slane %v5501, 4
        %v5503 = vmax.f32 %v5501, %v5502
        %v5504 = vrot.slane %v5503, 2
        %v5505 = vmax.f32 %v5503, %v5504
        %v5506 = vrot.slane %v5505, 1
        %v5507 = vmax.f32 %v5505, %v5506
        %vm5508 = vcmask 1040384
        %v5509 = vsel %vm5508, %v5495, %v5507
        %v5510 = vpack.c.bf16 %v5509, %v5509
        %v5511 = vld [vmem:[%s10] sm:$0xf]
        %v5512 = vld [vmem:[%s10 + $0x4] sm:$0xf]
        %v5513 = vld [vmem:[%s10 + $0x8] sm:$0xf]
        %v5514 = vld [vmem:[%s10 + $0xc] sm:$0xf]
        %v5515 = vld [vmem:[%s10 + $0x10] sm:$0xf]
        %v5516 = vld [vmem:[%s10 + $0x14] sm:$0xf]
        %v5517 = vld [vmem:[%s10 + $0x18] sm:$0xf]
        %v5518 = vld [vmem:[%s10 + $0x1c] sm:$0xf]
        %v5519 = vld [vmem:[%s10 + $0x20] sm:$0xf]
        %v5520 = vld [vmem:[%s10 + $0x24] sm:$0xf]
        %v5521 = vld [vmem:[%s10 + $0x28] sm:$0xf]
        %v5522 = vld [vmem:[%s10 + $0x2c] sm:$0xf]
        %v5523 = vld [vmem:[%s10 + $0x30] sm:$0x3]
        %v5524 = vld [vmem:[%s11] sm:$0x1]
        %v5526 = vperm.slane %v5524, 0
        %v5541 = vunpack.c.l.b16 %v5511
        %v5542 = vunpack.c.l.b16 %v5512
        %v5543 = vunpack.c.l.b16 %v5513
        %v5544 = vunpack.c.l.b16 %v5514
        %v5545 = vunpack.c.l.b16 %v5515
        %v5546 = vunpack.c.l.b16 %v5516
        %v5547 = vunpack.c.l.b16 %v5517
        %v5548 = vunpack.c.l.b16 %v5518
        %v5549 = vunpack.c.l.b16 %v5519
        %v5550 = vunpack.c.l.b16 %v5520
        %v5551 = vunpack.c.l.b16 %v5521
        %v5552 = vunpack.c.l.b16 %v5522
        %v5553 = vunpack.c.l.b16 %v5523
        %v5554 = vpack.c.b16 %v5542, %v5541
        %v5555 = vpack.c.b16 %v5544, %v5543
        %v5556 = vpack.c.b16 %v5546, %v5545
        %v5557 = vpack.c.b16 %v5548, %v5547
        %v5558 = vpack.c.b16 %v5550, %v5549
        %v5559 = vpack.c.b16 %v5552, %v5551
        %v5560 = vpack.c.b16 %v5553, %v5553
        %vm5567 = vcmask 818176
        %v5569 = vsel %vm5567, %v5510, 0
        %vm5571 = vcmask 1041408
        %v5573 = vsel %vm5571, %v5560, 0
        %5575 = vmatpush.bf16.msra.mxu0 0
        %5576 = vmatpush.bf16.msra.mxu0 %v5573
        %5577 = vmatpush.bf16.msra.mxu0 %v5559
        %5578 = vmatpush.bf16.msra.mxu0 %v5558
        %5579 = vmatpush.bf16.msra.mxu0 %v5557
        %5580 = vmatpush.bf16.msra.mxu0 %v5556
        %5581 = vmatpush.bf16.msra.mxu0 %v5555
        %5582 = vmatpush.bf16.msra.mxu0 %v5554
        %5583 = vmatmul.bf16.gmra.mxu0 %v5569
        %v5584 = vpop.f32.mrf.mxu0
        %v5585 = vadd.f32 %v5526, %v5584
        %v5586 = vpop.f32.mrf.mxu0
        %5587 = vdwg.mxu0
        %v5588 = vtanh.pop %v1609
        %v5589 = vtanh.pop %v1611
        %v5590 = vperm.slane %v5585, 0
        %5592 = vrot.lane.b32.xlu0 %v5590, 100
        %v5593 = vpop.permute.xlu0 %5592
        %v5595 = vadd.f32 %v1609, %v5593
        %v5596 = vadd.f32 %v1610, %v5593
        %v5597 = vadd.f32 %v1611, %v5593
        %v5598 = vadd.f32 %v1612, %v5593
        %v5599 = vmax.f32 %v5595, 0.0
        %v5600 = vmax.f32 %v5596, 0.0
        %v5601 = vmax.f32 %v5597, 0.0
        %v5602 = vmax.f32 %v5598, 0.0
        %5607 = vrot.lane.b32.xlu0 %v5599, 28
        %v5608 = vpop.permute.xlu0 %5607
        %5609 = vrot.lane.b32.xlu0 %v5600, 28
        %v5610 = vpop.permute.xlu0 %5609
        %5611 = vrot.lane.b32.xlu0 %v5601, 28
        %v5612 = vpop.permute.xlu0 %5611
        %5613 = vrot.lane.b32.xlu0 %v5602, 28
        %v5614 = vpop.permute.xlu0 %5613
        %vm5615 = vcmask 228352
        %v5616 = vsel %vm5615, %v5608, %v5610
        %v5617 = vsel %vm5615, %v5612, %v5614
        %v5620 = vmul.f32 %v5588, %v5616
        %v5621 = vmul.f32 %v5589, %v5617
        %v5622 = vsel %vm5567, %v5620, -inf
        %vm5623 = vcmask 811008
        %v5624 = vsel %vm5623, %v5621, -inf
        %v5625 = vmax.f32 %v5622, %v5624
        %v5626 = vrot.slane %v5625, 4
        %v5627 = vmax.f32 %v5625, %v5626
        %v5628 = vrot.slane %v5627, 2
        %v5629 = vmax.f32 %v5627, %v5628
        %v5630 = vrot.slane %v5629, 1
        %v5631 = vmax.f32 %v5629, %v5630
        %v5632 = vtanh.pop %v3050
        %v5633 = vtanh.pop %v3052
        %v5634 = vadd.f32 %v3050, %v5593
        %v5635 = vadd.f32 %v3051, %v5593
        %v5636 = vadd.f32 %v3052, %v5593
        %v5637 = vadd.f32 %v3053, %v5593
        %v5638 = vmax.f32 %v5634, 0.0
        %v5639 = vmax.f32 %v5635, 0.0
        %v5640 = vmax.f32 %v5636, 0.0
        %v5641 = vmax.f32 %v5637, 0.0
        %5646 = vrot.lane.b32.xlu0 %v5638, 28
        %v5647 = vpop.permute.xlu0 %5646
        %5648 = vrot.lane.b32.xlu0 %v5639, 28
        %v5649 = vpop.permute.xlu0 %5648
        %5650 = vrot.lane.b32.xlu0 %v5640, 28
        %v5651 = vpop.permute.xlu0 %5650
        %5652 = vrot.lane.b32.xlu0 %v5641, 28
        %v5653 = vpop.permute.xlu0 %5652
        %v5654 = vsel %vm5615, %v5647, %v5649
        %v5655 = vsel %vm5615, %v5651, %v5653
        %v5658 = vmul.f32 %v5632, %v5654
        %v5659 = vmul.f32 %v5633, %v5655
        %v5660 = vsel %vm5567, %v5658, -inf
        %v5661 = vsel %vm5499, %v5659, -inf
        %v5662 = vmax.f32 %v5660, %v5661
        %v5663 = vrot.slane %v5662, 4
        %v5664 = vmax.f32 %v5662, %v5663
        %v5665 = vrot.slane %v5664, 2
        %v5666 = vmax.f32 %v5664, %v5665
        %v5667 = vrot.slane %v5666, 1
        %v5668 = vmax.f32 %v5666, %v5667
        %v5669 = vtanh.pop %v4830
        %v5670 = vtanh.pop %v4832
        %v5671 = vadd.f32 %v4830, %v5593
        %v5672 = vadd.f32 %v4831, %v5593
        %v5673 = vadd.f32 %v4832, %v5593
        %v5674 = vadd.f32 %v4833, %v5593
        %v5675 = vmax.f32 %v5671, 0.0
        %v5676 = vmax.f32 %v5672, 0.0
        %v5677 = vmax.f32 %v5673, 0.0
        %v5678 = vmax.f32 %v5674, 0.0
        %5683 = vrot.lane.b32.xlu0 %v5675, 28
        %v5684 = vpop.permute.xlu0 %5683
        %5685 = vrot.lane.b32.xlu0 %v5676, 28
        %v5686 = vpop.permute.xlu0 %5685
        %5687 = vrot.lane.b32.xlu0 %v5677, 28
        %v5688 = vpop.permute.xlu0 %5687
        %5689 = vrot.lane.b32.xlu0 %v5678, 28
        %v5690 = vpop.permute.xlu0 %5689
        %v5691 = vsel %vm5615, %v5684, %v5686
        %v5692 = vsel %vm5615, %v5688, %v5690
        %v5695 = vmul.f32 %v5669, %v5691
        %v5696 = vmul.f32 %v5670, %v5692
        %v5697 = vsel %vm5567, %v5695, -inf
        %vm5698 = vcmask 813056
        %v5699 = vsel %vm5698, %v5696, -inf
        %v5700 = vmax.f32 %v5697, %v5699
        %v5701 = vrot.slane %v5700, 4
        %v5702 = vmax.f32 %v5700, %v5701
        %v5703 = vrot.slane %v5702, 2
        %v5704 = vmax.f32 %v5702, %v5703
        %v5705 = vrot.slane %v5704, 1
        %v5706 = vmax.f32 %v5704, %v5705
        %5708 = vrot.lane.b32.xlu0 %v5668, 100
        %v5709 = vpop.permute.xlu0 %5708
        %5712 = vrot.lane.b32.xlu0 %v5706, 72
        %v5713 = vpop.permute.xlu0 %5712
        %v5715 = vsel %vm5567, %v5631, %v5709
        %vm5716 = vcmask 588800
        %v5717 = vsel %vm5716, %v5709, %v5713
        %v5718 = vtanh.pop %v1613
        %v5719 = vperm.slane %v5585, 1
        %5721 = vrot.lane.b32.xlu0 %v5719, 100
        %v5722 = vpop.permute.xlu0 %5721
        %v5724 = vadd.f32 %v1611, %v5722
        %v5725 = vadd.f32 %v1612, %v5722
        %v5726 = vadd.f32 %v1613, %v5722
        %v5727 = vadd.f32 %v1614, %v5722
        %v5728 = vmax.f32 %v5724, 0.0
        %v5729 = vmax.f32 %v5725, 0.0
        %v5730 = vmax.f32 %v5726, 0.0
        %v5731 = vmax.f32 %v5727, 0.0
        %5736 = vrot.lane.b32.xlu0 %v5728, 28
        %v5737 = vpop.permute.xlu0 %5736
        %5738 = vrot.lane.b32.xlu0 %v5729, 28
        %v5739 = vpop.permute.xlu0 %5738
        %5740 = vrot.lane.b32.xlu0 %v5730, 28
        %v5741 = vpop.permute.xlu0 %5740
        %5742 = vrot.lane.b32.xlu0 %v5731, 28
        %v5743 = vpop.permute.xlu0 %5742
        %v5744 = vsel %vm5615, %v5737, %v5739
        %v5745 = vsel %vm5615, %v5741, %v5743
        %v5748 = vmul.f32 %v5589, %v5744
        %v5749 = vmul.f32 %v5718, %v5745
        %vm5750 = vcmask 818183
        %v5751 = vsel %vm5750, %v5748, -inf
        %v5752 = vsel %vm5567, %v5749, -inf
        %v5753 = vmax.f32 %v5751, %v5752
        %v5754 = vrot.slane %v5753, 4
        %v5755 = vmax.f32 %v5753, %v5754
        %v5756 = vrot.slane %v5755, 2
        %v5757 = vmax.f32 %v5755, %v5756
        %v5758 = vrot.slane %v5757, 1
        %v5759 = vmax.f32 %v5757, %v5758
        %v5760 = vtanh.pop %v3054
        %v5761 = vtanh.pop %v3056
        %v5762 = vadd.f32 %v3052, %v5722
        %v5763 = vadd.f32 %v3053, %v5722
        %v5764 = vadd.f32 %v3054, %v5722
        %v5765 = vadd.f32 %v3055, %v5722
        %v5766 = vadd.f32 %v3056, %v5722
        %v5767 = vadd.f32 %v3057, %v5722
        %v5768 = vmax.f32 %v5762, 0.0
        %v5769 = vmax.f32 %v5763, 0.0
        %v5770 = vmax.f32 %v5764, 0.0
        %v5771 = vmax.f32 %v5765, 0.0
        %v5772 = vmax.f32 %v5766, 0.0
        %v5773 = vmax.f32 %v5767, 0.0
        %5780 = vrot.lane.b32.xlu0 %v5768, 28
        %v5781 = vpop.permute.xlu0 %5780
        %5782 = vrot.lane.b32.xlu0 %v5769, 28
        %v5783 = vpop.permute.xlu0 %5782
        %5784 = vrot.lane.b32.xlu0 %v5770, 28
        %v5785 = vpop.permute.xlu0 %5784
        %5786 = vrot.lane.b32.xlu0 %v5771, 28
        %v5787 = vpop.permute.xlu0 %5786
        %5788 = vrot.lane.b32.xlu0 %v5772, 28
        %v5789 = vpop.permute.xlu0 %5788
        %5790 = vrot.lane.b32.xlu0 %v5773, 28
        %v5791 = vpop.permute.xlu0 %5790
        %v5792 = vsel %vm5615, %v5781, %v5783
        %v5793 = vsel %vm5615, %v5785, %v5787
        %v5794 = vsel %vm5615, %v5789, %v5791
        %v5798 = vmul.f32 %v5633, %v5792
        %v5799 = vmul.f32 %v5760, %v5793
        %v5800 = vmul.f32 %v5761, %v5794
        %v5801 = vsel %vm5750, %v5798, -inf
        %v5802 = vsel %vm5567, %v5799, -inf
        %v5803 = vsel %vm5623, %v5800, -inf
        %v5804 = vmax.f32 %v5801, %v5802
        %v5805 = vmax.f32 %v5804, %v5803
        %v5806 = vrot.slane %v5805, 4
        %v5807 = vmax.f32 %v5805, %v5806
        %v5808 = vrot.slane %v5807, 2
        %v5809 = vmax.f32 %v5807, %v5808
        %v5810 = vrot.slane %v5809, 1
        %v5811 = vmax.f32 %v5809, %v5810
        %v5812 = vtanh.pop %v4834
        %v5813 = vtanh.pop %v4836
        %v5814 = vadd.f32 %v4832, %v5722
        %v5815 = vadd.f32 %v4833, %v5722
        %v5816 = vadd.f32 %v4834, %v5722
        %v5817 = vadd.f32 %v4835, %v5722
        %v5818 = vadd.f32 %v4836, %v5722
        %v5819 = vadd.f32 %v4837, %v5722
        %v5820 = vmax.f32 %v5814, 0.0
        %v5821 = vmax.f32 %v5815, 0.0
        %v5822 = vmax.f32 %v5816, 0.0
        %v5823 = vmax.f32 %v5817, 0.0
        %v5824 = vmax.f32 %v5818, 0.0
        %v5825 = vmax.f32 %v5819, 0.0
        %5832 = vrot.lane.b32.xlu0 %v5820, 28
        %v5833 = vpop.permute.xlu0 %5832
        %5834 = vrot.lane.b32.xlu0 %v5821, 28
        %v5835 = vpop.permute.xlu0 %5834
        %5836 = vrot.lane.b32.xlu0 %v5822, 28
        %v5837 = vpop.permute.xlu0 %5836
        %5838 = vrot.lane.b32.xlu0 %v5823, 28
        %v5839 = vpop.permute.xlu0 %5838
        %5840 = vrot.lane.b32.xlu0 %v5824, 28
        %v5841 = vpop.permute.xlu0 %5840
        %5842 = vrot.lane.b32.xlu0 %v5825, 28
        %v5843 = vpop.permute.xlu0 %5842
        %v5844 = vsel %vm5615, %v5833, %v5835
        %v5845 = vsel %vm5615, %v5837, %v5839
        %v5846 = vsel %vm5615, %v5841, %v5843
        %v5850 = vmul.f32 %v5670, %v5844
        %v5851 = vmul.f32 %v5812, %v5845
        %v5852 = vmul.f32 %v5813, %v5846
        %v5853 = vsel %vm5750, %v5850, -inf
        %v5854 = vsel %vm5567, %v5851, -inf
        %v5855 = vsel %vm5499, %v5852, -inf
        %v5856 = vmax.f32 %v5853, %v5854
        %v5857 = vmax.f32 %v5856, %v5855
        %v5858 = vrot.slane %v5857, 4
        %v5859 = vmax.f32 %v5857, %v5858
        %v5860 = vrot.slane %v5859, 2
        %v5861 = vmax.f32 %v5859, %v5860
        %v5862 = vrot.slane %v5861, 1
        %v5863 = vmax.f32 %v5861, %v5862
        %5865 = vrot.lane.b32.xlu0 %v5811, 100
        %v5866 = vpop.permute.xlu0 %5865
        %5869 = vrot.lane.b32.xlu0 %v5863, 72
        %v5870 = vpop.permute.xlu0 %5869
        %v5872 = vsel %vm5567, %v5759, %v5866
        %v5873 = vsel %vm5716, %v5866, %v5870
        %v5876 = vrot.slane %v5872, 7
        %v5877 = vrot.slane %v5873, 7
        %v5878 = vrot.slane %v5870, 7
        %v5882 = vsel %vm5508, %v5715, %v5876
        %v5883 = vsel %vm5508, %v5717, %v5877
        %v5884 = vsel %vm5508, %v5713, %v5878
        %v5888 = vrot.slane %v5883, 6
        %v5889 = vrot.slane %v5884, 4
        %v5890 = vsel %vm5571, %v5882, %v5888
        %vm5891 = vcmask 1043456
        %v5892 = vsel %vm5891, %v5890, %v5889
        %vm5894 = vcmask 1043458
        %vm5895 = vmor %vm5894, %vm5571
        %vm5896 = vcmask 357380
        %vm5897 = vmor %vm5896, %vm5895
        %5898 = vst.msk [vmem:[%s421] sm:$0x3f] %vm5897, %v5892
        %s5899 = sand.u32 %s296, 1
        %s5900 = scalar_lea.sflag [#allocation3], %s5899
        %s5901 = sand.u32 %s296, 1
        %s5902 = smul.addr %s5901, 6
        %s5903 = scalar_lea.vmem [#allocation2], %s5902
        // Predicated region
        $region69: #{tpu_custom_call.1} parent=67 // pred_check
          %p5904 = pneg %p306
        $region70: #{tpu_custom_call.1} parent=67 // pred_check_branch
          %5906 = sbr.rel (%p5904) target = $region72
        $region71: #{tpu_custom_call.1} parent=67 // pred_region
          %5908 = vsyncadd %s5900, 0
          %s5909 = smul.addr %s26, 3
          %s5910 = smul.addr %s5909, 2
          %s5911 = scalar_lea.hbm %s12, %s5910
          %s5913 = sshll.u32 %s5903, 4
          %s5914 = int_to_ptr.vmem [resolvable:$true] %s5913
          %s5915 = sshll.u32 %s5911, 4
          %s5916 = int_to_ptr.hbm [resolvable:$true] %s5915
          %5918 = dma.vmem_to_hbm [thread:$0]  %s5914, 96, %s5916, %s5900
        $region72: #{tpu_custom_call.1} parent=67 // pred_fallthru
          _
      $region68: #{tpu_custom_call.1} parent=5 // pred_fallthru
        _
      %p5919 = scmp.le.s32.totalorder 2, %s21
      // Predicated region
      $region73: #{tpu_custom_call.1} parent=5 // pred_check
        %p5920 = pneg %p5919
      $region74: #{tpu_custom_call.1} parent=5 // pred_check_branch
        %5922 = sbr.rel (%p5920) target = $region76
      $region75: #{tpu_custom_call.1} parent=5 // pred_region
        %s5923 = ssub.s32 %s21, 2
        // Predicated region
        $region77: #{tpu_custom_call.1} parent=75 // pred_check
          %p5924 = pneg %p312
        $region78: #{tpu_custom_call.1} parent=75 // pred_check_branch
          %5926 = sbr.rel (%p5924) target = $region80
        $region79: #{tpu_custom_call.1} parent=75 // pred_region
          %s5927 = sand.u32 %s297, 1
          %s5928 = scalar_lea.sflag [#allocation3], %s5927
          %s5929 = sand.u32 %s297, 1
          %s5930 = smul.addr %s5929, 6
          %s5931 = scalar_lea.vmem [#allocation2], %s5930
          %5933 = dma.done %s5928, 96
        $region80: #{tpu_custom_call.1} parent=75 // pred_fallthru
          _
      $region76: #{tpu_custom_call.1} parent=5 // pred_fallthru
        _
    $region6: #{tpu_custom_call.1} parent=1 // loop_footer
      %s25 = sadd.s32 1, %s21
    $region7: #{tpu_custom_call.1} parent=1 // loop_footer_branch
      %20 = sbr.rel target = $region3
    $region8: #{tpu_custom_call.1} parent=1 // loop_exit
      _
    %5934 = vsyncpa [#allocation3], 1
    %s5935 = scalar_lea.sflag [#allocation3], 1
    %5936 = vsyncpa %s5935, 1

</llo_original>
